<compile_context>
chip_gen: v7x
topology: tpu7x:2x2x1
jax: 0.10.0
libtpu: 0.0.40
codegen_flags: <defaults>
</compile_context>

<pallas_src>
import functools

import jax
import jax.numpy as jnp
from jax.experimental import pallas as pl
from jax.experimental.pallas import tpu as pltpu


# ---------------- in-kernel helpers (traced into the kernel body) ----------------
def _layernorm(x, w, b, eps=1e-5):
    mu = jnp.mean(x, axis=-1, keepdims=True)
    var = jnp.mean((x - mu) ** 2, axis=-1, keepdims=True)
    return (x - mu) * jax.lax.rsqrt(var + eps) * w + b


def _gelu_exact(x):
    # nn.GELU() default = exact erf form (kept for parity with the PyTorch module).
    return 0.5 * x * (1.0 + jax.lax.erf(x * (1.0 / jnp.sqrt(jnp.float32(2.0)))))


# ---------------- fused kernel: one grid step == Bblk batch elements ----------------
def attention_block_kernel(
    x_ref, pos_ref, wp_ref, bp_ref,
    ln0w_ref, ln0b_ref,
    wqkv_ref, bqkv_ref, wo_ref, bo_ref,
    ln1w_ref, ln1b_ref,
    w1_ref, b1_ref, w2_ref, b2_ref,
    o_ref, *, num_heads,
):
    bblk, n, d_in = x_ref.shape
    e = wp_ref.shape[1]
    hd = e // num_heads
    m = bblk * n  # rows fed to every row-wise matmul

    # ---- x = projection(x)  (bf16 operands, f32 accumulation)
    x2 = x_ref[...].reshape(m, d_in).astype(jnp.bfloat16)
    h = jnp.dot(x2, wp_ref[...], preferred_element_type=jnp.float32) + bp_ref[...]

    # ---- x = x + pos_embeddings()   (LPE table broadcast over the batch block)
    h = h.reshape(bblk, n, e) + pos_ref[...][None]

    # ---- x = ln_0(x)
    h0 = _layernorm(h, ln0w_ref[...], ln0b_ref[...])          # (bblk, n, e) f32
    h0_2d = h0.reshape(m, e)

    # ---- x = x + MultiheadAttention(x, x, x)
    qkv = jnp.dot(h0_2d.astype(jnp.bfloat16), wqkv_ref[...],
                  preferred_element_type=jnp.float32) + bqkv_ref[...]   # (m, 3e)
    q3 = qkv[:, :e].reshape(bblk, n, e)
    k3 = qkv[:, e:2 * e].reshape(bblk, n, e)
    v3 = qkv[:, 2 * e:].reshape(bblk, n, e)
    scale = 1.0 / jnp.sqrt(jnp.float32(hd))

    head_outs = []
    for hh in range(num_heads):  # static & tiny; each head batched over bblk via dot_general
        sl = slice(hh * hd, (hh + 1) * hd)
        qh = q3[:, :, sl].astype(jnp.bfloat16)
        kh = k3[:, :, sl].astype(jnp.bfloat16)
        vh = v3[:, :, sl].astype(jnp.bfloat16)
        s = jnp.einsum("bnd,bmd->bnm", qh, kh,
                       preferred_element_type=jnp.float32) * scale     # f32 scores
        s = s - jnp.max(s, axis=-1, keepdims=True)
        p = jnp.exp(s)
        p = p * pl.reciprocal(jnp.sum(p, axis=-1, keepdims=True), approx=True)
        head_outs.append(jnp.einsum("bnm,bmd->bnd", p.astype(jnp.bfloat16), vh,
                                    preferred_element_type=jnp.float32))
    attn = jnp.concatenate(head_outs, axis=-1).reshape(m, e)
    attn = jnp.dot(attn.astype(jnp.bfloat16), wo_ref[...],
                   preferred_element_type=jnp.float32) + bo_ref[...]
    h1 = h0_2d + attn

    # ---- x = ln_1(x);  x = x + fc(x)   (Linear -> GELU -> Linear; residual from post-LN x)
    h1n = _layernorm(h1, ln1w_ref[...], ln1b_ref[...])
    z = jnp.dot(h1n.astype(jnp.bfloat16), w1_ref[...],
                preferred_element_type=jnp.float32) + b1_ref[...]
    z = _gelu_exact(z)                                         # f32 elementwise (v5e-friendly)
    ff = jnp.dot(z.astype(jnp.bfloat16), w2_ref[...],
                 preferred_element_type=jnp.float32) + b2_ref[...]

    o_ref[...] = (h1n + ff).reshape(bblk, n, e).astype(o_ref.dtype)


def attention_block(x, params, num_heads, block_b=8):
    B, N, Din = x.shape
    E = params["wp"].shape[1]

    # Largest divisor of B not exceeding block_b -> Bblk*N rows per matmul (target ~128).
    bblk = max(d for d in range(1, min(block_b, B) + 1) if B % d == 0)

    # Matmul weights pre-cast to bf16 (halves their DMA bytes; MXU wants bf16 anyway);
    # biases / LN params / positional table stay f32 for the VPU math.
    bf16 = jnp.bfloat16
    ordered = [
        params["pos"],
        params["wp"].astype(bf16), params["bp"],
        params["ln0w"], params["ln0b"],
        params["wqkv"].astype(bf16), params["bqkv"],
        params["wo"].astype(bf16), params["bo"],
        params["ln1w"], params["ln1b"],
        params["w1"].astype(bf16), params["b1"],
        params["w2"].astype(bf16), params["b2"],
    ]

    def full_spec(arr):
        # Constant block index -> weight stays resident in VMEM across grid steps.
        return pl.BlockSpec(arr.shape, lambda b, nd=arr.ndim: (0,) * nd)

    in_specs = ([pl.BlockSpec((bblk, N, Din), lambda b: (b, 0, 0))]
                + [full_spec(a) for a in ordered])

    return pl.pallas_call(
        functools.partial(attention_block_kernel, num_heads=num_heads),
        out_shape=jax.ShapeDtypeStruct((B, N, E), jnp.float32),
        grid_spec=pltpu.PrefetchScalarGridSpec(
            num_scalar_prefetch=0,
            grid=(B // bblk,),
            in_specs=in_specs,
            out_specs=pl.BlockSpec((bblk, N, E), lambda b: (b, 0, 0)),
        ),
        compiler_params=pltpu.CompilerParams(dimension_semantics=("parallel",)),
    )(x, *ordered)


# ---------------- pure-JAX f32 reference (same math) for the correctness check ----------------
def attention_block_ref(x, p, num_heads):
    h = x @ p["wp"] + p["bp"]
    h = h + p["pos"][None]
    h0 = _layernorm(h, p["ln0w"], p["ln0b"])
    E = h0.shape[-1]
    hd = E // num_heads
    qkv = h0 @ p["wqkv"] + p["bqkv"]
    q, k, v = qkv[..., :E], qkv[..., E:2 * E], qkv[..., 2 * E:]

    def split(t):  # (B,N,E) -> (B,H,N,hd)
        B, N, _ = t.shape
        return t.reshape(B, N, num_heads, hd).transpose(0, 2, 1, 3)

    qh, kh, vh = split(q), split(k), split(v)
    s = jnp.einsum("bhnd,bhmd->bhnm", qh, kh) / jnp.sqrt(jnp.float32(hd))
    pmat = jax.nn.softmax(s, axis=-1)
    o = jnp.einsum("bhnm,bhmd->bhnd", pmat, vh).transpose(0, 2, 1, 3).reshape(x.shape[0], -1, E)
    attn = o @ p["wo"] + p["bo"]
    h1 = h0 + attn
    h1n = _layernorm(h1, p["ln1w"], p["ln1b"])
    ff = _gelu_exact(h1n @ p["w1"] + p["b1"]) @ p["w2"] + p["b2"]
    return h1n + ff


if __name__ == "__main__":
    # Small, TPU-friendly config (constructor args of AttentionBlock): seq len == n_nodes.
    B, N, Din, E, H = 16, 16, 32, 128, 2

    key = jax.random.PRNGKey(0)
    ks = jax.random.split(key, 11)
    sc = 0.05
    params = {
        "wp":   sc * jax.random.normal(ks[0], (Din, E), jnp.float32),
        "bp":   sc * jax.random.normal(ks[1], (1, E), jnp.float32),
        "pos":  sc * jax.random.normal(ks[2], (N, E), jnp.float32),   # LPE embedding table
        "ln0w": jnp.ones((1, E), jnp.float32),
        "ln0b": jnp.zeros((1, E), jnp.float32),
        "wqkv": sc * jax.random.normal(ks[3], (E, 3 * E), jnp.float32),
        "bqkv": sc * jax.random.normal(ks[4], (1, 3 * E), jnp.float32),
        "wo":   sc * jax.random.normal(ks[5], (E, E), jnp.float32),
        "bo":   sc * jax.random.normal(ks[6], (1, E), jnp.float32),
        "ln1w": jnp.ones((1, E), jnp.float32),
        "ln1b": jnp.zeros((1, E), jnp.float32),
        "w1":   sc * jax.random.normal(ks[7], (E, 4 * E), jnp.float32),
        "b1":   sc * jax.random.normal(ks[8], (1, 4 * E), jnp.float32),
        "w2":   sc * jax.random.normal(ks[9], (4 * E, E), jnp.float32),
        "b2":   jnp.zeros((1, E), jnp.float32),
    }

    x = jax.random.normal(ks[10], (B, N, Din), jnp.float32)

    out = attention_block(x, params, num_heads=H)
    out = jax.block_until_ready(out)

    ref = attention_block_ref(x, params, num_heads=H)
    assert out.shape == (B, N, E)
    # bf16 matmul operands (f32 accumulation) -> loosened tolerance vs. the f32 reference.
    assert jnp.allclose(out, ref, atol=3e-2, rtol=3e-2), float(jnp.max(jnp.abs(out - ref)))

    print("KERNEL_OK")
</pallas_src>

<mosaic_0001>
module attributes {stable_mosaic.version = 11 : i64} {
  func.func @attention_block_kernel(%arg0: i32, %arg1: memref<8x16x32xf32, #tpu.memory_space<vmem>>, %arg2: memref<16x128xf32, #tpu.memory_space<vmem>>, %arg3: memref<32x128xbf16, #tpu.memory_space<vmem>>, %arg4: memref<1x128xf32, #tpu.memory_space<vmem>>, %arg5: memref<1x128xf32, #tpu.memory_space<vmem>>, %arg6: memref<1x128xf32, #tpu.memory_space<vmem>>, %arg7: memref<128x384xbf16, #tpu.memory_space<vmem>>, %arg8: memref<1x384xf32, #tpu.memory_space<vmem>>, %arg9: memref<128x128xbf16, #tpu.memory_space<vmem>>, %arg10: memref<1x128xf32, #tpu.memory_space<vmem>>, %arg11: memref<1x128xf32, #tpu.memory_space<vmem>>, %arg12: memref<1x128xf32, #tpu.memory_space<vmem>>, %arg13: memref<128x512xbf16, #tpu.memory_space<vmem>>, %arg14: memref<1x512xf32, #tpu.memory_space<vmem>>, %arg15: memref<512x128xbf16, #tpu.memory_space<vmem>>, %arg16: memref<1x128xf32, #tpu.memory_space<vmem>>, %arg17: memref<8x16x128xf32, #tpu.memory_space<vmem>>) attributes {dimension_semantics = [#tpu.dimension_semantics<parallel>], iteration_bounds = array<i64: 2>, scalar_prefetch = 0 : i64, scratch_operands = 0 : i64, tpu.core_type = #tpu.core_type<tc>, window_params = [{transform_indices = @transform_0, window_bounds = array<i64: 8, 16, 32>}, {pipeline_mode = #tpu.pipeline_mode<synchronous>, transform_indices = @transform_1, window_bounds = array<i64: 16, 128>}, {pipeline_mode = #tpu.pipeline_mode<synchronous>, transform_indices = @transform_2, window_bounds = array<i64: 32, 128>}, {pipeline_mode = #tpu.pipeline_mode<synchronous>, transform_indices = @transform_3, window_bounds = array<i64: 1, 128>}, {pipeline_mode = #tpu.pipeline_mode<synchronous>, transform_indices = @transform_4, window_bounds = array<i64: 1, 128>}, {pipeline_mode = #tpu.pipeline_mode<synchronous>, transform_indices = @transform_5, window_bounds = array<i64: 1, 128>}, {pipeline_mode = #tpu.pipeline_mode<synchronous>, transform_indices = @transform_6, window_bounds = array<i64: 128, 384>}, {pipeline_mode = #tpu.pipeline_mode<synchronous>, transform_indices = @transform_7, window_bounds = array<i64: 1, 384>}, {pipeline_mode = #tpu.pipeline_mode<synchronous>, transform_indices = @transform_8, window_bounds = array<i64: 128, 128>}, {pipeline_mode = #tpu.pipeline_mode<synchronous>, transform_indices = @transform_9, window_bounds = array<i64: 1, 128>}, {pipeline_mode = #tpu.pipeline_mode<synchronous>, transform_indices = @transform_10, window_bounds = array<i64: 1, 128>}, {pipeline_mode = #tpu.pipeline_mode<synchronous>, transform_indices = @transform_11, window_bounds = array<i64: 1, 128>}, {pipeline_mode = #tpu.pipeline_mode<synchronous>, transform_indices = @transform_12, window_bounds = array<i64: 128, 512>}, {pipeline_mode = #tpu.pipeline_mode<synchronous>, transform_indices = @transform_13, window_bounds = array<i64: 1, 512>}, {pipeline_mode = #tpu.pipeline_mode<synchronous>, transform_indices = @transform_14, window_bounds = array<i64: 512, 128>}, {pipeline_mode = #tpu.pipeline_mode<synchronous>, transform_indices = @transform_15, window_bounds = array<i64: 1, 128>}, {transform_indices = @transform_16, window_bounds = array<i64: 8, 16, 128>}]} {
    %c0 = arith.constant 0 : index
    %c0_0 = arith.constant 0 : index
    %c0_1 = arith.constant 0 : index
    %0 = vector.load %arg1[%c0, %c0_0, %c0_1] : memref<8x16x32xf32, #tpu.memory_space<vmem>>, vector<8x16x32xf32>
    %1 = vector.shape_cast %0 : vector<8x16x32xf32> to vector<128x32xf32>
    %2 = arith.truncf %1 : vector<128x32xf32> to vector<128x32xbf16>
    %c0_2 = arith.constant 0 : index
    %c0_3 = arith.constant 0 : index
    %3 = vector.load %arg3[%c0_2, %c0_3] : memref<32x128xbf16, #tpu.memory_space<vmem>>, vector<32x128xbf16>
    %cst = arith.constant dense<0.000000e+00> : vector<128x128xf32>
    %4 = tpu.matmul %2, %3, %cst {dimension_numbers = #tpu.dot_dimension_numbers<[1], [0], [0], [1], [0, 0, 1, 1], [], []>} : vector<128x32xbf16>, vector<32x128xbf16>, vector<128x128xf32> -> vector<128x128xf32>
    %c0_4 = arith.constant 0 : index
    %c0_5 = arith.constant 0 : index
    %5 = vector.load %arg4[%c0_4, %c0_5] : memref<1x128xf32, #tpu.memory_space<vmem>>, vector<1x128xf32>
    %6 = vector.broadcast %5 : vector<1x128xf32> to vector<128x128xf32>
    %7 = arith.addf %4, %6 : vector<128x128xf32>
    %8 = vector.shape_cast %7 : vector<128x128xf32> to vector<8x16x128xf32>
    %c0_6 = arith.constant 0 : index
    %c0_7 = arith.constant 0 : index
    %9 = vector.load %arg2[%c0_6, %c0_7] : memref<16x128xf32, #tpu.memory_space<vmem>>, vector<16x128xf32>
    %10 = vector.shape_cast %9 : vector<16x128xf32> to vector<1x16x128xf32>
    %11 = vector.broadcast %10 : vector<1x16x128xf32> to vector<8x16x128xf32>
    %12 = arith.addf %8, %11 : vector<8x16x128xf32>
    %c0_8 = arith.constant 0 : index
    %c0_9 = arith.constant 0 : index
    %13 = vector.load %arg5[%c0_8, %c0_9] : memref<1x128xf32, #tpu.memory_space<vmem>>, vector<1x128xf32>
    %c0_10 = arith.constant 0 : index
    %c0_11 = arith.constant 0 : index
    %14 = vector.load %arg6[%c0_10, %c0_11] : memref<1x128xf32, #tpu.memory_space<vmem>>, vector<1x128xf32>
    %cst_12 = arith.constant dense<0.000000e+00> : vector<8x16xf32>
    %15 = vector.multi_reduction <add>, %12, %cst_12 [2] : vector<8x16x128xf32> to vector<8x16xf32>
    %16 = vector.shape_cast %15 : vector<8x16xf32> to vector<8x16x1xf32>
    %cst_13 = arith.constant 1.280000e+02 : f32
    %17 = vector.broadcast %cst_13 : f32 to vector<8x16x1xf32>
    %18 = arith.divf %16, %17 : vector<8x16x1xf32>
    %19 = vector.broadcast %18 : vector<8x16x1xf32> to vector<8x16x128xf32>
    %20 = arith.subf %12, %19 : vector<8x16x128xf32>
    %21 = arith.mulf %20, %20 : vector<8x16x128xf32>
    %cst_14 = arith.constant dense<0.000000e+00> : vector<8x16xf32>
    %22 = vector.multi_reduction <add>, %21, %cst_14 [2] : vector<8x16x128xf32> to vector<8x16xf32>
    %23 = vector.shape_cast %22 : vector<8x16xf32> to vector<8x16x1xf32>
    %cst_15 = arith.constant 1.280000e+02 : f32
    %24 = vector.broadcast %cst_15 : f32 to vector<8x16x1xf32>
    %25 = arith.divf %23, %24 : vector<8x16x1xf32>
    %26 = vector.broadcast %18 : vector<8x16x1xf32> to vector<8x16x128xf32>
    %27 = arith.subf %12, %26 : vector<8x16x128xf32>
    %cst_16 = arith.constant 9.99999974E-6 : f32
    %28 = vector.broadcast %cst_16 : f32 to vector<8x16x1xf32>
    %29 = arith.addf %25, %28 : vector<8x16x1xf32>
    %30 = math.rsqrt %29 : vector<8x16x1xf32>
    %31 = vector.broadcast %30 : vector<8x16x1xf32> to vector<8x16x128xf32>
    %32 = arith.mulf %27, %31 : vector<8x16x128xf32>
    %33 = vector.shape_cast %13 : vector<1x128xf32> to vector<1x1x128xf32>
    %34 = vector.broadcast %33 : vector<1x1x128xf32> to vector<8x16x128xf32>
    %35 = arith.mulf %32, %34 : vector<8x16x128xf32>
    %36 = vector.shape_cast %14 : vector<1x128xf32> to vector<1x1x128xf32>
    %37 = vector.broadcast %36 : vector<1x1x128xf32> to vector<8x16x128xf32>
    %38 = arith.addf %35, %37 : vector<8x16x128xf32>
    %39 = vector.shape_cast %38 : vector<8x16x128xf32> to vector<128x128xf32>
    %40 = arith.truncf %39 : vector<128x128xf32> to vector<128x128xbf16>
    %c0_17 = arith.constant 0 : index
    %c0_18 = arith.constant 0 : index
    %41 = vector.load %arg7[%c0_17, %c0_18] : memref<128x384xbf16, #tpu.memory_space<vmem>>, vector<128x384xbf16>
    %cst_19 = arith.constant dense<0.000000e+00> : vector<128x384xf32>
    %42 = tpu.matmul %40, %41, %cst_19 {dimension_numbers = #tpu.dot_dimension_numbers<[1], [0], [0], [1], [0, 0, 1, 1], [], []>} : vector<128x128xbf16>, vector<128x384xbf16>, vector<128x384xf32> -> vector<128x384xf32>
    %c0_20 = arith.constant 0 : index
    %c0_21 = arith.constant 0 : index
    %43 = vector.load %arg8[%c0_20, %c0_21] : memref<1x384xf32, #tpu.memory_space<vmem>>, vector<1x384xf32>
    %44 = vector.broadcast %43 : vector<1x384xf32> to vector<128x384xf32>
    %45 = arith.addf %42, %44 : vector<128x384xf32>
    %46 = vector.extract_strided_slice %45 {offsets = [0, 0], sizes = [128, 128], strides = [1, 1]} : vector<128x384xf32> to vector<128x128xf32>
    %47 = vector.shape_cast %46 : vector<128x128xf32> to vector<8x16x128xf32>
    %48 = vector.extract_strided_slice %45 {offsets = [0, 128], sizes = [128, 128], strides = [1, 1]} : vector<128x384xf32> to vector<128x128xf32>
    %49 = vector.shape_cast %48 : vector<128x128xf32> to vector<8x16x128xf32>
    %50 = vector.extract_strided_slice %45 {offsets = [0, 256], sizes = [128, 128], strides = [1, 1]} : vector<128x384xf32> to vector<128x128xf32>
    %51 = vector.shape_cast %50 : vector<128x128xf32> to vector<8x16x128xf32>
    %cst_22 = arith.constant 6.400000e+01 : f32
    %52 = math.sqrt %cst_22 : f32
    %cst_23 = arith.constant 1.000000e+00 : f32
    %53 = arith.divf %cst_23, %52 : f32
    %54 = vector.extract_strided_slice %47 {offsets = [0, 0, 0], sizes = [8, 16, 64], strides = [1, 1, 1]} : vector<8x16x128xf32> to vector<8x16x64xf32>
    %55 = arith.truncf %54 : vector<8x16x64xf32> to vector<8x16x64xbf16>
    %56 = vector.extract_strided_slice %49 {offsets = [0, 0, 0], sizes = [8, 16, 64], strides = [1, 1, 1]} : vector<8x16x128xf32> to vector<8x16x64xf32>
    %57 = arith.truncf %56 : vector<8x16x64xf32> to vector<8x16x64xbf16>
    %58 = vector.extract_strided_slice %51 {offsets = [0, 0, 0], sizes = [8, 16, 64], strides = [1, 1, 1]} : vector<8x16x128xf32> to vector<8x16x64xf32>
    %59 = arith.truncf %58 : vector<8x16x64xf32> to vector<8x16x64xbf16>
    "tpu.trace_start"() <{level = 10 : i32, message = "bnd,bmd->bnm"}> : () -> ()
    %cst_24 = arith.constant dense<0.000000e+00> : vector<8x16x16xf32>
    %60 = tpu.matmul %55, %57, %cst_24 {dimension_numbers = #tpu.dot_dimension_numbers<[2], [2], [1], [1], [0, 0, 0, 1, 1, 1], [0], [0]>} : vector<8x16x64xbf16>, vector<8x16x64xbf16>, vector<8x16x16xf32> -> vector<8x16x16xf32>
    "tpu.trace_stop"() : () -> ()
    %61 = vector.broadcast %53 : f32 to vector<8x16x16xf32>
    %62 = arith.mulf %60, %61 : vector<8x16x16xf32>
    %cst_25 = arith.constant dense<0xFF800000> : vector<8x16xf32>
    %63 = vector.multi_reduction <maximumf>, %62, %cst_25 [2] : vector<8x16x16xf32> to vector<8x16xf32>
    %64 = vector.shape_cast %63 : vector<8x16xf32> to vector<8x16x1xf32>
    %65 = vector.broadcast %64 : vector<8x16x1xf32> to vector<8x16x16xf32>
    %66 = arith.subf %62, %65 : vector<8x16x16xf32>
    %67 = math.exp %66 : vector<8x16x16xf32>
    %cst_26 = arith.constant dense<0.000000e+00> : vector<8x16xf32>
    %68 = vector.multi_reduction <add>, %67, %cst_26 [2] : vector<8x16x16xf32> to vector<8x16xf32>
    %69 = vector.shape_cast %68 : vector<8x16xf32> to vector<8x16x1xf32>
    %70 = tpu.reciprocal %69 {approx = true} : vector<8x16x1xf32> -> vector<8x16x1xf32>
    %71 = vector.broadcast %70 : vector<8x16x1xf32> to vector<8x16x16xf32>
    %72 = arith.mulf %67, %71 : vector<8x16x16xf32>
    %73 = arith.truncf %72 : vector<8x16x16xf32> to vector<8x16x16xbf16>
    "tpu.trace_start"() <{level = 10 : i32, message = "bnm,bmd->bnd"}> : () -> ()
    %cst_27 = arith.constant dense<0.000000e+00> : vector<8x16x64xf32>
    %74 = tpu.matmul %73, %59, %cst_27 {dimension_numbers = #tpu.dot_dimension_numbers<[2], [1], [1], [2], [0, 0, 0, 1, 1, 2], [0], [0]>} : vector<8x16x16xbf16>, vector<8x16x64xbf16>, vector<8x16x64xf32> -> vector<8x16x64xf32>
    "tpu.trace_stop"() : () -> ()
    %75 = vector.extract_strided_slice %47 {offsets = [0, 0, 64], sizes = [8, 16, 64], strides = [1, 1, 1]} : vector<8x16x128xf32> to vector<8x16x64xf32>
    %76 = arith.truncf %75 : vector<8x16x64xf32> to vector<8x16x64xbf16>
    %77 = vector.extract_strided_slice %49 {offsets = [0, 0, 64], sizes = [8, 16, 64], strides = [1, 1, 1]} : vector<8x16x128xf32> to vector<8x16x64xf32>
    %78 = arith.truncf %77 : vector<8x16x64xf32> to vector<8x16x64xbf16>
    %79 = vector.extract_strided_slice %51 {offsets = [0, 0, 64], sizes = [8, 16, 64], strides = [1, 1, 1]} : vector<8x16x128xf32> to vector<8x16x64xf32>
    %80 = arith.truncf %79 : vector<8x16x64xf32> to vector<8x16x64xbf16>
    "tpu.trace_start"() <{level = 10 : i32, message = "bnd,bmd->bnm"}> : () -> ()
    %cst_28 = arith.constant dense<0.000000e+00> : vector<8x16x16xf32>
    %81 = tpu.matmul %76, %78, %cst_28 {dimension_numbers = #tpu.dot_dimension_numbers<[2], [2], [1], [1], [0, 0, 0, 1, 1, 1], [0], [0]>} : vector<8x16x64xbf16>, vector<8x16x64xbf16>, vector<8x16x16xf32> -> vector<8x16x16xf32>
    "tpu.trace_stop"() : () -> ()
    %82 = vector.broadcast %53 : f32 to vector<8x16x16xf32>
    %83 = arith.mulf %81, %82 : vector<8x16x16xf32>
    %cst_29 = arith.constant dense<0xFF800000> : vector<8x16xf32>
    %84 = vector.multi_reduction <maximumf>, %83, %cst_29 [2] : vector<8x16x16xf32> to vector<8x16xf32>
    %85 = vector.shape_cast %84 : vector<8x16xf32> to vector<8x16x1xf32>
    %86 = vector.broadcast %85 : vector<8x16x1xf32> to vector<8x16x16xf32>
    %87 = arith.subf %83, %86 : vector<8x16x16xf32>
    %88 = math.exp %87 : vector<8x16x16xf32>
    %cst_30 = arith.constant dense<0.000000e+00> : vector<8x16xf32>
    %89 = vector.multi_reduction <add>, %88, %cst_30 [2] : vector<8x16x16xf32> to vector<8x16xf32>
    %90 = vector.shape_cast %89 : vector<8x16xf32> to vector<8x16x1xf32>
    %91 = tpu.reciprocal %90 {approx = true} : vector<8x16x1xf32> -> vector<8x16x1xf32>
    %92 = vector.broadcast %91 : vector<8x16x1xf32> to vector<8x16x16xf32>
    %93 = arith.mulf %88, %92 : vector<8x16x16xf32>
    %94 = arith.truncf %93 : vector<8x16x16xf32> to vector<8x16x16xbf16>
    "tpu.trace_start"() <{level = 10 : i32, message = "bnm,bmd->bnd"}> : () -> ()
    %cst_31 = arith.constant dense<0.000000e+00> : vector<8x16x64xf32>
    %95 = tpu.matmul %94, %80, %cst_31 {dimension_numbers = #tpu.dot_dimension_numbers<[2], [1], [1], [2], [0, 0, 0, 1, 1, 2], [0], [0]>} : vector<8x16x16xbf16>, vector<8x16x64xbf16>, vector<8x16x64xf32> -> vector<8x16x64xf32>
    "tpu.trace_stop"() : () -> ()
    %96 = tpu.concatenate %74, %95 in 2 : vector<8x16x64xf32>, vector<8x16x64xf32> -> vector<8x16x128xf32>
    %97 = vector.shape_cast %96 : vector<8x16x128xf32> to vector<128x128xf32>
    %98 = arith.truncf %97 : vector<128x128xf32> to vector<128x128xbf16>
    %c0_32 = arith.constant 0 : index
    %c0_33 = arith.constant 0 : index
    %99 = vector.load %arg9[%c0_32, %c0_33] : memref<128x128xbf16, #tpu.memory_space<vmem>>, vector<128x128xbf16>
    %cst_34 = arith.constant dense<0.000000e+00> : vector<128x128xf32>
    %100 = tpu.matmul %98, %99, %cst_34 {dimension_numbers = #tpu.dot_dimension_numbers<[1], [0], [0], [1], [0, 0, 1, 1], [], []>} : vector<128x128xbf16>, vector<128x128xbf16>, vector<128x128xf32> -> vector<128x128xf32>
    %c0_35 = arith.constant 0 : index
    %c0_36 = arith.constant 0 : index
    %101 = vector.load %arg10[%c0_35, %c0_36] : memref<1x128xf32, #tpu.memory_space<vmem>>, vector<1x128xf32>
    %102 = vector.broadcast %101 : vector<1x128xf32> to vector<128x128xf32>
    %103 = arith.addf %100, %102 : vector<128x128xf32>
    %104 = arith.addf %39, %103 : vector<128x128xf32>
    %c0_37 = arith.constant 0 : index
    %c0_38 = arith.constant 0 : index
    %105 = vector.load %arg11[%c0_37, %c0_38] : memref<1x128xf32, #tpu.memory_space<vmem>>, vector<1x128xf32>
    %c0_39 = arith.constant 0 : index
    %c0_40 = arith.constant 0 : index
    %106 = vector.load %arg12[%c0_39, %c0_40] : memref<1x128xf32, #tpu.memory_space<vmem>>, vector<1x128xf32>
    %cst_41 = arith.constant dense<0.000000e+00> : vector<128xf32>
    %107 = vector.multi_reduction <add>, %104, %cst_41 [1] : vector<128x128xf32> to vector<128xf32>
    %108 = vector.shape_cast %107 : vector<128xf32> to vector<128x1xf32>
    %cst_42 = arith.constant 1.280000e+02 : f32
    %109 = vector.broadcast %cst_42 : f32 to vector<128x1xf32>
    %110 = arith.divf %108, %109 : vector<128x1xf32>
    %111 = vector.broadcast %110 : vector<128x1xf32> to vector<128x128xf32>
    %112 = arith.subf %104, %111 : vector<128x128xf32>
    %113 = arith.mulf %112, %112 : vector<128x128xf32>
    %cst_43 = arith.constant dense<0.000000e+00> : vector<128xf32>
    %114 = vector.multi_reduction <add>, %113, %cst_43 [1] : vector<128x128xf32> to vector<128xf32>
    %115 = vector.shape_cast %114 : vector<128xf32> to vector<128x1xf32>
    %cst_44 = arith.constant 1.280000e+02 : f32
    %116 = vector.broadcast %cst_44 : f32 to vector<128x1xf32>
    %117 = arith.divf %115, %116 : vector<128x1xf32>
    %118 = vector.broadcast %110 : vector<128x1xf32> to vector<128x128xf32>
    %119 = arith.subf %104, %118 : vector<128x128xf32>
    %cst_45 = arith.constant 9.99999974E-6 : f32
    %120 = vector.broadcast %cst_45 : f32 to vector<128x1xf32>
    %121 = arith.addf %117, %120 : vector<128x1xf32>
    %122 = math.rsqrt %121 : vector<128x1xf32>
    %123 = vector.broadcast %122 : vector<128x1xf32> to vector<128x128xf32>
    %124 = arith.mulf %119, %123 : vector<128x128xf32>
    %125 = vector.broadcast %105 : vector<1x128xf32> to vector<128x128xf32>
    %126 = arith.mulf %124, %125 : vector<128x128xf32>
    %127 = vector.broadcast %106 : vector<1x128xf32> to vector<128x128xf32>
    %128 = arith.addf %126, %127 : vector<128x128xf32>
    %129 = arith.truncf %128 : vector<128x128xf32> to vector<128x128xbf16>
    %c0_46 = arith.constant 0 : index
    %c0_47 = arith.constant 0 : index
    %130 = vector.load %arg13[%c0_46, %c0_47] : memref<128x512xbf16, #tpu.memory_space<vmem>>, vector<128x512xbf16>
    %cst_48 = arith.constant dense<0.000000e+00> : vector<128x512xf32>
    %131 = tpu.matmul %129, %130, %cst_48 {dimension_numbers = #tpu.dot_dimension_numbers<[1], [0], [0], [1], [0, 0, 1, 1], [], []>} : vector<128x128xbf16>, vector<128x512xbf16>, vector<128x512xf32> -> vector<128x512xf32>
    %c0_49 = arith.constant 0 : index
    %c0_50 = arith.constant 0 : index
    %132 = vector.load %arg14[%c0_49, %c0_50] : memref<1x512xf32, #tpu.memory_space<vmem>>, vector<1x512xf32>
    %133 = vector.broadcast %132 : vector<1x512xf32> to vector<128x512xf32>
    %134 = arith.addf %131, %133 : vector<128x512xf32>
    %cst_51 = arith.constant 5.000000e-01 : f32
    %135 = vector.broadcast %cst_51 : f32 to vector<128x512xf32>
    %136 = arith.mulf %135, %134 : vector<128x512xf32>
    %cst_52 = arith.constant 2.000000e+00 : f32
    %137 = math.sqrt %cst_52 : f32
    %cst_53 = arith.constant 1.000000e+00 : f32
    %138 = arith.divf %cst_53, %137 : f32
    %139 = vector.broadcast %138 : f32 to vector<128x512xf32>
    %140 = arith.mulf %134, %139 : vector<128x512xf32>
    %141 = math.erf %140 : vector<128x512xf32>
    %cst_54 = arith.constant 1.000000e+00 : f32
    %142 = vector.broadcast %cst_54 : f32 to vector<128x512xf32>
    %143 = arith.addf %142, %141 : vector<128x512xf32>
    %144 = arith.mulf %136, %143 : vector<128x512xf32>
    %145 = arith.truncf %144 : vector<128x512xf32> to vector<128x512xbf16>
    %c0_55 = arith.constant 0 : index
    %c0_56 = arith.constant 0 : index
    %146 = vector.load %arg15[%c0_55, %c0_56] : memref<512x128xbf16, #tpu.memory_space<vmem>>, vector<512x128xbf16>
    %cst_57 = arith.constant dense<0.000000e+00> : vector<128x128xf32>
    %147 = tpu.matmul %145, %146, %cst_57 {dimension_numbers = #tpu.dot_dimension_numbers<[1], [0], [0], [1], [0, 0, 1, 1], [], []>} : vector<128x512xbf16>, vector<512x128xbf16>, vector<128x128xf32> -> vector<128x128xf32>
    %c0_58 = arith.constant 0 : index
    %c0_59 = arith.constant 0 : index
    %148 = vector.load %arg16[%c0_58, %c0_59] : memref<1x128xf32, #tpu.memory_space<vmem>>, vector<1x128xf32>
    %149 = vector.broadcast %148 : vector<1x128xf32> to vector<128x128xf32>
    %150 = arith.addf %147, %149 : vector<128x128xf32>
    %151 = arith.addf %128, %150 : vector<128x128xf32>
    %152 = vector.shape_cast %151 : vector<128x128xf32> to vector<8x16x128xf32>
    %c0_60 = arith.constant 0 : index
    %c0_61 = arith.constant 0 : index
    %c0_62 = arith.constant 0 : index
    %153 = vector.load %arg17[%c0_60, %c0_61, %c0_62] : memref<8x16x128xf32, #tpu.memory_space<vmem>>, vector<8x16x128xf32>
    tpu.vector_store %arg17[%c0_60, %c0_61, %c0_62], %152 {strides = array<i32>} : memref<8x16x128xf32, #tpu.memory_space<vmem>>, vector<8x16x128xf32>,
    return
  }
  func.func @transform_0(%arg0: i32) -> (i32, i32, i32) {
    %c0_i32 = arith.constant 0 : i32
    %c0_i32_0 = arith.constant 0 : i32
    %c0_i32_1 = arith.constant 0 : i32
    return %arg0, %c0_i32, %c0_i32_0 : i32, i32, i32
  }
  func.func @transform_1(%arg0: i32) -> (i32, i32) {
    %c0_i32 = arith.constant 0 : i32
    %c0_i32_0 = arith.constant 0 : i32
    %c0_i32_1 = arith.constant 0 : i32
    return %c0_i32, %c0_i32_0 : i32, i32
  }
  func.func @transform_2(%arg0: i32) -> (i32, i32) {
    %c0_i32 = arith.constant 0 : i32
    %c0_i32_0 = arith.constant 0 : i32
    %c0_i32_1 = arith.constant 0 : i32
    return %c0_i32, %c0_i32_0 : i32, i32
  }
  func.func @transform_3(%arg0: i32) -> (i32, i32) {
    %c0_i32 = arith.constant 0 : i32
    %c0_i32_0 = arith.constant 0 : i32
    %c0_i32_1 = arith.constant 0 : i32
    return %c0_i32, %c0_i32_0 : i32, i32
  }
  func.func @transform_4(%arg0: i32) -> (i32, i32) {
    %c0_i32 = arith.constant 0 : i32
    %c0_i32_0 = arith.constant 0 : i32
    %c0_i32_1 = arith.constant 0 : i32
    return %c0_i32, %c0_i32_0 : i32, i32
  }
  func.func @transform_5(%arg0: i32) -> (i32, i32) {
    %c0_i32 = arith.constant 0 : i32
    %c0_i32_0 = arith.constant 0 : i32
    %c0_i32_1 = arith.constant 0 : i32
    return %c0_i32, %c0_i32_0 : i32, i32
  }
  func.func @transform_6(%arg0: i32) -> (i32, i32) {
    %c0_i32 = arith.constant 0 : i32
    %c0_i32_0 = arith.constant 0 : i32
    %c0_i32_1 = arith.constant 0 : i32
    return %c0_i32, %c0_i32_0 : i32, i32
  }
  func.func @transform_7(%arg0: i32) -> (i32, i32) {
    %c0_i32 = arith.constant 0 : i32
    %c0_i32_0 = arith.constant 0 : i32
    %c0_i32_1 = arith.constant 0 : i32
    return %c0_i32, %c0_i32_0 : i32, i32
  }
  func.func @transform_8(%arg0: i32) -> (i32, i32) {
    %c0_i32 = arith.constant 0 : i32
    %c0_i32_0 = arith.constant 0 : i32
    %c0_i32_1 = arith.constant 0 : i32
    return %c0_i32, %c0_i32_0 : i32, i32
  }
  func.func @transform_9(%arg0: i32) -> (i32, i32) {
    %c0_i32 = arith.constant 0 : i32
    %c0_i32_0 = arith.constant 0 : i32
    %c0_i32_1 = arith.constant 0 : i32
    return %c0_i32, %c0_i32_0 : i32, i32
  }
  func.func @transform_10(%arg0: i32) -> (i32, i32) {
    %c0_i32 = arith.constant 0 : i32
    %c0_i32_0 = arith.constant 0 : i32
    %c0_i32_1 = arith.constant 0 : i32
    return %c0_i32, %c0_i32_0 : i32, i32
  }
  func.func @transform_11(%arg0: i32) -> (i32, i32) {
    %c0_i32 = arith.constant 0 : i32
    %c0_i32_0 = arith.constant 0 : i32
    %c0_i32_1 = arith.constant 0 : i32
    return %c0_i32, %c0_i32_0 : i32, i32
  }
  func.func @transform_12(%arg0: i32) -> (i32, i32) {
    %c0_i32 = arith.constant 0 : i32
    %c0_i32_0 = arith.constant 0 : i32
    %c0_i32_1 = arith.constant 0 : i32
    return %c0_i32, %c0_i32_0 : i32, i32
  }
  func.func @transform_13(%arg0: i32) -> (i32, i32) {
    %c0_i32 = arith.constant 0 : i32
    %c0_i32_0 = arith.constant 0 : i32
    %c0_i32_1 = arith.constant 0 : i32
    return %c0_i32, %c0_i32_0 : i32, i32
  }
  func.func @transform_14(%arg0: i32) -> (i32, i32) {
    %c0_i32 = arith.constant 0 : i32
    %c0_i32_0 = arith.constant 0 : i32
    %c0_i32_1 = arith.constant 0 : i32
    return %c0_i32, %c0_i32_0 : i32, i32
  }
  func.func @transform_15(%arg0: i32) -> (i32, i32) {
    %c0_i32 = arith.constant 0 : i32
    %c0_i32_0 = arith.constant 0 : i32
    %c0_i32_1 = arith.constant 0 : i32
    return %c0_i32, %c0_i32_0 : i32, i32
  }
  func.func @transform_16(%arg0: i32) -> (i32, i32, i32) {
    %c0_i32 = arith.constant 0 : i32
    %c0_i32_0 = arith.constant 0 : i32
    %c0_i32_1 = arith.constant 0 : i32
    return %arg0, %c0_i32, %c0_i32_0 : i32, i32, i32
  }
}

</mosaic_0001>

<llo_original>
// kernel: tpu_custom_call.1
$region0: #{tpu_custom_call.1}
  #allocation0 [shape = 'u32[]', space=smem, size = 0x4, offset = 0x4, fixed_abs, tag = 'smem constant byte address 0x4 - core index']
  #allocation1 [shape = 'u32[144,128]{1,0:T(1,128)}', space=vmem, size = 0x12000, scoped, tag = 'internal scratch']
  %s0 = inlined_call_operand.hbm [shape: f32[16,16,32], index: 0, kind: input, shape index: {}]
  %s1 = inlined_call_operand.hbm [shape: f32[16,128], index: 1, kind: input, shape index: {}]
  %s2 = inlined_call_operand.hbm [shape: bf16[32,128], index: 2, kind: input, shape index: {}]
  %s3 = inlined_call_operand.vmem [shape: f32[1,128], index: 3, kind: input, shape index: {}]
  %s4 = inlined_call_operand.vmem [shape: f32[1,128], index: 4, kind: input, shape index: {}]
  %s5 = inlined_call_operand.vmem [shape: f32[1,128], index: 5, kind: input, shape index: {}]
  %s6 = inlined_call_operand.hbm [shape: bf16[128,384], index: 6, kind: input, shape index: {}]
  %s7 = inlined_call_operand.vmem [shape: f32[1,384], index: 7, kind: input, shape index: {}]
  %s8 = inlined_call_operand.hbm [shape: bf16[128,128], index: 8, kind: input, shape index: {}]
  %s9 = inlined_call_operand.vmem [shape: f32[1,128], index: 9, kind: input, shape index: {}]
  %s10 = inlined_call_operand.vmem [shape: f32[1,128], index: 10, kind: input, shape index: {}]
  %s11 = inlined_call_operand.vmem [shape: f32[1,128], index: 11, kind: input, shape index: {}]
  %s12 = inlined_call_operand.hbm [shape: bf16[128,512], index: 12, kind: input, shape index: {}]
  %s13 = inlined_call_operand.vmem [shape: f32[1,512], index: 13, kind: input, shape index: {}]
  %s14 = inlined_call_operand.hbm [shape: bf16[512,128], index: 14, kind: input, shape index: {}]
  %s15 = inlined_call_operand.vmem [shape: f32[1,128], index: 15, kind: input, shape index: {}]
  %s16 = inlined_call_operand.hbm [shape: f32[16,16,128], index: 16, kind: output, shape index: {}]
  %s17 = sld [smem:[#allocation0]]
  $region125: #{tpu_custom_call.1} parent=0
    _
  %s19 = ssub.s32 1, %s17
  %s20 = scalar_select 0, %s19, %s17
  $region1: #{tpu_custom_call.1} parent=0
    #allocation2 [shape = 'u8[131072]{0}', space=vmem, size = 0x20000, scoped, tag = 'input window, operand 0']
    #allocation3 [shape = 's32[2]{0}', space=sflag, size = 0x8, scoped, tag = 'scoped memory for tpu_custom_call.1']
    #allocation4 [shape = 's32[2]{0}', space=sflag, size = 0x8, scoped, tag = 'scoped memory for tpu_custom_call.1']
    #allocation5 [shape = 'u8[8192]{0}', space=vmem, size = 0x2000, scoped, tag = 'input window, operand 1, single buffered']
    #allocation6 [shape = 's32[1]{0}', space=sflag, size = 0x4, scoped, tag = 'scoped memory for tpu_custom_call.1']
    #allocation7 [shape = 'u8[8192]{0}', space=vmem, size = 0x2000, scoped, tag = 'input window, operand 2, single buffered']
    #allocation8 [shape = 'u8[98304]{0}', space=vmem, size = 0x18000, scoped, tag = 'input window, operand 6, single buffered']
    #allocation9 [shape = 's32[1]{0}', space=sflag, size = 0x4, scoped, tag = 'scoped memory for tpu_custom_call.1']
    #allocation10 [shape = 'u8[32768]{0}', space=vmem, size = 0x8000, scoped, tag = 'input window, operand 8, single buffered']
    #allocation11 [shape = 'u8[131072]{0}', space=vmem, size = 0x20000, scoped, tag = 'input window, operand 12, single buffered']
    #allocation12 [shape = 's32[1]{0}', space=sflag, size = 0x4, scoped, tag = 'scoped memory for tpu_custom_call.1']
    #allocation13 [shape = 'u8[131072]{0}', space=vmem, size = 0x20000, scoped, tag = 'input window, operand 14, single buffered']
    #allocation14 [shape = 'u8[131072]{0}', space=vmem, size = 0x20000, scoped, tag = 'output window, operand 0']
    %21 = vsyncpa [#allocation3], 0
    %s22 = scalar_lea.sflag [#allocation3], 1
    %23 = vsyncpa %s22, 0
    %24 = vsyncpa [#allocation6], 0
    %25 = vsyncpa [#allocation9], 0
    %26 = vsyncpa [#allocation12], 0
    %27 = vsyncpa [#allocation4], 0
    %s28 = scalar_lea.sflag [#allocation4], 1
    %29 = vsyncpa %s28, 0
    loop: start=0, step=1, limit=4
    $region2: #{tpu_custom_call.1} parent=1 // loop_pre_header
      _
    $region3: #{tpu_custom_call.1} parent=1 // loop_header
      %s31 = sphi 0, %s35
      %p32 = scmp.ge.s32.totalorder %s31, 4
      %s41 = sphi 0, %s43
      %s44 = sphi 0, %s41
      %s45 = sphi 0, %s44
      %s61 = sphi 0, %s45
      %s65 = sphi 0, %s65
      %s67 = sphi 0, %s65
      %s68 = sphi 0, %s67
      %s82 = sphi 0, %s68
      %s86 = sphi 0, %s86
      %s88 = sphi 0, %s86
      %s89 = sphi 0, %s88
      %s103 = sphi 0, %s89
      %s107 = sphi 0, %s107
      %s109 = sphi 0, %s107
      %s110 = sphi 0, %s109
      %s124 = sphi 0, %s110
      %s128 = sphi 0, %s128
      %s130 = sphi 0, %s128
      %s131 = sphi 0, %s130
      %s145 = sphi 0, %s131
      %s149 = sphi 0, %s149
      %s151 = sphi 0, %s149
      %s152 = sphi 0, %s151
      %s166 = sphi 0, %s152
      %s170 = sphi 0, %s170
      %s172 = sphi 0, %s170
      %s173 = sphi 0, %s172
      %s187 = sphi 0, %s173
      %s191 = sphi 0, %s191
      %s193 = sphi 0, %s191
      %s194 = sphi 0, %s193
      %s208 = sphi 0, %s194
      %s212 = sphi 0, %s212
      %s214 = sphi 0, %s212
      %s215 = sphi 0, %s214
      %s229 = sphi 0, %s215
      %s233 = sphi 0, %s233
      %s235 = sphi 0, %s233
      %s236 = sphi 0, %s235
      %s250 = sphi 0, %s236
      %s254 = sphi 0, %s254
      %s256 = sphi 0, %s254
      %s257 = sphi 0, %s256
      %s271 = sphi 0, %s257
      %s275 = sphi 0, %s275
      %s277 = sphi 0, %s275
      %s278 = sphi 0, %s277
      %s292 = sphi 0, %s278
      %s296 = sphi 0, %s296
      %s298 = sphi 0, %s296
      %s299 = sphi 0, %s298
      %s313 = sphi 0, %s299
      %s317 = sphi 0, %s317
      %s319 = sphi 0, %s317
      %s320 = sphi 0, %s319
      %s334 = sphi 0, %s320
      %s338 = sphi 0, %s338
      %s340 = sphi 0, %s338
      %s341 = sphi 0, %s340
      %s355 = sphi 0, %s341
      %s359 = sphi 0, %s359
      %s361 = sphi 0, %s359
      %s362 = sphi 0, %s361
      %s376 = sphi 0, %s362
      %s382 = sphi 0, %s384
      %s385 = sphi 0, %s382
      %s386 = sphi 0, %s385
      %s402 = sphi 0, %s386
    $region4: #{tpu_custom_call.1} parent=1 // loop_header_branch
      %34 = sbr.rel (%p32) target = $region8
    $region5: #{tpu_custom_call.1} parent=1 // loop_body
      %s36 = ssub.s32 %s31, 1
      %s37 = ssub.s32 %s31, 2
      %s38 = sadd.s32 %s31, 1
      %s39 = ssub.s32 %s31, %s38
      %p40 = scmp.eq.s32.totalorder %s39, 0
      %s42 = sadd.s32 %s41, 1
      %s43 = scalar_select %p40, %s41, %s42
      %p46 = pneg %p40
      %p47 = scmp.eq.s32.totalorder %s31, 1
      %p48 = por %p46, %p47
      %p49 = scmp.ne.s32.totalorder %s41, %s44
      %p50 = scmp.eq.s32.totalorder %s31, 0
      %p51 = por %p49, %p50
      %p52 = scmp.ne.s32.totalorder %s41, %s44
      %p53 = scmp.eq.s32.totalorder %s36, 1
      %p54 = por %p52, %p53
      %p55 = scmp.ne.s32.totalorder %s44, %s45
      %p56 = scmp.eq.s32.totalorder %s36, 0
      %p57 = por %p55, %p56
      %p58 = scmp.ne.s32.totalorder %s44, %s45
      %p59 = scmp.eq.s32.totalorder %s37, 1
      %p60 = por %p58, %p59
      %p62 = scmp.ne.s32.totalorder %s45, %s61
      %p63 = scmp.eq.s32.totalorder %s37, 0
      %p64 = por %p62, %p63
      %s66 = sadd.s32 %s65, 1
      %p69 = scmp.eq.s32.totalorder %s31, 1
      %p70 = scmp.ne.s32.totalorder %s65, %s67
      %p71 = scmp.eq.s32.totalorder %s31, 0
      %p72 = por %p70, %p71
      %p73 = scmp.ne.s32.totalorder %s65, %s67
      %p74 = scmp.eq.s32.totalorder %s36, 1
      %p75 = por %p73, %p74
      %p76 = scmp.ne.s32.totalorder %s67, %s68
      %p77 = scmp.eq.s32.totalorder %s36, 0
      %p78 = por %p76, %p77
      %p79 = scmp.ne.s32.totalorder %s67, %s68
      %p80 = scmp.eq.s32.totalorder %s37, 1
      %p81 = por %p79, %p80
      %p83 = scmp.ne.s32.totalorder %s68, %s82
      %p84 = scmp.eq.s32.totalorder %s37, 0
      %p85 = por %p83, %p84
      %s87 = sadd.s32 %s86, 1
      %p90 = scmp.eq.s32.totalorder %s31, 1
      %p91 = scmp.ne.s32.totalorder %s86, %s88
      %p92 = scmp.eq.s32.totalorder %s31, 0
      %p93 = por %p91, %p92
      %p94 = scmp.ne.s32.totalorder %s86, %s88
      %p95 = scmp.eq.s32.totalorder %s36, 1
      %p96 = por %p94, %p95
      %p97 = scmp.ne.s32.totalorder %s88, %s89
      %p98 = scmp.eq.s32.totalorder %s36, 0
      %p99 = por %p97, %p98
      %p100 = scmp.ne.s32.totalorder %s88, %s89
      %p101 = scmp.eq.s32.totalorder %s37, 1
      %p102 = por %p100, %p101
      %p104 = scmp.ne.s32.totalorder %s89, %s103
      %p105 = scmp.eq.s32.totalorder %s37, 0
      %p106 = por %p104, %p105
      %s108 = sadd.s32 %s107, 1
      %p111 = scmp.eq.s32.totalorder %s31, 1
      %p112 = scmp.ne.s32.totalorder %s107, %s109
      %p113 = scmp.eq.s32.totalorder %s31, 0
      %p114 = por %p112, %p113
      %p115 = scmp.ne.s32.totalorder %s107, %s109
      %p116 = scmp.eq.s32.totalorder %s36, 1
      %p117 = por %p115, %p116
      %p118 = scmp.ne.s32.totalorder %s109, %s110
      %p119 = scmp.eq.s32.totalorder %s36, 0
      %p120 = por %p118, %p119
      %p121 = scmp.ne.s32.totalorder %s109, %s110
      %p122 = scmp.eq.s32.totalorder %s37, 1
      %p123 = por %p121, %p122
      %p125 = scmp.ne.s32.totalorder %s110, %s124
      %p126 = scmp.eq.s32.totalorder %s37, 0
      %p127 = por %p125, %p126
      %s129 = sadd.s32 %s128, 1
      %p132 = scmp.eq.s32.totalorder %s31, 1
      %p133 = scmp.ne.s32.totalorder %s128, %s130
      %p134 = scmp.eq.s32.totalorder %s31, 0
      %p135 = por %p133, %p134
      %p136 = scmp.ne.s32.totalorder %s128, %s130
      %p137 = scmp.eq.s32.totalorder %s36, 1
      %p138 = por %p136, %p137
      %p139 = scmp.ne.s32.totalorder %s130, %s131
      %p140 = scmp.eq.s32.totalorder %s36, 0
      %p141 = por %p139, %p140
      %p142 = scmp.ne.s32.totalorder %s130, %s131
      %p143 = scmp.eq.s32.totalorder %s37, 1
      %p144 = por %p142, %p143
      %p146 = scmp.ne.s32.totalorder %s131, %s145
      %p147 = scmp.eq.s32.totalorder %s37, 0
      %p148 = por %p146, %p147
      %s150 = sadd.s32 %s149, 1
      %p153 = scmp.eq.s32.totalorder %s31, 1
      %p154 = scmp.ne.s32.totalorder %s149, %s151
      %p155 = scmp.eq.s32.totalorder %s31, 0
      %p156 = por %p154, %p155
      %p157 = scmp.ne.s32.totalorder %s149, %s151
      %p158 = scmp.eq.s32.totalorder %s36, 1
      %p159 = por %p157, %p158
      %p160 = scmp.ne.s32.totalorder %s151, %s152
      %p161 = scmp.eq.s32.totalorder %s36, 0
      %p162 = por %p160, %p161
      %p163 = scmp.ne.s32.totalorder %s151, %s152
      %p164 = scmp.eq.s32.totalorder %s37, 1
      %p165 = por %p163, %p164
      %p167 = scmp.ne.s32.totalorder %s152, %s166
      %p168 = scmp.eq.s32.totalorder %s37, 0
      %p169 = por %p167, %p168
      %s171 = sadd.s32 %s170, 1
      %p174 = scmp.eq.s32.totalorder %s31, 1
      %p175 = scmp.ne.s32.totalorder %s170, %s172
      %p176 = scmp.eq.s32.totalorder %s31, 0
      %p177 = por %p175, %p176
      %p178 = scmp.ne.s32.totalorder %s170, %s172
      %p179 = scmp.eq.s32.totalorder %s36, 1
      %p180 = por %p178, %p179
      %p181 = scmp.ne.s32.totalorder %s172, %s173
      %p182 = scmp.eq.s32.totalorder %s36, 0
      %p183 = por %p181, %p182
      %p184 = scmp.ne.s32.totalorder %s172, %s173
      %p185 = scmp.eq.s32.totalorder %s37, 1
      %p186 = por %p184, %p185
      %p188 = scmp.ne.s32.totalorder %s173, %s187
      %p189 = scmp.eq.s32.totalorder %s37, 0
      %p190 = por %p188, %p189
      %s192 = sadd.s32 %s191, 1
      %p195 = scmp.eq.s32.totalorder %s31, 1
      %p196 = scmp.ne.s32.totalorder %s191, %s193
      %p197 = scmp.eq.s32.totalorder %s31, 0
      %p198 = por %p196, %p197
      %p199 = scmp.ne.s32.totalorder %s191, %s193
      %p200 = scmp.eq.s32.totalorder %s36, 1
      %p201 = por %p199, %p200
      %p202 = scmp.ne.s32.totalorder %s193, %s194
      %p203 = scmp.eq.s32.totalorder %s36, 0
      %p204 = por %p202, %p203
      %p205 = scmp.ne.s32.totalorder %s193, %s194
      %p206 = scmp.eq.s32.totalorder %s37, 1
      %p207 = por %p205, %p206
      %p209 = scmp.ne.s32.totalorder %s194, %s208
      %p210 = scmp.eq.s32.totalorder %s37, 0
      %p211 = por %p209, %p210
      %s213 = sadd.s32 %s212, 1
      %p216 = scmp.eq.s32.totalorder %s31, 1
      %p217 = scmp.ne.s32.totalorder %s212, %s214
      %p218 = scmp.eq.s32.totalorder %s31, 0
      %p219 = por %p217, %p218
      %p220 = scmp.ne.s32.totalorder %s212, %s214
      %p221 = scmp.eq.s32.totalorder %s36, 1
      %p222 = por %p220, %p221
      %p223 = scmp.ne.s32.totalorder %s214, %s215
      %p224 = scmp.eq.s32.totalorder %s36, 0
      %p225 = por %p223, %p224
      %p226 = scmp.ne.s32.totalorder %s214, %s215
      %p227 = scmp.eq.s32.totalorder %s37, 1
      %p228 = por %p226, %p227
      %p230 = scmp.ne.s32.totalorder %s215, %s229
      %p231 = scmp.eq.s32.totalorder %s37, 0
      %p232 = por %p230, %p231
      %s234 = sadd.s32 %s233, 1
      %p237 = scmp.eq.s32.totalorder %s31, 1
      %p238 = scmp.ne.s32.totalorder %s233, %s235
      %p239 = scmp.eq.s32.totalorder %s31, 0
      %p240 = por %p238, %p239
      %p241 = scmp.ne.s32.totalorder %s233, %s235
      %p242 = scmp.eq.s32.totalorder %s36, 1
      %p243 = por %p241, %p242
      %p244 = scmp.ne.s32.totalorder %s235, %s236
      %p245 = scmp.eq.s32.totalorder %s36, 0
      %p246 = por %p244, %p245
      %p247 = scmp.ne.s32.totalorder %s235, %s236
      %p248 = scmp.eq.s32.totalorder %s37, 1
      %p249 = por %p247, %p248
      %p251 = scmp.ne.s32.totalorder %s236, %s250
      %p252 = scmp.eq.s32.totalorder %s37, 0
      %p253 = por %p251, %p252
      %s255 = sadd.s32 %s254, 1
      %p258 = scmp.eq.s32.totalorder %s31, 1
      %p259 = scmp.ne.s32.totalorder %s254, %s256
      %p260 = scmp.eq.s32.totalorder %s31, 0
      %p261 = por %p259, %p260
      %p262 = scmp.ne.s32.totalorder %s254, %s256
      %p263 = scmp.eq.s32.totalorder %s36, 1
      %p264 = por %p262, %p263
      %p265 = scmp.ne.s32.totalorder %s256, %s257
      %p266 = scmp.eq.s32.totalorder %s36, 0
      %p267 = por %p265, %p266
      %p268 = scmp.ne.s32.totalorder %s256, %s257
      %p269 = scmp.eq.s32.totalorder %s37, 1
      %p270 = por %p268, %p269
      %p272 = scmp.ne.s32.totalorder %s257, %s271
      %p273 = scmp.eq.s32.totalorder %s37, 0
      %p274 = por %p272, %p273
      %s276 = sadd.s32 %s275, 1
      %p279 = scmp.eq.s32.totalorder %s31, 1
      %p280 = scmp.ne.s32.totalorder %s275, %s277
      %p281 = scmp.eq.s32.totalorder %s31, 0
      %p282 = por %p280, %p281
      %p283 = scmp.ne.s32.totalorder %s275, %s277
      %p284 = scmp.eq.s32.totalorder %s36, 1
      %p285 = por %p283, %p284
      %p286 = scmp.ne.s32.totalorder %s277, %s278
      %p287 = scmp.eq.s32.totalorder %s36, 0
      %p288 = por %p286, %p287
      %p289 = scmp.ne.s32.totalorder %s277, %s278
      %p290 = scmp.eq.s32.totalorder %s37, 1
      %p291 = por %p289, %p290
      %p293 = scmp.ne.s32.totalorder %s278, %s292
      %p294 = scmp.eq.s32.totalorder %s37, 0
      %p295 = por %p293, %p294
      %s297 = sadd.s32 %s296, 1
      %p300 = scmp.eq.s32.totalorder %s31, 1
      %p301 = scmp.ne.s32.totalorder %s296, %s298
      %p302 = scmp.eq.s32.totalorder %s31, 0
      %p303 = por %p301, %p302
      %p304 = scmp.ne.s32.totalorder %s296, %s298
      %p305 = scmp.eq.s32.totalorder %s36, 1
      %p306 = por %p304, %p305
      %p307 = scmp.ne.s32.totalorder %s298, %s299
      %p308 = scmp.eq.s32.totalorder %s36, 0
      %p309 = por %p307, %p308
      %p310 = scmp.ne.s32.totalorder %s298, %s299
      %p311 = scmp.eq.s32.totalorder %s37, 1
      %p312 = por %p310, %p311
      %p314 = scmp.ne.s32.totalorder %s299, %s313
      %p315 = scmp.eq.s32.totalorder %s37, 0
      %p316 = por %p314, %p315
      %s318 = sadd.s32 %s317, 1
      %p321 = scmp.eq.s32.totalorder %s31, 1
      %p322 = scmp.ne.s32.totalorder %s317, %s319
      %p323 = scmp.eq.s32.totalorder %s31, 0
      %p324 = por %p322, %p323
      %p325 = scmp.ne.s32.totalorder %s317, %s319
      %p326 = scmp.eq.s32.totalorder %s36, 1
      %p327 = por %p325, %p326
      %p328 = scmp.ne.s32.totalorder %s319, %s320
      %p329 = scmp.eq.s32.totalorder %s36, 0
      %p330 = por %p328, %p329
      %p331 = scmp.ne.s32.totalorder %s319, %s320
      %p332 = scmp.eq.s32.totalorder %s37, 1
      %p333 = por %p331, %p332
      %p335 = scmp.ne.s32.totalorder %s320, %s334
      %p336 = scmp.eq.s32.totalorder %s37, 0
      %p337 = por %p335, %p336
      %s339 = sadd.s32 %s338, 1
      %p342 = scmp.eq.s32.totalorder %s31, 1
      %p343 = scmp.ne.s32.totalorder %s338, %s340
      %p344 = scmp.eq.s32.totalorder %s31, 0
      %p345 = por %p343, %p344
      %p346 = scmp.ne.s32.totalorder %s338, %s340
      %p347 = scmp.eq.s32.totalorder %s36, 1
      %p348 = por %p346, %p347
      %p349 = scmp.ne.s32.totalorder %s340, %s341
      %p350 = scmp.eq.s32.totalorder %s36, 0
      %p351 = por %p349, %p350
      %p352 = scmp.ne.s32.totalorder %s340, %s341
      %p353 = scmp.eq.s32.totalorder %s37, 1
      %p354 = por %p352, %p353
      %p356 = scmp.ne.s32.totalorder %s341, %s355
      %p357 = scmp.eq.s32.totalorder %s37, 0
      %p358 = por %p356, %p357
      %s360 = sadd.s32 %s359, 1
      %p363 = scmp.eq.s32.totalorder %s31, 1
      %p364 = scmp.ne.s32.totalorder %s359, %s361
      %p365 = scmp.eq.s32.totalorder %s31, 0
      %p366 = por %p364, %p365
      %p367 = scmp.ne.s32.totalorder %s359, %s361
      %p368 = scmp.eq.s32.totalorder %s36, 1
      %p369 = por %p367, %p368
      %p370 = scmp.ne.s32.totalorder %s361, %s362
      %p371 = scmp.eq.s32.totalorder %s36, 0
      %p372 = por %p370, %p371
      %p373 = scmp.ne.s32.totalorder %s361, %s362
      %p374 = scmp.eq.s32.totalorder %s37, 1
      %p375 = por %p373, %p374
      %p377 = scmp.ne.s32.totalorder %s362, %s376
      %p378 = scmp.eq.s32.totalorder %s37, 0
      %p379 = por %p377, %p378
      %s380 = ssub.s32 %s31, %s38
      %p381 = scmp.eq.s32.totalorder %s380, 0
      %s383 = sadd.s32 %s382, 1
      %s384 = scalar_select %p381, %s382, %s383
      %p387 = pneg %p381
      %p388 = scmp.eq.s32.totalorder %s31, 1
      %p389 = por %p387, %p388
      %p390 = scmp.ne.s32.totalorder %s382, %s385
      %p391 = scmp.eq.s32.totalorder %s31, 0
      %p392 = por %p390, %p391
      %p393 = scmp.ne.s32.totalorder %s382, %s385
      %p394 = scmp.eq.s32.totalorder %s36, 1
      %p395 = por %p393, %p394
      %p396 = scmp.ne.s32.totalorder %s385, %s386
      %p397 = scmp.eq.s32.totalorder %s36, 0
      %p398 = por %p396, %p397
      %p399 = scmp.ne.s32.totalorder %s385, %s386
      %p400 = scmp.eq.s32.totalorder %s37, 1
      %p401 = por %p399, %p400
      %p403 = scmp.ne.s32.totalorder %s386, %s402
      %p404 = scmp.eq.s32.totalorder %s37, 0
      %p405 = por %p403, %p404
      %p406 = scmp.le.s32.totalorder 1, %s31
      %p407 = scmp.lt.s32.totalorder %s31, 3
      %p408 = pnand %p406, %p407
      %p409 = pneg %p408
      // Predicated region
      $region9: #{tpu_custom_call.1} parent=5 // pred_check
        _
      $region10: #{tpu_custom_call.1} parent=5 // pred_check_branch
        %411 = sbr.rel (%p408) target = $region12
      $region11: #{tpu_custom_call.1} parent=5 // pred_region
        %s412 = ssub.s32 %s31, 1
        // Predicated region
        $region13: #{tpu_custom_call.1} parent=11 // pred_check
          %p413 = pneg %p78
        $region14: #{tpu_custom_call.1} parent=11 // pred_check_branch
          %415 = sbr.rel (%p413) target = $region16
        $region15: #{tpu_custom_call.1} parent=11 // pred_region
          %s417 = ssub.s32 256, 256
          %418 = vsyncadd [#allocation6], %s417
          %s419 = sshll.u32 [#allocation5], 4
          %s420 = int_to_ptr.vmem [resolvable:$true] %s419
          %425 = dma.hbm_to_vmem [thread:$0]  %s1, 256, %s420, [#allocation6], 128, 128, 8
        $region16: #{tpu_custom_call.1} parent=11 // pred_fallthru
          _
        // Predicated region
        $region17: #{tpu_custom_call.1} parent=11 // pred_check
          %p426 = pneg %p99
        $region18: #{tpu_custom_call.1} parent=11 // pred_check_branch
          %428 = sbr.rel (%p426) target = $region20
        $region19: #{tpu_custom_call.1} parent=11 // pred_region
          %s430 = ssub.s32 256, 256
          %431 = vsyncadd [#allocation6], %s430
          %s432 = sshll.u32 [#allocation7], 4
          %s433 = int_to_ptr.vmem [resolvable:$true] %s432
          %438 = dma.hbm_to_vmem [thread:$0]  %s2, 256, %s433, [#allocation6], 64, 64, 4
        $region20: #{tpu_custom_call.1} parent=11 // pred_fallthru
          _
        // Predicated region
        $region21: #{tpu_custom_call.1} parent=11 // pred_check
          %p439 = pneg %p120
        $region22: #{tpu_custom_call.1} parent=11 // pred_check_branch
          %441 = sbr.rel (%p439) target = $region24
        $region23: #{tpu_custom_call.1} parent=11 // pred_region
          _
        $region24: #{tpu_custom_call.1} parent=11 // pred_fallthru
          _
        // Predicated region
        $region25: #{tpu_custom_call.1} parent=11 // pred_check
          %p442 = pneg %p141
        $region26: #{tpu_custom_call.1} parent=11 // pred_check_branch
          %444 = sbr.rel (%p442) target = $region28
        $region27: #{tpu_custom_call.1} parent=11 // pred_region
          _
        $region28: #{tpu_custom_call.1} parent=11 // pred_fallthru
          _
        // Predicated region
        $region29: #{tpu_custom_call.1} parent=11 // pred_check
          %p445 = pneg %p162
        $region30: #{tpu_custom_call.1} parent=11 // pred_check_branch
          %447 = sbr.rel (%p445) target = $region32
        $region31: #{tpu_custom_call.1} parent=11 // pred_region
          _
        $region32: #{tpu_custom_call.1} parent=11 // pred_fallthru
          _
        // Predicated region
        $region33: #{tpu_custom_call.1} parent=11 // pred_check
          %p448 = pneg %p183
        $region34: #{tpu_custom_call.1} parent=11 // pred_check_branch
          %450 = sbr.rel (%p448) target = $region36
        $region35: #{tpu_custom_call.1} parent=11 // pred_region
          %s452 = ssub.s32 3072, 3072
          %453 = vsyncadd [#allocation9], %s452
          %s454 = sshll.u32 [#allocation8], 4
          %s455 = int_to_ptr.vmem [resolvable:$true] %s454
          %460 = dma.hbm_to_vmem [thread:$0]  %s6, 3072, %s455, [#allocation9], 192, 192, 12
        $region36: #{tpu_custom_call.1} parent=11 // pred_fallthru
          _
        // Predicated region
        $region37: #{tpu_custom_call.1} parent=11 // pred_check
          %p461 = pneg %p204
        $region38: #{tpu_custom_call.1} parent=11 // pred_check_branch
          %463 = sbr.rel (%p461) target = $region40
        $region39: #{tpu_custom_call.1} parent=11 // pred_region
          _
        $region40: #{tpu_custom_call.1} parent=11 // pred_fallthru
          _
        // Predicated region
        $region41: #{tpu_custom_call.1} parent=11 // pred_check
          %p464 = pneg %p225
        $region42: #{tpu_custom_call.1} parent=11 // pred_check_branch
          %466 = sbr.rel (%p464) target = $region44
        $region43: #{tpu_custom_call.1} parent=11 // pred_region
          %s468 = ssub.s32 1024, 1024
          %469 = vsyncadd [#allocation9], %s468
          %s470 = sshll.u32 [#allocation10], 4
          %s471 = int_to_ptr.vmem [resolvable:$true] %s470
          %476 = dma.hbm_to_vmem [thread:$0]  %s8, 1024, %s471, [#allocation9], 64, 64, 4
        $region44: #{tpu_custom_call.1} parent=11 // pred_fallthru
          _
        // Predicated region
        $region45: #{tpu_custom_call.1} parent=11 // pred_check
          %p477 = pneg %p246
        $region46: #{tpu_custom_call.1} parent=11 // pred_check_branch
          %479 = sbr.rel (%p477) target = $region48
        $region47: #{tpu_custom_call.1} parent=11 // pred_region
          _
        $region48: #{tpu_custom_call.1} parent=11 // pred_fallthru
          _
        // Predicated region
        $region49: #{tpu_custom_call.1} parent=11 // pred_check
          %p480 = pneg %p267
        $region50: #{tpu_custom_call.1} parent=11 // pred_check_branch
          %482 = sbr.rel (%p480) target = $region52
        $region51: #{tpu_custom_call.1} parent=11 // pred_region
          _
        $region52: #{tpu_custom_call.1} parent=11 // pred_fallthru
          _
        // Predicated region
        $region53: #{tpu_custom_call.1} parent=11 // pred_check
          %p483 = pneg %p288
        $region54: #{tpu_custom_call.1} parent=11 // pred_check_branch
          %485 = sbr.rel (%p483) target = $region56
        $region55: #{tpu_custom_call.1} parent=11 // pred_region
          _
        $region56: #{tpu_custom_call.1} parent=11 // pred_fallthru
          _
        // Predicated region
        $region57: #{tpu_custom_call.1} parent=11 // pred_check
          %p486 = pneg %p309
        $region58: #{tpu_custom_call.1} parent=11 // pred_check_branch
          %488 = sbr.rel (%p486) target = $region60
        $region59: #{tpu_custom_call.1} parent=11 // pred_region
          %s490 = ssub.s32 4096, 4096
          %491 = vsyncadd [#allocation12], %s490
          %s492 = sshll.u32 [#allocation11], 4
          %s493 = int_to_ptr.vmem [resolvable:$true] %s492
          %498 = dma.hbm_to_vmem [thread:$0]  %s12, 4096, %s493, [#allocation12], 256, 256, 16
        $region60: #{tpu_custom_call.1} parent=11 // pred_fallthru
          _
        // Predicated region
        $region61: #{tpu_custom_call.1} parent=11 // pred_check
          %p499 = pneg %p330
        $region62: #{tpu_custom_call.1} parent=11 // pred_check_branch
          %501 = sbr.rel (%p499) target = $region64
        $region63: #{tpu_custom_call.1} parent=11 // pred_region
          _
        $region64: #{tpu_custom_call.1} parent=11 // pred_fallthru
          _
        // Predicated region
        $region65: #{tpu_custom_call.1} parent=11 // pred_check
          %p502 = pneg %p351
        $region66: #{tpu_custom_call.1} parent=11 // pred_check_branch
          %504 = sbr.rel (%p502) target = $region68
        $region67: #{tpu_custom_call.1} parent=11 // pred_region
          %s506 = ssub.s32 4096, 4096
          %507 = vsyncadd [#allocation12], %s506
          %s508 = sshll.u32 [#allocation13], 4
          %s509 = int_to_ptr.vmem [resolvable:$true] %s508
          %514 = dma.hbm_to_vmem [thread:$0]  %s14, 4096, %s509, [#allocation12], 64, 64, 4
        $region68: #{tpu_custom_call.1} parent=11 // pred_fallthru
          _
        // Predicated region
        $region69: #{tpu_custom_call.1} parent=11 // pred_check
          %p515 = pneg %p372
        $region70: #{tpu_custom_call.1} parent=11 // pred_check_branch
          %517 = sbr.rel (%p515) target = $region72
        $region71: #{tpu_custom_call.1} parent=11 // pred_region
          _
        $region72: #{tpu_custom_call.1} parent=11 // pred_fallthru
          _
      $region12: #{tpu_custom_call.1} parent=5 // pred_fallthru
        _
      %p518 = scmp.lt.s32.totalorder %s31, 2
      // Predicated region
      $region73: #{tpu_custom_call.1} parent=5 // pred_check
        %p519 = pneg %p518
      $region74: #{tpu_custom_call.1} parent=5 // pred_check_branch
        %521 = sbr.rel (%p519) target = $region76
      $region75: #{tpu_custom_call.1} parent=5 // pred_region
        // Predicated region
        $region77: #{tpu_custom_call.1} parent=75 // pred_check
          %p522 = pneg %p51
        $region78: #{tpu_custom_call.1} parent=75 // pred_check_branch
          %524 = sbr.rel (%p522) target = $region80
        $region79: #{tpu_custom_call.1} parent=75 // pred_region
          %s525 = sand.u32 %s41, 1
          %s526 = scalar_lea.sflag [#allocation3], %s525
          %s527 = sand.u32 %s41, 1
          %s528 = smul.addr %s527, 128
          %s529 = scalar_lea.vmem [#allocation2], %s528
          %s530 = smul.u32 8, %s31
          %s532 = ssub.s32 2048, 2048
          %533 = vsyncadd %s526, %s532
          %s534 = smul.addr %s530, 2
          %s535 = smul.addr %s534, 128
          %s536 = scalar_lea.hbm %s0, %s535
          %s537 = sshll.u32 %s529, 4
          %s538 = int_to_ptr.vmem [resolvable:$true] %s537
          %543 = dma.hbm_to_vmem [thread:$0]  %s536, 2048, %s538, %s526, 128, 128, 8
        $region80: #{tpu_custom_call.1} parent=75 // pred_fallthru
          _
      $region76: #{tpu_custom_call.1} parent=5 // pred_fallthru
        _
      %p544 = scmp.le.s32.totalorder 1, %s31
      %p545 = scmp.lt.s32.totalorder %s31, 3
      %p546 = pnand %p544, %p545
      %p547 = pneg %p546
      // Predicated region
      $region81: #{tpu_custom_call.1} parent=5 // pred_check
        _
      $region82: #{tpu_custom_call.1} parent=5 // pred_check_branch
        %549 = sbr.rel (%p546) target = $region84
      $region83: #{tpu_custom_call.1} parent=5 // pred_region
        %s550 = ssub.s32 %s31, 1
        %s551 = sand.u32 %s44, 1
        %s552 = scalar_lea.sflag [#allocation3], %s551
        %s553 = sand.u32 %s44, 1
        %s554 = smul.addr %s553, 128
        %s555 = scalar_lea.vmem [#allocation2], %s554
        // Predicated region
        $region85: #{tpu_custom_call.1} parent=83 // pred_check
          %p556 = pneg %p57
        $region86: #{tpu_custom_call.1} parent=83 // pred_check_branch
          %558 = sbr.rel (%p556) target = $region88
        $region87: #{tpu_custom_call.1} parent=83 // pred_region
          %559 = dma.done %s552, 2048
        $region88: #{tpu_custom_call.1} parent=83 // pred_fallthru
          _
        // Predicated region
        $region89: #{tpu_custom_call.1} parent=83 // pred_check
          %p560 = pneg %p78
        $region90: #{tpu_custom_call.1} parent=83 // pred_check_branch
          %562 = sbr.rel (%p560) target = $region92
        $region91: #{tpu_custom_call.1} parent=83 // pred_region
          %563 = dma.done [#allocation6], 256
        $region92: #{tpu_custom_call.1} parent=83 // pred_fallthru
          _
        // Predicated region
        $region93: #{tpu_custom_call.1} parent=83 // pred_check
          %p564 = pneg %p99
        $region94: #{tpu_custom_call.1} parent=83 // pred_check_branch
          %566 = sbr.rel (%p564) target = $region96
        $region95: #{tpu_custom_call.1} parent=83 // pred_region
          %567 = dma.done [#allocation6], 256
        $region96: #{tpu_custom_call.1} parent=83 // pred_fallthru
          _
        // Predicated region
        $region97: #{tpu_custom_call.1} parent=83 // pred_check
          %p568 = pneg %p183
        $region98: #{tpu_custom_call.1} parent=83 // pred_check_branch
          %570 = sbr.rel (%p568) target = $region100
        $region99: #{tpu_custom_call.1} parent=83 // pred_region
          %571 = dma.done [#allocation9], 3072
        $region100: #{tpu_custom_call.1} parent=83 // pred_fallthru
          _
        // Predicated region
        $region101: #{tpu_custom_call.1} parent=83 // pred_check
          %p572 = pneg %p225
        $region102: #{tpu_custom_call.1} parent=83 // pred_check_branch
          %574 = sbr.rel (%p572) target = $region104
        $region103: #{tpu_custom_call.1} parent=83 // pred_region
          %575 = dma.done [#allocation9], 1024
        $region104: #{tpu_custom_call.1} parent=83 // pred_fallthru
          _
        // Predicated region
        $region105: #{tpu_custom_call.1} parent=83 // pred_check
          %p576 = pneg %p309
        $region106: #{tpu_custom_call.1} parent=83 // pred_check_branch
          %578 = sbr.rel (%p576) target = $region108
        $region107: #{tpu_custom_call.1} parent=83 // pred_region
          %579 = dma.done [#allocation12], 4096
        $region108: #{tpu_custom_call.1} parent=83 // pred_fallthru
          _
        // Predicated region
        $region109: #{tpu_custom_call.1} parent=83 // pred_check
          %p580 = pneg %p351
        $region110: #{tpu_custom_call.1} parent=83 // pred_check_branch
          %582 = sbr.rel (%p580) target = $region112
        $region111: #{tpu_custom_call.1} parent=83 // pred_region
          %583 = dma.done [#allocation12], 4096
        $region112: #{tpu_custom_call.1} parent=83 // pred_fallthru
          _
        %s584 = sand.u32 %s44, 1
        %s585 = scalar_lea.sflag [#allocation3], %s584
        %s586 = sand.u32 %s44, 1
        %s587 = smul.addr %s586, 128
        %s588 = scalar_lea.vmem [#allocation2], %s587
        %p589 = pneg %p57
        %p590 = pneg %p54
        %p591 = pneg %p78
        %p592 = pneg %p75
        %p593 = pneg %p99
        %p594 = pneg %p96
        %p595 = pneg %p120
        %p596 = pneg %p117
        %p597 = pneg %p141
        %p598 = pneg %p138
        %p599 = pneg %p162
        %p600 = pneg %p159
        %p601 = pneg %p183
        %p602 = pneg %p180
        %p603 = pneg %p204
        %p604 = pneg %p201
        %p605 = pneg %p225
        %p606 = pneg %p222
        %p607 = pneg %p246
        %p608 = pneg %p243
        %p609 = pneg %p267
        %p610 = pneg %p264
        %p611 = pneg %p288
        %p612 = pneg %p285
        %p613 = pneg %p309
        %p614 = pneg %p306
        %p615 = pneg %p330
        %p616 = pneg %p327
        %p617 = pneg %p351
        %p618 = pneg %p348
        %p619 = pneg %p372
        %p620 = pneg %p369
        %p621 = pneg %p398
        %p622 = pneg %p395
        %s623 = sand.u32 %s385, 1
        %s624 = scalar_lea.sflag [#allocation4], %s623
        %s625 = sand.u32 %s385, 1
        %s626 = smul.addr %s625, 128
        %s627 = scalar_lea.vmem [#allocation14], %s626
        %s628 = smul.u32 8, %s36
        %s629 = smul.u32 8, %s36
        %v631 = vld [vmem:[%s555] sm:$0xff]
        %v632 = vld [vmem:[%s555 + $0x8] sm:$0xff]
        %v633 = vld [vmem:[%s555 + $0x10] sm:$0xff]
        %v634 = vld [vmem:[%s555 + $0x18] sm:$0xff]
        %v635 = vld [vmem:[%s555 + $0x20] sm:$0xff]
        %v636 = vld [vmem:[%s555 + $0x28] sm:$0xff]
        %v637 = vld [vmem:[%s555 + $0x30] sm:$0xff]
        %v638 = vld [vmem:[%s555 + $0x38] sm:$0xff]
        %v639 = vld [vmem:[%s555 + $0x40] sm:$0xff]
        %v640 = vld [vmem:[%s555 + $0x48] sm:$0xff]
        %v641 = vld [vmem:[%s555 + $0x50] sm:$0xff]
        %v642 = vld [vmem:[%s555 + $0x58] sm:$0xff]
        %v643 = vld [vmem:[%s555 + $0x60] sm:$0xff]
        %v644 = vld [vmem:[%s555 + $0x68] sm:$0xff]
        %v645 = vld [vmem:[%s555 + $0x70] sm:$0xff]
        %v646 = vld [vmem:[%s555 + $0x78] sm:$0xff]
        %v647 = vpack.c.bf16 %v632, %v631
        %v648 = vpack.c.bf16 %v634, %v633
        %v649 = vpack.c.bf16 %v636, %v635
        %v650 = vpack.c.bf16 %v638, %v637
        %v651 = vpack.c.bf16 %v640, %v639
        %v652 = vpack.c.bf16 %v642, %v641
        %v653 = vpack.c.bf16 %v644, %v643
        %v654 = vpack.c.bf16 %v646, %v645
        %v655 = vld [vmem:[#allocation7] sm:$0xf]
        %v656 = vld [vmem:[#allocation7 + $0x4] sm:$0xf]
        %v657 = vld [vmem:[#allocation7 + $0x8] sm:$0xf]
        %v658 = vld [vmem:[#allocation7 + $0xc] sm:$0xf]
        %v659 = vld [vmem:[%s3] sm:$0x1]
        %v661 = vlaneseq
        %v662 = vshrl.u32 %v661, 7
        %v663 = vsub.s32 0, %v662
        %v664 = vrot.slane %v659, %v663
        %v670 = vunpack.c.l.b16 %v655
        %v671 = vunpack.c.l.b16 %v656
        %v672 = vunpack.c.l.b16 %v657
        %v673 = vunpack.c.l.b16 %v658
        %v674 = vpack.c.b16 %v671, %v670
        %v675 = vpack.c.b16 %v673, %v672
        %vm678 = vcmask 261120
        %v680 = vsel %vm678, %v647, 0
        %v683 = vsel %vm678, %v648, 0
        %v686 = vsel %vm678, %v649, 0
        %v689 = vsel %vm678, %v650, 0
        %v692 = vsel %vm678, %v651, 0
        %v695 = vsel %vm678, %v652, 0
        %v698 = vsel %vm678, %v653, 0
        %v701 = vsel %vm678, %v654, 0
        %703 = vmatprep.subr.bf16.mxu0 0
        %704 = vmatpush1.bf16.msra.mxu0 %v674
        %705 = vmatprep.subr.bf16.mxu0 0
        %706 = vmatpush1.bf16.msra.mxu0 %v675
        %707 = vmatprep.subr.bf16.mxu0 0
        %708 = vmatpush1.bf16.msra.mxu0 0
        %709 = vmatprep.subr.bf16.mxu0 0
        %710 = vmatpush1.bf16.msra.mxu0 0
        %711 = vmatprep.subr.bf16.mxu0 0
        %712 = vmatpush1.bf16.msra.mxu0 0
        %713 = vmatprep.subr.bf16.mxu0 0
        %714 = vmatpush1.bf16.msra.mxu0 0
        %715 = vmatprep.subr.bf16.mxu0 0
        %716 = vmatpush1.bf16.msra.mxu0 0
        %717 = vmatprep.subr.bf16.mxu0 0
        %718 = vmatpush1.bf16.msra.mxu0 0
        %719 = vmatprep.subr.bf16.mxu0 0
        %720 = vmatpush1.bf16.msra.mxu0 0
        %721 = vmatprep.subr.bf16.mxu0 0
        %722 = vmatpush1.bf16.msra.mxu0 0
        %723 = vmatprep.subr.bf16.mxu0 0
        %724 = vmatpush1.bf16.msra.mxu0 0
        %725 = vmatprep.subr.bf16.mxu0 0
        %726 = vmatpush1.bf16.msra.mxu0 0
        %727 = vmatprep.subr.bf16.mxu0 0
        %728 = vmatpush1.bf16.msra.mxu0 0
        %729 = vmatprep.subr.bf16.mxu0 0
        %730 = vmatpush1.bf16.msra.mxu0 0
        %731 = vmatprep.subr.bf16.mxu0 0
        %732 = vmatpush1.bf16.msra.mxu0 0
        %733 = vmatprep.subr.bf16.mxu0 0
        %734 = vmatpush1.bf16.msra.mxu0 0
        %735 = vmatprep.mubr.bf16.mxu0 0
        %736 = vmatmul.mubr.bf16.gmra.mrb[0].mxu0 %v680
        %v737 = vpop.f32.mrb[0].mxu0
        %v738 = vadd.f32 %v664, %v737
        %v739 = vpop.f32.mrb[0].mxu0
        %v740 = vpop.f32.mrb[0].mxu0
        %v741 = vadd.f32 %v664, %v740
        %v742 = vpop.f32.mrb[0].mxu0
        %743 = vmatprep.mubr.bf16.mxu0 0
        %744 = vmatmul.mubr.bf16.gmra.mrb[0].mxu0 %v683
        %v745 = vpop.f32.mrb[0].mxu0
        %v746 = vadd.f32 %v664, %v745
        %v747 = vpop.f32.mrb[0].mxu0
        %v748 = vpop.f32.mrb[0].mxu0
        %v749 = vadd.f32 %v664, %v748
        %v750 = vpop.f32.mrb[0].mxu0
        %751 = vmatprep.mubr.bf16.mxu0 0
        %752 = vmatmul.mubr.bf16.gmra.mrb[0].mxu0 %v686
        %v753 = vpop.f32.mrb[0].mxu0
        %v754 = vadd.f32 %v664, %v753
        %v755 = vpop.f32.mrb[0].mxu0
        %v756 = vpop.f32.mrb[0].mxu0
        %v757 = vadd.f32 %v664, %v756
        %v758 = vpop.f32.mrb[0].mxu0
        %759 = vmatprep.mubr.bf16.mxu0 0
        %760 = vmatmul.mubr.bf16.gmra.mrb[0].mxu0 %v689
        %v761 = vpop.f32.mrb[0].mxu0
        %v762 = vadd.f32 %v664, %v761
        %v763 = vpop.f32.mrb[0].mxu0
        %v764 = vpop.f32.mrb[0].mxu0
        %v765 = vadd.f32 %v664, %v764
        %v766 = vpop.f32.mrb[0].mxu0
        %767 = vmatprep.mubr.bf16.mxu0 0
        %768 = vmatmul.mubr.bf16.gmra.mrb[0].mxu0 %v692
        %v769 = vpop.f32.mrb[0].mxu0
        %v770 = vadd.f32 %v664, %v769
        %v771 = vpop.f32.mrb[0].mxu0
        %v772 = vpop.f32.mrb[0].mxu0
        %v773 = vadd.f32 %v664, %v772
        %v774 = vpop.f32.mrb[0].mxu0
        %775 = vmatprep.mubr.bf16.mxu0 0
        %776 = vmatmul.mubr.bf16.gmra.mrb[0].mxu0 %v695
        %v777 = vpop.f32.mrb[0].mxu0
        %v778 = vadd.f32 %v664, %v777
        %v779 = vpop.f32.mrb[0].mxu0
        %v780 = vpop.f32.mrb[0].mxu0
        %v781 = vadd.f32 %v664, %v780
        %v782 = vpop.f32.mrb[0].mxu0
        %783 = vmatprep.mubr.bf16.mxu0 0
        %784 = vmatmul.mubr.bf16.gmra.mrb[0].mxu0 %v698
        %v785 = vpop.f32.mrb[0].mxu0
        %v786 = vadd.f32 %v664, %v785
        %v787 = vpop.f32.mrb[0].mxu0
        %v788 = vpop.f32.mrb[0].mxu0
        %v789 = vadd.f32 %v664, %v788
        %v790 = vpop.f32.mrb[0].mxu0
        %791 = vmatprep.mubr.bf16.mxu0 0
        %792 = vmatmul.mubr.bf16.gmra.mrb[0].mxu0 %v701
        %v793 = vpop.f32.mrb[0].mxu0
        %v794 = vadd.f32 %v664, %v793
        %v795 = vpop.f32.mrb[0].mxu0
        %v796 = vpop.f32.mrb[0].mxu0
        %v797 = vadd.f32 %v664, %v796
        %v798 = vpop.f32.mrb[0].mxu0
        %799 = vdwg.mxu0
        %v800 = vld [vmem:[#allocation5] sm:$0xff]
        %v801 = vld [vmem:[#allocation5 + $0x8] sm:$0xff]
        %v802 = vadd.f32 %v738, %v800
        %v803 = vadd.f32 %v741, %v801
        %v804 = vadd.f32 %v746, %v800
        %v805 = vadd.f32 %v749, %v801
        %v806 = vadd.f32 %v754, %v800
        %v807 = vadd.f32 %v757, %v801
        %v808 = vadd.f32 %v762, %v800
        %v809 = vadd.f32 %v765, %v801
        %v810 = vadd.f32 %v770, %v800
        %v811 = vadd.f32 %v773, %v801
        %v812 = vadd.f32 %v778, %v800
        %v813 = vadd.f32 %v781, %v801
        %v814 = vadd.f32 %v786, %v800
        %v815 = vadd.f32 %v789, %v801
        %v816 = vadd.f32 %v794, %v800
        %v817 = vadd.f32 %v797, %v801
        %v818 = vld [vmem:[%s4] sm:$0x1]
        %v819 = vld [vmem:[%s5] sm:$0x1]
        %820 = vadd.xlane.f32.xlu0 %v802
        %v821 = vpop.xlane.xlu0 %820
        %822 = vadd.xlane.f32.xlu0 %v803
        %v823 = vpop.xlane.xlu0 %822
        %824 = vadd.xlane.f32.xlu0 %v804
        %v825 = vpop.xlane.xlu0 %824
        %826 = vadd.xlane.f32.xlu0 %v805
        %v827 = vpop.xlane.xlu0 %826
        %828 = vadd.xlane.f32.xlu0 %v806
        %v829 = vpop.xlane.xlu0 %828
        %830 = vadd.xlane.f32.xlu0 %v807
        %v831 = vpop.xlane.xlu0 %830
        %832 = vadd.xlane.f32.xlu0 %v808
        %v833 = vpop.xlane.xlu0 %832
        %834 = vadd.xlane.f32.xlu0 %v809
        %v835 = vpop.xlane.xlu0 %834
        %836 = vadd.xlane.f32.xlu0 %v810
        %v837 = vpop.xlane.xlu0 %836
        %838 = vadd.xlane.f32.xlu0 %v811
        %v839 = vpop.xlane.xlu0 %838
        %840 = vadd.xlane.f32.xlu0 %v812
        %v841 = vpop.xlane.xlu0 %840
        %842 = vadd.xlane.f32.xlu0 %v813
        %v843 = vpop.xlane.xlu0 %842
        %844 = vadd.xlane.f32.xlu0 %v814
        %v845 = vpop.xlane.xlu0 %844
        %846 = vadd.xlane.f32.xlu0 %v815
        %v847 = vpop.xlane.xlu0 %846
        %848 = vadd.xlane.f32.xlu0 %v816
        %v849 = vpop.xlane.xlu0 %848
        %850 = vadd.xlane.f32.xlu0 %v817
        %v851 = vpop.xlane.xlu0 %850
        %v852 = vrcp.pop 128.0
        %v853 = vmul.f32 %v821, %v852
        %v854 = vmul.f32 %v823, %v852
        %v855 = vmul.f32 %v825, %v852
        %v856 = vmul.f32 %v827, %v852
        %v857 = vmul.f32 %v829, %v852
        %v858 = vmul.f32 %v831, %v852
        %v859 = vmul.f32 %v833, %v852
        %v860 = vmul.f32 %v835, %v852
        %v861 = vmul.f32 %v837, %v852
        %v862 = vmul.f32 %v839, %v852
        %v863 = vmul.f32 %v841, %v852
        %v864 = vmul.f32 %v843, %v852
        %v865 = vmul.f32 %v845, %v852
        %v866 = vmul.f32 %v847, %v852
        %v867 = vmul.f32 %v849, %v852
        %v868 = vmul.f32 %v851, %v852
        %v869 = vsub.f32 %v802, %v853
        %v870 = vsub.f32 %v803, %v854
        %v871 = vsub.f32 %v804, %v855
        %v872 = vsub.f32 %v805, %v856
        %v873 = vsub.f32 %v806, %v857
        %v874 = vsub.f32 %v807, %v858
        %v875 = vsub.f32 %v808, %v859
        %v876 = vsub.f32 %v809, %v860
        %v877 = vsub.f32 %v810, %v861
        %v878 = vsub.f32 %v811, %v862
        %v879 = vsub.f32 %v812, %v863
        %v880 = vsub.f32 %v813, %v864
        %v881 = vsub.f32 %v814, %v865
        %v882 = vsub.f32 %v815, %v866
        %v883 = vsub.f32 %v816, %v867
        %v884 = vsub.f32 %v817, %v868
        %v885 = vmul.f32 %v869, %v869
        %v886 = vmul.f32 %v870, %v870
        %v887 = vmul.f32 %v871, %v871
        %v888 = vmul.f32 %v872, %v872
        %v889 = vmul.f32 %v873, %v873
        %v890 = vmul.f32 %v874, %v874
        %v891 = vmul.f32 %v875, %v875
        %v892 = vmul.f32 %v876, %v876
        %v893 = vmul.f32 %v877, %v877
        %v894 = vmul.f32 %v878, %v878
        %v895 = vmul.f32 %v879, %v879
        %v896 = vmul.f32 %v880, %v880
        %v897 = vmul.f32 %v881, %v881
        %v898 = vmul.f32 %v882, %v882
        %v899 = vmul.f32 %v883, %v883
        %v900 = vmul.f32 %v884, %v884
        %901 = vadd.xlane.f32.xlu0 %v885
        %v902 = vpop.xlane.xlu0 %901
        %903 = vadd.xlane.f32.xlu0 %v886
        %v904 = vpop.xlane.xlu0 %903
        %905 = vadd.xlane.f32.xlu0 %v887
        %v906 = vpop.xlane.xlu0 %905
        %907 = vadd.xlane.f32.xlu0 %v888
        %v908 = vpop.xlane.xlu0 %907
        %909 = vadd.xlane.f32.xlu0 %v889
        %v910 = vpop.xlane.xlu0 %909
        %911 = vadd.xlane.f32.xlu0 %v890
        %v912 = vpop.xlane.xlu0 %911
        %913 = vadd.xlane.f32.xlu0 %v891
        %v914 = vpop.xlane.xlu0 %913
        %915 = vadd.xlane.f32.xlu0 %v892
        %v916 = vpop.xlane.xlu0 %915
        %917 = vadd.xlane.f32.xlu0 %v893
        %v918 = vpop.xlane.xlu0 %917
        %919 = vadd.xlane.f32.xlu0 %v894
        %v920 = vpop.xlane.xlu0 %919
        %921 = vadd.xlane.f32.xlu0 %v895
        %v922 = vpop.xlane.xlu0 %921
        %923 = vadd.xlane.f32.xlu0 %v896
        %v924 = vpop.xlane.xlu0 %923
        %925 = vadd.xlane.f32.xlu0 %v897
        %v926 = vpop.xlane.xlu0 %925
        %927 = vadd.xlane.f32.xlu0 %v898
        %v928 = vpop.xlane.xlu0 %927
        %929 = vadd.xlane.f32.xlu0 %v899
        %v930 = vpop.xlane.xlu0 %929
        %931 = vadd.xlane.f32.xlu0 %v900
        %v932 = vpop.xlane.xlu0 %931
        %v933 = vmul.f32 %v902, %v852
        %v934 = vmul.f32 %v904, %v852
        %v935 = vmul.f32 %v906, %v852
        %v936 = vmul.f32 %v908, %v852
        %v937 = vmul.f32 %v910, %v852
        %v938 = vmul.f32 %v912, %v852
        %v939 = vmul.f32 %v914, %v852
        %v940 = vmul.f32 %v916, %v852
        %v941 = vmul.f32 %v918, %v852
        %v942 = vmul.f32 %v920, %v852
        %v943 = vmul.f32 %v922, %v852
        %v944 = vmul.f32 %v924, %v852
        %v945 = vmul.f32 %v926, %v852
        %v946 = vmul.f32 %v928, %v852
        %v947 = vmul.f32 %v930, %v852
        %v948 = vmul.f32 %v932, %v852
        %v949 = vadd.f32 %v933, 1e-05
        %v950 = vadd.f32 %v934, 1e-05
        %v951 = vadd.f32 %v935, 1e-05
        %v952 = vadd.f32 %v936, 1e-05
        %v953 = vadd.f32 %v937, 1e-05
        %v954 = vadd.f32 %v938, 1e-05
        %v955 = vadd.f32 %v939, 1e-05
        %v956 = vadd.f32 %v940, 1e-05
        %v957 = vadd.f32 %v941, 1e-05
        %v958 = vadd.f32 %v942, 1e-05
        %v959 = vadd.f32 %v943, 1e-05
        %v960 = vadd.f32 %v944, 1e-05
        %v961 = vadd.f32 %v945, 1e-05
        %v962 = vadd.f32 %v946, 1e-05
        %v963 = vadd.f32 %v947, 1e-05
        %v964 = vadd.f32 %v948, 1e-05
        %v965 = vrsqrt.pop %v949
        %v966 = vrsqrt.pop %v950
        %v967 = vrsqrt.pop %v951
        %v968 = vrsqrt.pop %v952
        %v969 = vrsqrt.pop %v953
        %v970 = vrsqrt.pop %v954
        %v971 = vrsqrt.pop %v955
        %v972 = vrsqrt.pop %v956
        %v973 = vrsqrt.pop %v957
        %v974 = vrsqrt.pop %v958
        %v975 = vrsqrt.pop %v959
        %v976 = vrsqrt.pop %v960
        %v977 = vrsqrt.pop %v961
        %v978 = vrsqrt.pop %v962
        %v979 = vrsqrt.pop %v963
        %v980 = vrsqrt.pop %v964
        %v981 = vmul.f32 %v869, %v965
        %v982 = vmul.f32 %v870, %v966
        %v983 = vmul.f32 %v871, %v967
        %v984 = vmul.f32 %v872, %v968
        %v985 = vmul.f32 %v873, %v969
        %v986 = vmul.f32 %v874, %v970
        %v987 = vmul.f32 %v875, %v971
        %v988 = vmul.f32 %v876, %v972
        %v989 = vmul.f32 %v877, %v973
        %v990 = vmul.f32 %v878, %v974
        %v991 = vmul.f32 %v879, %v975
        %v992 = vmul.f32 %v880, %v976
        %v993 = vmul.f32 %v881, %v977
        %v994 = vmul.f32 %v882, %v978
        %v995 = vmul.f32 %v883, %v979
        %v996 = vmul.f32 %v884, %v980
        %v998 = vlaneseq
        %v999 = vshrl.u32 %v998, 7
        %v1000 = vsub.s32 0, %v999
        %v1001 = vrot.slane %v818, %v1000
        %v1003 = vmul.f32 %v981, %v1001
        %v1004 = vmul.f32 %v982, %v1001
        %v1005 = vmul.f32 %v983, %v1001
        %v1006 = vmul.f32 %v984, %v1001
        %v1007 = vmul.f32 %v985, %v1001
        %v1008 = vmul.f32 %v986, %v1001
        %v1009 = vmul.f32 %v987, %v1001
        %v1010 = vmul.f32 %v988, %v1001
        %v1011 = vmul.f32 %v989, %v1001
        %v1012 = vmul.f32 %v990, %v1001
        %v1013 = vmul.f32 %v991, %v1001
        %v1014 = vmul.f32 %v992, %v1001
        %v1015 = vmul.f32 %v993, %v1001
        %v1016 = vmul.f32 %v994, %v1001
        %v1017 = vmul.f32 %v995, %v1001
        %v1018 = vmul.f32 %v996, %v1001
        %v1020 = vlaneseq
        %v1021 = vshrl.u32 %v1020, 7
        %v1022 = vsub.s32 0, %v1021
        %v1023 = vrot.slane %v819, %v1022
        %v1025 = vadd.f32 %v1003, %v1023
        %v1026 = vadd.f32 %v1004, %v1023
        %v1027 = vadd.f32 %v1005, %v1023
        %v1028 = vadd.f32 %v1006, %v1023
        %v1029 = vadd.f32 %v1007, %v1023
        %v1030 = vadd.f32 %v1008, %v1023
        %v1031 = vadd.f32 %v1009, %v1023
        %v1032 = vadd.f32 %v1010, %v1023
        %v1033 = vadd.f32 %v1011, %v1023
        %v1034 = vadd.f32 %v1012, %v1023
        %v1035 = vadd.f32 %v1013, %v1023
        %v1036 = vadd.f32 %v1014, %v1023
        %v1037 = vadd.f32 %v1015, %v1023
        %v1038 = vadd.f32 %v1016, %v1023
        %v1039 = vadd.f32 %v1017, %v1023
        %v1040 = vadd.f32 %v1018, %v1023
        %v1041 = vpack.c.bf16 %v1026, %v1025
        %v1042 = vpack.c.bf16 %v1028, %v1027
        %v1043 = vpack.c.bf16 %v1030, %v1029
        %v1044 = vpack.c.bf16 %v1032, %v1031
        %v1045 = vpack.c.bf16 %v1034, %v1033
        %v1046 = vpack.c.bf16 %v1036, %v1035
        %v1047 = vpack.c.bf16 %v1038, %v1037
        %v1048 = vpack.c.bf16 %v1040, %v1039
        %v1049 = vld [vmem:[#allocation8] sm:$0xff]
        %v1050 = vld [vmem:[#allocation8 + $0x8] sm:$0xf]
        %v1051 = vld [vmem:[#allocation8 + $0xc] sm:$0xff]
        %v1052 = vld [vmem:[#allocation8 + $0x14] sm:$0xf]
        %v1053 = vld [vmem:[#allocation8 + $0x18] sm:$0xff]
        %v1054 = vld [vmem:[#allocation8 + $0x20] sm:$0xf]
        %v1055 = vld [vmem:[#allocation8 + $0x24] sm:$0xff]
        %v1056 = vld [vmem:[#allocation8 + $0x2c] sm:$0xf]
        %v1057 = vld [vmem:[#allocation8 + $0x30] sm:$0xff]
        %v1058 = vld [vmem:[#allocation8 + $0x38] sm:$0xf]
        %v1059 = vld [vmem:[#allocation8 + $0x3c] sm:$0xff]
        %v1060 = vld [vmem:[#allocation8 + $0x44] sm:$0xf]
        %v1061 = vld [vmem:[#allocation8 + $0x48] sm:$0xff]
        %v1062 = vld [vmem:[#allocation8 + $0x50] sm:$0xf]
        %v1063 = vld [vmem:[#allocation8 + $0x54] sm:$0xff]
        %v1064 = vld [vmem:[#allocation8 + $0x5c] sm:$0xf]
        %v1065 = vld [vmem:[#allocation8 + $0x60] sm:$0xff]
        %v1066 = vld [vmem:[#allocation8 + $0x68] sm:$0xf]
        %v1067 = vld [vmem:[#allocation8 + $0x6c] sm:$0xff]
        %v1068 = vld [vmem:[#allocation8 + $0x74] sm:$0xf]
        %v1069 = vld [vmem:[#allocation8 + $0x78] sm:$0xff]
        %v1070 = vld [vmem:[#allocation8 + $0x80] sm:$0xf]
        %v1071 = vld [vmem:[#allocation8 + $0x84] sm:$0xff]
        %v1072 = vld [vmem:[#allocation8 + $0x8c] sm:$0xf]
        %v1073 = vld [vmem:[#allocation8 + $0x90] sm:$0xff]
        %v1074 = vld [vmem:[#allocation8 + $0x98] sm:$0xf]
        %v1075 = vld [vmem:[#allocation8 + $0x9c] sm:$0xff]
        %v1076 = vld [vmem:[#allocation8 + $0xa4] sm:$0xf]
        %v1077 = vld [vmem:[#allocation8 + $0xa8] sm:$0xff]
        %v1078 = vld [vmem:[#allocation8 + $0xb0] sm:$0xf]
        %v1079 = vld [vmem:[#allocation8 + $0xb4] sm:$0xff]
        %v1080 = vld [vmem:[#allocation8 + $0xbc] sm:$0xf]
        %v1081 = vld [vmem:[%s7] sm:$0x7]
        %v1083 = vlaneseq
        %v1084 = vshrl.u32 %v1083, 7
        %v1085 = vsub.s32 0, %v1084
        %v1086 = vrot.slane %v1081, %v1085
        %v1087 = vlaneseq
        %v1088 = vshrl.u32 %v1087, 7
        %v1089 = vsub.s32 1, %v1088
        %v1090 = vrot.slane %v1081, %v1089
        %v1091 = vlaneseq
        %v1092 = vshrl.u32 %v1091, 7
        %v1093 = vsub.s32 2, %v1092
        %v1094 = vrot.slane %v1081, %v1093
        %v1130 = vunpack.c.l.b16 %v1049
        %v1131 = vunpack.c.h.b16 %v1049
        %v1132 = vunpack.c.l.b16 %v1050
        %v1133 = vunpack.c.l.b16 %v1051
        %v1134 = vunpack.c.h.b16 %v1051
        %v1135 = vunpack.c.l.b16 %v1052
        %v1136 = vunpack.c.l.b16 %v1053
        %v1137 = vunpack.c.h.b16 %v1053
        %v1138 = vunpack.c.l.b16 %v1054
        %v1139 = vunpack.c.l.b16 %v1055
        %v1140 = vunpack.c.h.b16 %v1055
        %v1141 = vunpack.c.l.b16 %v1056
        %v1142 = vunpack.c.l.b16 %v1057
        %v1143 = vunpack.c.h.b16 %v1057
        %v1144 = vunpack.c.l.b16 %v1058
        %v1145 = vunpack.c.l.b16 %v1059
        %v1146 = vunpack.c.h.b16 %v1059
        %v1147 = vunpack.c.l.b16 %v1060
        %v1148 = vunpack.c.l.b16 %v1061
        %v1149 = vunpack.c.h.b16 %v1061
        %v1150 = vunpack.c.l.b16 %v1062
        %v1151 = vunpack.c.l.b16 %v1063
        %v1152 = vunpack.c.h.b16 %v1063
        %v1153 = vunpack.c.l.b16 %v1064
        %v1154 = vunpack.c.l.b16 %v1065
        %v1155 = vunpack.c.h.b16 %v1065
        %v1156 = vunpack.c.l.b16 %v1066
        %v1157 = vunpack.c.l.b16 %v1067
        %v1158 = vunpack.c.h.b16 %v1067
        %v1159 = vunpack.c.l.b16 %v1068
        %v1160 = vunpack.c.l.b16 %v1069
        %v1161 = vunpack.c.h.b16 %v1069
        %v1162 = vunpack.c.l.b16 %v1070
        %v1163 = vunpack.c.l.b16 %v1071
        %v1164 = vunpack.c.h.b16 %v1071
        %v1165 = vunpack.c.l.b16 %v1072
        %v1166 = vunpack.c.l.b16 %v1073
        %v1167 = vunpack.c.h.b16 %v1073
        %v1168 = vunpack.c.l.b16 %v1074
        %v1169 = vunpack.c.l.b16 %v1075
        %v1170 = vunpack.c.h.b16 %v1075
        %v1171 = vunpack.c.l.b16 %v1076
        %v1172 = vunpack.c.l.b16 %v1077
        %v1173 = vunpack.c.h.b16 %v1077
        %v1174 = vunpack.c.l.b16 %v1078
        %v1175 = vunpack.c.l.b16 %v1079
        %v1176 = vunpack.c.h.b16 %v1079
        %v1177 = vunpack.c.l.b16 %v1080
        %v1178 = vpack.c.b16 %v1133, %v1130
        %v1179 = vpack.c.b16 %v1134, %v1131
        %v1180 = vpack.c.b16 %v1135, %v1132
        %v1181 = vpack.c.b16 %v1139, %v1136
        %v1182 = vpack.c.b16 %v1140, %v1137
        %v1183 = vpack.c.b16 %v1141, %v1138
        %v1184 = vpack.c.b16 %v1145, %v1142
        %v1185 = vpack.c.b16 %v1146, %v1143
        %v1186 = vpack.c.b16 %v1147, %v1144
        %v1187 = vpack.c.b16 %v1151, %v1148
        %v1188 = vpack.c.b16 %v1152, %v1149
        %v1189 = vpack.c.b16 %v1153, %v1150
        %v1190 = vpack.c.b16 %v1157, %v1154
        %v1191 = vpack.c.b16 %v1158, %v1155
        %v1192 = vpack.c.b16 %v1159, %v1156
        %v1193 = vpack.c.b16 %v1163, %v1160
        %v1194 = vpack.c.b16 %v1164, %v1161
        %v1195 = vpack.c.b16 %v1165, %v1162
        %v1196 = vpack.c.b16 %v1169, %v1166
        %v1197 = vpack.c.b16 %v1170, %v1167
        %v1198 = vpack.c.b16 %v1171, %v1168
        %v1199 = vpack.c.b16 %v1175, %v1172
        %v1200 = vpack.c.b16 %v1176, %v1173
        %v1201 = vpack.c.b16 %v1177, %v1174
        %1226 = vmatprep.subr.bf16.mxu0 %v1179
        %1227 = vmatpush1.bf16.msra.mxu0 %v1178
        %1228 = vmatprep.subr.bf16.mxu0 %v1182
        %1229 = vmatpush1.bf16.msra.mxu0 %v1181
        %1230 = vmatprep.subr.bf16.mxu0 %v1185
        %1231 = vmatpush1.bf16.msra.mxu0 %v1184
        %1232 = vmatprep.subr.bf16.mxu0 %v1188
        %1233 = vmatpush1.bf16.msra.mxu0 %v1187
        %1234 = vmatprep.subr.bf16.mxu0 %v1191
        %1235 = vmatpush1.bf16.msra.mxu0 %v1190
        %1236 = vmatprep.subr.bf16.mxu0 %v1194
        %1237 = vmatpush1.bf16.msra.mxu0 %v1193
        %1238 = vmatprep.subr.bf16.mxu0 %v1197
        %1239 = vmatpush1.bf16.msra.mxu0 %v1196
        %1240 = vmatprep.subr.bf16.mxu0 %v1200
        %1241 = vmatpush1.bf16.msra.mxu0 %v1199
        %1242 = vmatprep.subr.bf16.mxu0 0
        %1243 = vmatpush1.bf16.msra.mxu0 0
        %1244 = vmatprep.subr.bf16.mxu0 0
        %1245 = vmatpush1.bf16.msra.mxu0 0
        %1246 = vmatprep.subr.bf16.mxu0 0
        %1247 = vmatpush1.bf16.msra.mxu0 0
        %1248 = vmatprep.subr.bf16.mxu0 0
        %1249 = vmatpush1.bf16.msra.mxu0 0
        %1250 = vmatprep.subr.bf16.mxu0 0
        %1251 = vmatpush1.bf16.msra.mxu0 0
        %1252 = vmatprep.subr.bf16.mxu0 0
        %1253 = vmatpush1.bf16.msra.mxu0 0
        %1254 = vmatprep.subr.bf16.mxu0 0
        %1255 = vmatpush1.bf16.msra.mxu0 0
        %1256 = vmatprep.subr.bf16.mxu0 0
        %1257 = vmatpush1.bf16.msra.mxu0 0
        %1258 = vmatprep.mubr.bf16.mxu0 0
        %1259 = vmatmul.mubr.bf16.gmra.mrb[0].mxu0 %v1041
        %v1260 = vpop.f32.mrb[0].mxu0
        %v1261 = vadd.f32 %v1086, %v1260
        %v1262 = vpop.f32.mrb[0].mxu0
        %v1263 = vadd.f32 %v1090, %v1262
        %v1264 = vpop.f32.mrb[0].mxu0
        %v1265 = vadd.f32 %v1086, %v1264
        %v1266 = vpop.f32.mrb[0].mxu0
        %v1267 = vadd.f32 %v1090, %v1266
        %1268 = vmatprep.mubr.bf16.mxu0 0
        %1269 = vmatmul.mubr.bf16.gmra.mrb[0].mxu0 %v1042
        %v1270 = vpop.f32.mrb[0].mxu0
        %v1271 = vadd.f32 %v1086, %v1270
        %v1272 = vpop.f32.mrb[0].mxu0
        %v1273 = vadd.f32 %v1090, %v1272
        %v1274 = vpop.f32.mrb[0].mxu0
        %v1275 = vadd.f32 %v1086, %v1274
        %v1276 = vpop.f32.mrb[0].mxu0
        %v1277 = vadd.f32 %v1090, %v1276
        %1278 = vmatprep.mubr.bf16.mxu0 0
        %1279 = vmatmul.mubr.bf16.gmra.mrb[0].mxu0 %v1043
        %v1280 = vpop.f32.mrb[0].mxu0
        %v1281 = vadd.f32 %v1086, %v1280
        %v1282 = vpop.f32.mrb[0].mxu0
        %v1283 = vadd.f32 %v1090, %v1282
        %v1284 = vpop.f32.mrb[0].mxu0
        %v1285 = vadd.f32 %v1086, %v1284
        %v1286 = vpop.f32.mrb[0].mxu0
        %v1287 = vadd.f32 %v1090, %v1286
        %1288 = vmatprep.mubr.bf16.mxu0 0
        %1289 = vmatmul.mubr.bf16.gmra.mrb[0].mxu0 %v1044
        %v1290 = vpop.f32.mrb[0].mxu0
        %v1291 = vadd.f32 %v1086, %v1290
        %v1292 = vpop.f32.mrb[0].mxu0
        %v1293 = vadd.f32 %v1090, %v1292
        %v1294 = vpop.f32.mrb[0].mxu0
        %v1295 = vadd.f32 %v1086, %v1294
        %v1296 = vpop.f32.mrb[0].mxu0
        %v1297 = vadd.f32 %v1090, %v1296
        %1298 = vmatprep.mubr.bf16.mxu0 0
        %1299 = vmatmul.mubr.bf16.gmra.mrb[0].mxu0 %v1045
        %v1300 = vpop.f32.mrb[0].mxu0
        %v1301 = vadd.f32 %v1086, %v1300
        %v1302 = vpop.f32.mrb[0].mxu0
        %v1303 = vadd.f32 %v1090, %v1302
        %v1304 = vpop.f32.mrb[0].mxu0
        %v1305 = vadd.f32 %v1086, %v1304
        %v1306 = vpop.f32.mrb[0].mxu0
        %v1307 = vadd.f32 %v1090, %v1306
        %1308 = vmatprep.mubr.bf16.mxu0 0
        %1309 = vmatmul.mubr.bf16.gmra.mrb[0].mxu0 %v1046
        %v1310 = vpop.f32.mrb[0].mxu0
        %v1311 = vadd.f32 %v1086, %v1310
        %v1312 = vpop.f32.mrb[0].mxu0
        %v1313 = vadd.f32 %v1090, %v1312
        %v1314 = vpop.f32.mrb[0].mxu0
        %v1315 = vadd.f32 %v1086, %v1314
        %v1316 = vpop.f32.mrb[0].mxu0
        %v1317 = vadd.f32 %v1090, %v1316
        %1318 = vmatprep.mubr.bf16.mxu0 0
        %1319 = vmatmul.mubr.bf16.gmra.mrb[0].mxu0 %v1047
        %v1320 = vpop.f32.mrb[0].mxu0
        %v1321 = vadd.f32 %v1086, %v1320
        %v1322 = vpop.f32.mrb[0].mxu0
        %v1323 = vadd.f32 %v1090, %v1322
        %v1324 = vpop.f32.mrb[0].mxu0
        %v1325 = vadd.f32 %v1086, %v1324
        %v1326 = vpop.f32.mrb[0].mxu0
        %v1327 = vadd.f32 %v1090, %v1326
        %1328 = vmatprep.mubr.bf16.mxu0 0
        %1329 = vmatmul.mubr.bf16.gmra.mrb[0].mxu0 %v1048
        %v1330 = vpop.f32.mrb[0].mxu0
        %v1331 = vadd.f32 %v1086, %v1330
        %v1332 = vpop.f32.mrb[0].mxu0
        %v1333 = vadd.f32 %v1090, %v1332
        %v1334 = vpop.f32.mrb[0].mxu0
        %v1335 = vadd.f32 %v1086, %v1334
        %v1336 = vpop.f32.mrb[0].mxu0
        %v1337 = vadd.f32 %v1090, %v1336
        %1338 = vdwg.mxu0
        %1339 = vmatprep.subr.bf16.mxu0 0
        %1340 = vmatpush1.bf16.msra.mxu0 %v1180
        %1341 = vmatprep.subr.bf16.mxu0 0
        %1342 = vmatpush1.bf16.msra.mxu0 %v1183
        %1343 = vmatprep.subr.bf16.mxu0 0
        %1344 = vmatpush1.bf16.msra.mxu0 %v1186
        %1345 = vmatprep.subr.bf16.mxu0 0
        %1346 = vmatpush1.bf16.msra.mxu0 %v1189
        %1347 = vmatprep.subr.bf16.mxu0 0
        %1348 = vmatpush1.bf16.msra.mxu0 %v1192
        %1349 = vmatprep.subr.bf16.mxu0 0
        %1350 = vmatpush1.bf16.msra.mxu0 %v1195
        %1351 = vmatprep.subr.bf16.mxu0 0
        %1352 = vmatpush1.bf16.msra.mxu0 %v1198
        %1353 = vmatprep.subr.bf16.mxu0 0
        %1354 = vmatpush1.bf16.msra.mxu0 %v1201
        %1355 = vmatprep.subr.bf16.mxu0 0
        %1356 = vmatpush1.bf16.msra.mxu0 0
        %1357 = vmatprep.subr.bf16.mxu0 0
        %1358 = vmatpush1.bf16.msra.mxu0 0
        %1359 = vmatprep.subr.bf16.mxu0 0
        %1360 = vmatpush1.bf16.msra.mxu0 0
        %1361 = vmatprep.subr.bf16.mxu0 0
        %1362 = vmatpush1.bf16.msra.mxu0 0
        %1363 = vmatprep.subr.bf16.mxu0 0
        %1364 = vmatpush1.bf16.msra.mxu0 0
        %1365 = vmatprep.subr.bf16.mxu0 0
        %1366 = vmatpush1.bf16.msra.mxu0 0
        %1367 = vmatprep.subr.bf16.mxu0 0
        %1368 = vmatpush1.bf16.msra.mxu0 0
        %1369 = vmatprep.subr.bf16.mxu0 0
        %1370 = vmatpush1.bf16.msra.mxu0 0
        %1371 = vmatprep.mubr.bf16.mxu0 0
        %1372 = vmatmul.mubr.bf16.gmra.mrb[0].mxu0 %v1041
        %v1373 = vpop.f32.mrb[0].mxu0
        %v1374 = vadd.f32 %v1094, %v1373
        %v1375 = vpop.f32.mrb[0].mxu0
        %v1376 = vpop.f32.mrb[0].mxu0
        %v1377 = vadd.f32 %v1094, %v1376
        %v1378 = vpop.f32.mrb[0].mxu0
        %1379 = vmatprep.mubr.bf16.mxu0 0
        %1380 = vmatmul.mubr.bf16.gmra.mrb[0].mxu0 %v1042
        %v1381 = vpop.f32.mrb[0].mxu0
        %v1382 = vadd.f32 %v1094, %v1381
        %v1383 = vpop.f32.mrb[0].mxu0
        %v1384 = vpop.f32.mrb[0].mxu0
        %v1385 = vadd.f32 %v1094, %v1384
        %v1386 = vpop.f32.mrb[0].mxu0
        %1387 = vmatprep.mubr.bf16.mxu0 0
        %1388 = vmatmul.mubr.bf16.gmra.mrb[0].mxu0 %v1043
        %v1389 = vpop.f32.mrb[0].mxu0
        %v1390 = vadd.f32 %v1094, %v1389
        %v1391 = vpop.f32.mrb[0].mxu0
        %v1392 = vpop.f32.mrb[0].mxu0
        %v1393 = vadd.f32 %v1094, %v1392
        %v1394 = vpop.f32.mrb[0].mxu0
        %1395 = vmatprep.mubr.bf16.mxu0 0
        %1396 = vmatmul.mubr.bf16.gmra.mrb[0].mxu0 %v1044
        %v1397 = vpop.f32.mrb[0].mxu0
        %v1398 = vadd.f32 %v1094, %v1397
        %v1399 = vpop.f32.mrb[0].mxu0
        %v1400 = vpop.f32.mrb[0].mxu0
        %v1401 = vadd.f32 %v1094, %v1400
        %v1402 = vpop.f32.mrb[0].mxu0
        %1403 = vmatprep.mubr.bf16.mxu0 0
        %1404 = vmatmul.mubr.bf16.gmra.mrb[0].mxu0 %v1045
        %v1405 = vpop.f32.mrb[0].mxu0
        %v1406 = vadd.f32 %v1094, %v1405
        %v1407 = vpop.f32.mrb[0].mxu0
        %v1408 = vpop.f32.mrb[0].mxu0
        %v1409 = vadd.f32 %v1094, %v1408
        %v1410 = vpop.f32.mrb[0].mxu0
        %1411 = vmatprep.mubr.bf16.mxu0 0
        %1412 = vmatmul.mubr.bf16.gmra.mrb[0].mxu0 %v1046
        %v1413 = vpop.f32.mrb[0].mxu0
        %v1414 = vadd.f32 %v1094, %v1413
        %v1415 = vpop.f32.mrb[0].mxu0
        %v1416 = vpop.f32.mrb[0].mxu0
        %v1417 = vadd.f32 %v1094, %v1416
        %v1418 = vpop.f32.mrb[0].mxu0
        %1419 = vmatprep.mubr.bf16.mxu0 0
        %1420 = vmatmul.mubr.bf16.gmra.mrb[0].mxu0 %v1047
        %v1421 = vpop.f32.mrb[0].mxu0
        %v1422 = vadd.f32 %v1094, %v1421
        %v1423 = vpop.f32.mrb[0].mxu0
        %v1424 = vpop.f32.mrb[0].mxu0
        %v1425 = vadd.f32 %v1094, %v1424
        %v1426 = vpop.f32.mrb[0].mxu0
        %1427 = vmatprep.mubr.bf16.mxu0 0
        %1428 = vmatmul.mubr.bf16.gmra.mrb[0].mxu0 %v1048
        %v1429 = vpop.f32.mrb[0].mxu0
        %v1430 = vadd.f32 %v1094, %v1429
        %v1431 = vpop.f32.mrb[0].mxu0
        %v1432 = vpop.f32.mrb[0].mxu0
        %v1433 = vadd.f32 %v1094, %v1432
        %v1434 = vpop.f32.mrb[0].mxu0
        %1435 = vdwg.mxu0
        %v1436 = vpack.c.bf16 %v1265, %v1261
        %v1437 = vpack.c.bf16 %v1275, %v1271
        %v1438 = vpack.c.bf16 %v1285, %v1281
        %v1439 = vpack.c.bf16 %v1295, %v1291
        %v1440 = vpack.c.bf16 %v1305, %v1301
        %v1441 = vpack.c.bf16 %v1315, %v1311
        %v1442 = vpack.c.bf16 %v1325, %v1321
        %v1443 = vpack.c.bf16 %v1335, %v1331
        %v1444 = vpack.c.bf16 %v1267, %v1263
        %v1445 = vpack.c.bf16 %v1277, %v1273
        %v1446 = vpack.c.bf16 %v1287, %v1283
        %v1447 = vpack.c.bf16 %v1297, %v1293
        %v1448 = vpack.c.bf16 %v1307, %v1303
        %v1449 = vpack.c.bf16 %v1317, %v1313
        %v1450 = vpack.c.bf16 %v1327, %v1323
        %v1451 = vpack.c.bf16 %v1337, %v1333
        %v1452 = vpack.c.bf16 %v1377, %v1374
        %v1453 = vpack.c.bf16 %v1385, %v1382
        %v1454 = vpack.c.bf16 %v1393, %v1390
        %v1455 = vpack.c.bf16 %v1401, %v1398
        %v1456 = vpack.c.bf16 %v1409, %v1406
        %v1457 = vpack.c.bf16 %v1417, %v1414
        %v1458 = vpack.c.bf16 %v1425, %v1422
        %v1459 = vpack.c.bf16 %v1433, %v1430
        %vm1460 = vcmask 523264
        %v1462 = vsel %vm1460, %v1436, 0
        %v1465 = vsel %vm1460, %v1444, 0
        %1467 = vmatprep.subr.bf16.mxu0 0
        %1468 = vmatpush1.bf16.xpose.msra.mxu0 %v1465
        %1469 = vmatprep.subr.bf16.mxu0 0
        %1470 = vmatpush1.bf16.xpose.msra.mxu0 0
        %1471 = vmatprep.subr.bf16.mxu0 0
        %1472 = vmatpush1.bf16.xpose.msra.mxu0 0
        %1473 = vmatprep.subr.bf16.mxu0 0
        %1474 = vmatpush1.bf16.xpose.msra.mxu0 0
        %1475 = vmatprep.subr.bf16.mxu0 0
        %1476 = vmatpush1.bf16.xpose.msra.mxu0 0
        %1477 = vmatprep.subr.bf16.mxu0 0
        %1478 = vmatpush1.bf16.xpose.msra.mxu0 0
        %1479 = vmatprep.subr.bf16.mxu0 0
        %1480 = vmatpush1.bf16.xpose.msra.mxu0 0
        %1481 = vmatprep.subr.bf16.mxu0 0
        %1482 = vmatpush1.bf16.xpose.msra.mxu0 0
        %1483 = vmatprep.subr.bf16.mxu0 0
        %1484 = vmatpush1.bf16.xpose.msra.mxu0 0
        %1485 = vmatprep.subr.bf16.mxu0 0
        %1486 = vmatpush1.bf16.xpose.msra.mxu0 0
        %1487 = vmatprep.subr.bf16.mxu0 0
        %1488 = vmatpush1.bf16.xpose.msra.mxu0 0
        %1489 = vmatprep.subr.bf16.mxu0 0
        %1490 = vmatpush1.bf16.xpose.msra.mxu0 0
        %1491 = vmatprep.subr.bf16.mxu0 0
        %1492 = vmatpush1.bf16.xpose.msra.mxu0 0
        %1493 = vmatprep.subr.bf16.mxu0 0
        %1494 = vmatpush1.bf16.xpose.msra.mxu0 0
        %1495 = vmatprep.subr.bf16.mxu0 0
        %1496 = vmatpush1.bf16.xpose.msra.mxu0 0
        %1497 = vmatprep.subr.bf16.mxu0 0
        %1498 = vmatpush1.bf16.xpose.msra.mxu0 0
        %1499 = vmatprep.mubr.bf16.mxu0 0
        %1500 = vmatmul.mubr.bf16.gmra.mrb[0].mxu0 %v1462
        %v1501 = vpop.f32.mrb[0].mxu0
        %v1502 = vadd.f32 0.0, %v1501
        %v1503 = vpop.f32.mrb[0].mxu0
        %v1504 = vpop.f32.mrb[0].mxu0
        %v1505 = vadd.f32 0.0, %v1504
        %v1506 = vpop.f32.mrb[0].mxu0
        %1507 = vdwg.mxu0
        %v1509 = vsel %vm1460, %v1437, 0
        %v1512 = vsel %vm1460, %v1445, 0
        %1514 = vmatprep.subr.bf16.mxu0 0
        %1515 = vmatpush1.bf16.xpose.msra.mxu0 %v1512
        %1516 = vmatprep.subr.bf16.mxu0 0
        %1517 = vmatpush1.bf16.xpose.msra.mxu0 0
        %1518 = vmatprep.subr.bf16.mxu0 0
        %1519 = vmatpush1.bf16.xpose.msra.mxu0 0
        %1520 = vmatprep.subr.bf16.mxu0 0
        %1521 = vmatpush1.bf16.xpose.msra.mxu0 0
        %1522 = vmatprep.subr.bf16.mxu0 0
        %1523 = vmatpush1.bf16.xpose.msra.mxu0 0
        %1524 = vmatprep.subr.bf16.mxu0 0
        %1525 = vmatpush1.bf16.xpose.msra.mxu0 0
        %1526 = vmatprep.subr.bf16.mxu0 0
        %1527 = vmatpush1.bf16.xpose.msra.mxu0 0
        %1528 = vmatprep.subr.bf16.mxu0 0
        %1529 = vmatpush1.bf16.xpose.msra.mxu0 0
        %1530 = vmatprep.subr.bf16.mxu0 0
        %1531 = vmatpush1.bf16.xpose.msra.mxu0 0
        %1532 = vmatprep.subr.bf16.mxu0 0
        %1533 = vmatpush1.bf16.xpose.msra.mxu0 0
        %1534 = vmatprep.subr.bf16.mxu0 0
        %1535 = vmatpush1.bf16.xpose.msra.mxu0 0
        %1536 = vmatprep.subr.bf16.mxu0 0
        %1537 = vmatpush1.bf16.xpose.msra.mxu0 0
        %1538 = vmatprep.subr.bf16.mxu0 0
        %1539 = vmatpush1.bf16.xpose.msra.mxu0 0
        %1540 = vmatprep.subr.bf16.mxu0 0
        %1541 = vmatpush1.bf16.xpose.msra.mxu0 0
        %1542 = vmatprep.subr.bf16.mxu0 0
        %1543 = vmatpush1.bf16.xpose.msra.mxu0 0
        %1544 = vmatprep.subr.bf16.mxu0 0
        %1545 = vmatpush1.bf16.xpose.msra.mxu0 0
        %1546 = vmatprep.mubr.bf16.mxu0 0
        %1547 = vmatmul.mubr.bf16.gmra.mrb[0].mxu0 %v1509
        %v1548 = vpop.f32.mrb[0].mxu0
        %v1549 = vadd.f32 0.0, %v1548
        %v1550 = vpop.f32.mrb[0].mxu0
        %v1551 = vpop.f32.mrb[0].mxu0
        %v1552 = vadd.f32 0.0, %v1551
        %v1553 = vpop.f32.mrb[0].mxu0
        %1554 = vdwg.mxu0
        %v1556 = vsel %vm1460, %v1438, 0
        %v1559 = vsel %vm1460, %v1446, 0
        %1561 = vmatprep.subr.bf16.mxu0 0
        %1562 = vmatpush1.bf16.xpose.msra.mxu0 %v1559
        %1563 = vmatprep.subr.bf16.mxu0 0
        %1564 = vmatpush1.bf16.xpose.msra.mxu0 0
        %1565 = vmatprep.subr.bf16.mxu0 0
        %1566 = vmatpush1.bf16.xpose.msra.mxu0 0
        %1567 = vmatprep.subr.bf16.mxu0 0
        %1568 = vmatpush1.bf16.xpose.msra.mxu0 0
        %1569 = vmatprep.subr.bf16.mxu0 0
        %1570 = vmatpush1.bf16.xpose.msra.mxu0 0
        %1571 = vmatprep.subr.bf16.mxu0 0
        %1572 = vmatpush1.bf16.xpose.msra.mxu0 0
        %1573 = vmatprep.subr.bf16.mxu0 0
        %1574 = vmatpush1.bf16.xpose.msra.mxu0 0
        %1575 = vmatprep.subr.bf16.mxu0 0
        %1576 = vmatpush1.bf16.xpose.msra.mxu0 0
        %1577 = vmatprep.subr.bf16.mxu0 0
        %1578 = vmatpush1.bf16.xpose.msra.mxu0 0
        %1579 = vmatprep.subr.bf16.mxu0 0
        %1580 = vmatpush1.bf16.xpose.msra.mxu0 0
        %1581 = vmatprep.subr.bf16.mxu0 0
        %1582 = vmatpush1.bf16.xpose.msra.mxu0 0
        %1583 = vmatprep.subr.bf16.mxu0 0
        %1584 = vmatpush1.bf16.xpose.msra.mxu0 0
        %1585 = vmatprep.subr.bf16.mxu0 0
        %1586 = vmatpush1.bf16.xpose.msra.mxu0 0
        %1587 = vmatprep.subr.bf16.mxu0 0
        %1588 = vmatpush1.bf16.xpose.msra.mxu0 0
        %1589 = vmatprep.subr.bf16.mxu0 0
        %1590 = vmatpush1.bf16.xpose.msra.mxu0 0
        %1591 = vmatprep.subr.bf16.mxu0 0
        %1592 = vmatpush1.bf16.xpose.msra.mxu0 0
        %1593 = vmatprep.mubr.bf16.mxu0 0
        %1594 = vmatmul.mubr.bf16.gmra.mrb[0].mxu0 %v1556
        %v1595 = vpop.f32.mrb[0].mxu0
        %v1596 = vadd.f32 0.0, %v1595
        %v1597 = vpop.f32.mrb[0].mxu0
        %v1598 = vpop.f32.mrb[0].mxu0
        %v1599 = vadd.f32 0.0, %v1598
        %v1600 = vpop.f32.mrb[0].mxu0
        %1601 = vdwg.mxu0
        %v1603 = vsel %vm1460, %v1439, 0
        %v1606 = vsel %vm1460, %v1447, 0
        %1608 = vmatprep.subr.bf16.mxu0 0
        %1609 = vmatpush1.bf16.xpose.msra.mxu0 %v1606
        %1610 = vmatprep.subr.bf16.mxu0 0
        %1611 = vmatpush1.bf16.xpose.msra.mxu0 0
        %1612 = vmatprep.subr.bf16.mxu0 0
        %1613 = vmatpush1.bf16.xpose.msra.mxu0 0
        %1614 = vmatprep.subr.bf16.mxu0 0
        %1615 = vmatpush1.bf16.xpose.msra.mxu0 0
        %1616 = vmatprep.subr.bf16.mxu0 0
        %1617 = vmatpush1.bf16.xpose.msra.mxu0 0
        %1618 = vmatprep.subr.bf16.mxu0 0
        %1619 = vmatpush1.bf16.xpose.msra.mxu0 0
        %1620 = vmatprep.subr.bf16.mxu0 0
        %1621 = vmatpush1.bf16.xpose.msra.mxu0 0
        %1622 = vmatprep.subr.bf16.mxu0 0
        %1623 = vmatpush1.bf16.xpose.msra.mxu0 0
        %1624 = vmatprep.subr.bf16.mxu0 0
        %1625 = vmatpush1.bf16.xpose.msra.mxu0 0
        %1626 = vmatprep.subr.bf16.mxu0 0
        %1627 = vmatpush1.bf16.xpose.msra.mxu0 0
        %1628 = vmatprep.subr.bf16.mxu0 0
        %1629 = vmatpush1.bf16.xpose.msra.mxu0 0
        %1630 = vmatprep.subr.bf16.mxu0 0
        %1631 = vmatpush1.bf16.xpose.msra.mxu0 0
        %1632 = vmatprep.subr.bf16.mxu0 0
        %1633 = vmatpush1.bf16.xpose.msra.mxu0 0
        %1634 = vmatprep.subr.bf16.mxu0 0
        %1635 = vmatpush1.bf16.xpose.msra.mxu0 0
        %1636 = vmatprep.subr.bf16.mxu0 0
        %1637 = vmatpush1.bf16.xpose.msra.mxu0 0
        %1638 = vmatprep.subr.bf16.mxu0 0
        %1639 = vmatpush1.bf16.xpose.msra.mxu0 0
        %1640 = vmatprep.mubr.bf16.mxu0 0
        %1641 = vmatmul.mubr.bf16.gmra.mrb[0].mxu0 %v1603
        %v1642 = vpop.f32.mrb[0].mxu0
        %v1643 = vadd.f32 0.0, %v1642
        %v1644 = vpop.f32.mrb[0].mxu0
        %v1645 = vpop.f32.mrb[0].mxu0
        %v1646 = vadd.f32 0.0, %v1645
        %v1647 = vpop.f32.mrb[0].mxu0
        %1648 = vdwg.mxu0
        %v1650 = vsel %vm1460, %v1440, 0
        %v1653 = vsel %vm1460, %v1448, 0
        %1655 = vmatprep.subr.bf16.mxu0 0
        %1656 = vmatpush1.bf16.xpose.msra.mxu0 %v1653
        %1657 = vmatprep.subr.bf16.mxu0 0
        %1658 = vmatpush1.bf16.xpose.msra.mxu0 0
        %1659 = vmatprep.subr.bf16.mxu0 0
        %1660 = vmatpush1.bf16.xpose.msra.mxu0 0
        %1661 = vmatprep.subr.bf16.mxu0 0
        %1662 = vmatpush1.bf16.xpose.msra.mxu0 0
        %1663 = vmatprep.subr.bf16.mxu0 0
        %1664 = vmatpush1.bf16.xpose.msra.mxu0 0
        %1665 = vmatprep.subr.bf16.mxu0 0
        %1666 = vmatpush1.bf16.xpose.msra.mxu0 0
        %1667 = vmatprep.subr.bf16.mxu0 0
        %1668 = vmatpush1.bf16.xpose.msra.mxu0 0
        %1669 = vmatprep.subr.bf16.mxu0 0
        %1670 = vmatpush1.bf16.xpose.msra.mxu0 0
        %1671 = vmatprep.subr.bf16.mxu0 0
        %1672 = vmatpush1.bf16.xpose.msra.mxu0 0
        %1673 = vmatprep.subr.bf16.mxu0 0
        %1674 = vmatpush1.bf16.xpose.msra.mxu0 0
        %1675 = vmatprep.subr.bf16.mxu0 0
        %1676 = vmatpush1.bf16.xpose.msra.mxu0 0
        %1677 = vmatprep.subr.bf16.mxu0 0
        %1678 = vmatpush1.bf16.xpose.msra.mxu0 0
        %1679 = vmatprep.subr.bf16.mxu0 0
        %1680 = vmatpush1.bf16.xpose.msra.mxu0 0
        %1681 = vmatprep.subr.bf16.mxu0 0
        %1682 = vmatpush1.bf16.xpose.msra.mxu0 0
        %1683 = vmatprep.subr.bf16.mxu0 0
        %1684 = vmatpush1.bf16.xpose.msra.mxu0 0
        %1685 = vmatprep.subr.bf16.mxu0 0
        %1686 = vmatpush1.bf16.xpose.msra.mxu0 0
        %1687 = vmatprep.mubr.bf16.mxu0 0
        %1688 = vmatmul.mubr.bf16.gmra.mrb[0].mxu0 %v1650
        %v1689 = vpop.f32.mrb[0].mxu0
        %v1690 = vadd.f32 0.0, %v1689
        %v1691 = vpop.f32.mrb[0].mxu0
        %v1692 = vpop.f32.mrb[0].mxu0
        %v1693 = vadd.f32 0.0, %v1692
        %v1694 = vpop.f32.mrb[0].mxu0
        %1695 = vdwg.mxu0
        %v1697 = vsel %vm1460, %v1441, 0
        %v1700 = vsel %vm1460, %v1449, 0
        %1702 = vmatprep.subr.bf16.mxu0 0
        %1703 = vmatpush1.bf16.xpose.msra.mxu0 %v1700
        %1704 = vmatprep.subr.bf16.mxu0 0
        %1705 = vmatpush1.bf16.xpose.msra.mxu0 0
        %1706 = vmatprep.subr.bf16.mxu0 0
        %1707 = vmatpush1.bf16.xpose.msra.mxu0 0
        %1708 = vmatprep.subr.bf16.mxu0 0
        %1709 = vmatpush1.bf16.xpose.msra.mxu0 0
        %1710 = vmatprep.subr.bf16.mxu0 0
        %1711 = vmatpush1.bf16.xpose.msra.mxu0 0
        %1712 = vmatprep.subr.bf16.mxu0 0
        %1713 = vmatpush1.bf16.xpose.msra.mxu0 0
        %1714 = vmatprep.subr.bf16.mxu0 0
        %1715 = vmatpush1.bf16.xpose.msra.mxu0 0
        %1716 = vmatprep.subr.bf16.mxu0 0
        %1717 = vmatpush1.bf16.xpose.msra.mxu0 0
        %1718 = vmatprep.subr.bf16.mxu0 0
        %1719 = vmatpush1.bf16.xpose.msra.mxu0 0
        %1720 = vmatprep.subr.bf16.mxu0 0
        %1721 = vmatpush1.bf16.xpose.msra.mxu0 0
        %1722 = vmatprep.subr.bf16.mxu0 0
        %1723 = vmatpush1.bf16.xpose.msra.mxu0 0
        %1724 = vmatprep.subr.bf16.mxu0 0
        %1725 = vmatpush1.bf16.xpose.msra.mxu0 0
        %1726 = vmatprep.subr.bf16.mxu0 0
        %1727 = vmatpush1.bf16.xpose.msra.mxu0 0
        %1728 = vmatprep.subr.bf16.mxu0 0
        %1729 = vmatpush1.bf16.xpose.msra.mxu0 0
        %1730 = vmatprep.subr.bf16.mxu0 0
        %1731 = vmatpush1.bf16.xpose.msra.mxu0 0
        %1732 = vmatprep.subr.bf16.mxu0 0
        %1733 = vmatpush1.bf16.xpose.msra.mxu0 0
        %1734 = vmatprep.mubr.bf16.mxu0 0
        %1735 = vmatmul.mubr.bf16.gmra.mrb[0].mxu0 %v1697
        %v1736 = vpop.f32.mrb[0].mxu0
        %v1737 = vadd.f32 0.0, %v1736
        %v1738 = vpop.f32.mrb[0].mxu0
        %v1739 = vpop.f32.mrb[0].mxu0
        %v1740 = vadd.f32 0.0, %v1739
        %v1741 = vpop.f32.mrb[0].mxu0
        %1742 = vdwg.mxu0
        %v1744 = vsel %vm1460, %v1442, 0
        %v1747 = vsel %vm1460, %v1450, 0
        %1749 = vmatprep.subr.bf16.mxu0 0
        %1750 = vmatpush1.bf16.xpose.msra.mxu0 %v1747
        %1751 = vmatprep.subr.bf16.mxu0 0
        %1752 = vmatpush1.bf16.xpose.msra.mxu0 0
        %1753 = vmatprep.subr.bf16.mxu0 0
        %1754 = vmatpush1.bf16.xpose.msra.mxu0 0
        %1755 = vmatprep.subr.bf16.mxu0 0
        %1756 = vmatpush1.bf16.xpose.msra.mxu0 0
        %1757 = vmatprep.subr.bf16.mxu0 0
        %1758 = vmatpush1.bf16.xpose.msra.mxu0 0
        %1759 = vmatprep.subr.bf16.mxu0 0
        %1760 = vmatpush1.bf16.xpose.msra.mxu0 0
        %1761 = vmatprep.subr.bf16.mxu0 0
        %1762 = vmatpush1.bf16.xpose.msra.mxu0 0
        %1763 = vmatprep.subr.bf16.mxu0 0
        %1764 = vmatpush1.bf16.xpose.msra.mxu0 0
        %1765 = vmatprep.subr.bf16.mxu0 0
        %1766 = vmatpush1.bf16.xpose.msra.mxu0 0
        %1767 = vmatprep.subr.bf16.mxu0 0
        %1768 = vmatpush1.bf16.xpose.msra.mxu0 0
        %1769 = vmatprep.subr.bf16.mxu0 0
        %1770 = vmatpush1.bf16.xpose.msra.mxu0 0
        %1771 = vmatprep.subr.bf16.mxu0 0
        %1772 = vmatpush1.bf16.xpose.msra.mxu0 0
        %1773 = vmatprep.subr.bf16.mxu0 0
        %1774 = vmatpush1.bf16.xpose.msra.mxu0 0
        %1775 = vmatprep.subr.bf16.mxu0 0
        %1776 = vmatpush1.bf16.xpose.msra.mxu0 0
        %1777 = vmatprep.subr.bf16.mxu0 0
        %1778 = vmatpush1.bf16.xpose.msra.mxu0 0
        %1779 = vmatprep.subr.bf16.mxu0 0
        %1780 = vmatpush1.bf16.xpose.msra.mxu0 0
        %1781 = vmatprep.mubr.bf16.mxu0 0
        %1782 = vmatmul.mubr.bf16.gmra.mrb[0].mxu0 %v1744
        %v1783 = vpop.f32.mrb[0].mxu0
        %v1784 = vadd.f32 0.0, %v1783
        %v1785 = vpop.f32.mrb[0].mxu0
        %v1786 = vpop.f32.mrb[0].mxu0
        %v1787 = vadd.f32 0.0, %v1786
        %v1788 = vpop.f32.mrb[0].mxu0
        %1789 = vdwg.mxu0
        %v1791 = vsel %vm1460, %v1443, 0
        %v1794 = vsel %vm1460, %v1451, 0
        %1796 = vmatprep.subr.bf16.mxu0 0
        %1797 = vmatpush1.bf16.xpose.msra.mxu0 %v1794
        %1798 = vmatprep.subr.bf16.mxu0 0
        %1799 = vmatpush1.bf16.xpose.msra.mxu0 0
        %1800 = vmatprep.subr.bf16.mxu0 0
        %1801 = vmatpush1.bf16.xpose.msra.mxu0 0
        %1802 = vmatprep.subr.bf16.mxu0 0
        %1803 = vmatpush1.bf16.xpose.msra.mxu0 0
        %1804 = vmatprep.subr.bf16.mxu0 0
        %1805 = vmatpush1.bf16.xpose.msra.mxu0 0
        %1806 = vmatprep.subr.bf16.mxu0 0
        %1807 = vmatpush1.bf16.xpose.msra.mxu0 0
        %1808 = vmatprep.subr.bf16.mxu0 0
        %1809 = vmatpush1.bf16.xpose.msra.mxu0 0
        %1810 = vmatprep.subr.bf16.mxu0 0
        %1811 = vmatpush1.bf16.xpose.msra.mxu0 0
        %1812 = vmatprep.subr.bf16.mxu0 0
        %1813 = vmatpush1.bf16.xpose.msra.mxu0 0
        %1814 = vmatprep.subr.bf16.mxu0 0
        %1815 = vmatpush1.bf16.xpose.msra.mxu0 0
        %1816 = vmatprep.subr.bf16.mxu0 0
        %1817 = vmatpush1.bf16.xpose.msra.mxu0 0
        %1818 = vmatprep.subr.bf16.mxu0 0
        %1819 = vmatpush1.bf16.xpose.msra.mxu0 0
        %1820 = vmatprep.subr.bf16.mxu0 0
        %1821 = vmatpush1.bf16.xpose.msra.mxu0 0
        %1822 = vmatprep.subr.bf16.mxu0 0
        %1823 = vmatpush1.bf16.xpose.msra.mxu0 0
        %1824 = vmatprep.subr.bf16.mxu0 0
        %1825 = vmatpush1.bf16.xpose.msra.mxu0 0
        %1826 = vmatprep.subr.bf16.mxu0 0
        %1827 = vmatpush1.bf16.xpose.msra.mxu0 0
        %1828 = vmatprep.mubr.bf16.mxu0 0
        %1829 = vmatmul.mubr.bf16.gmra.mrb[0].mxu0 %v1791
        %v1830 = vpop.f32.mrb[0].mxu0
        %v1831 = vadd.f32 0.0, %v1830
        %v1832 = vpop.f32.mrb[0].mxu0
        %v1833 = vpop.f32.mrb[0].mxu0
        %v1834 = vadd.f32 0.0, %v1833
        %v1835 = vpop.f32.mrb[0].mxu0
        %1836 = vdwg.mxu0
        %v1837 = vmul.f32 %v1502, 0.125
        %v1838 = vmul.f32 %v1505, 0.125
        %v1839 = vmul.f32 %v1549, 0.125
        %v1840 = vmul.f32 %v1552, 0.125
        %v1841 = vmul.f32 %v1596, 0.125
        %v1842 = vmul.f32 %v1599, 0.125
        %v1843 = vmul.f32 %v1643, 0.125
        %v1844 = vmul.f32 %v1646, 0.125
        %v1845 = vmul.f32 %v1690, 0.125
        %v1846 = vmul.f32 %v1693, 0.125
        %v1847 = vmul.f32 %v1737, 0.125
        %v1848 = vmul.f32 %v1740, 0.125
        %v1849 = vmul.f32 %v1784, 0.125
        %v1850 = vmul.f32 %v1787, 0.125
        %v1851 = vmul.f32 %v1831, 0.125
        %v1852 = vmul.f32 %v1834, 0.125
        %vm1853 = vcmask 130048
        %v1854 = vsel %vm1853, %v1837, -inf
        %1855 = vmax.xlane.f32.xlu0 %v1854
        %v1856 = vpop.xlane.xlu0 %1855
        %v1857 = vsel %vm1853, %v1838, -inf
        %1858 = vmax.xlane.f32.xlu0 %v1857
        %v1859 = vpop.xlane.xlu0 %1858
        %v1860 = vsel %vm1853, %v1839, -inf
        %1861 = vmax.xlane.f32.xlu0 %v1860
        %v1862 = vpop.xlane.xlu0 %1861
        %v1863 = vsel %vm1853, %v1840, -inf
        %1864 = vmax.xlane.f32.xlu0 %v1863
        %v1865 = vpop.xlane.xlu0 %1864
        %v1866 = vsel %vm1853, %v1841, -inf
        %1867 = vmax.xlane.f32.xlu0 %v1866
        %v1868 = vpop.xlane.xlu0 %1867
        %v1869 = vsel %vm1853, %v1842, -inf
        %1870 = vmax.xlane.f32.xlu0 %v1869
        %v1871 = vpop.xlane.xlu0 %1870
        %v1872 = vsel %vm1853, %v1843, -inf
        %1873 = vmax.xlane.f32.xlu0 %v1872
        %v1874 = vpop.xlane.xlu0 %1873
        %v1875 = vsel %vm1853, %v1844, -inf
        %1876 = vmax.xlane.f32.xlu0 %v1875
        %v1877 = vpop.xlane.xlu0 %1876
        %v1878 = vsel %vm1853, %v1845, -inf
        %1879 = vmax.xlane.f32.xlu0 %v1878
        %v1880 = vpop.xlane.xlu0 %1879
        %v1881 = vsel %vm1853, %v1846, -inf
        %1882 = vmax.xlane.f32.xlu0 %v1881
        %v1883 = vpop.xlane.xlu0 %1882
        %v1884 = vsel %vm1853, %v1847, -inf
        %1885 = vmax.xlane.f32.xlu0 %v1884
        %v1886 = vpop.xlane.xlu0 %1885
        %v1887 = vsel %vm1853, %v1848, -inf
        %1888 = vmax.xlane.f32.xlu0 %v1887
        %v1889 = vpop.xlane.xlu0 %1888
        %v1890 = vsel %vm1853, %v1849, -inf
        %1891 = vmax.xlane.f32.xlu0 %v1890
        %v1892 = vpop.xlane.xlu0 %1891
        %v1893 = vsel %vm1853, %v1850, -inf
        %1894 = vmax.xlane.f32.xlu0 %v1893
        %v1895 = vpop.xlane.xlu0 %1894
        %v1896 = vsel %vm1853, %v1851, -inf
        %1897 = vmax.xlane.f32.xlu0 %v1896
        %v1898 = vpop.xlane.xlu0 %1897
        %v1899 = vsel %vm1853, %v1852, -inf
        %1900 = vmax.xlane.f32.xlu0 %v1899
        %v1901 = vpop.xlane.xlu0 %1900
        %v1902 = vsub.f32 %v1837, %v1856
        %v1903 = vsub.f32 %v1838, %v1859
        %v1904 = vsub.f32 %v1839, %v1862
        %v1905 = vsub.f32 %v1840, %v1865
        %v1906 = vsub.f32 %v1841, %v1868
        %v1907 = vsub.f32 %v1842, %v1871
        %v1908 = vsub.f32 %v1843, %v1874
        %v1909 = vsub.f32 %v1844, %v1877
        %v1910 = vsub.f32 %v1845, %v1880
        %v1911 = vsub.f32 %v1846, %v1883
        %v1912 = vsub.f32 %v1847, %v1886
        %v1913 = vsub.f32 %v1848, %v1889
        %v1914 = vsub.f32 %v1849, %v1892
        %v1915 = vsub.f32 %v1850, %v1895
        %v1916 = vsub.f32 %v1851, %v1898
        %v1917 = vsub.f32 %v1852, %v1901
        %v1918 = vmul.f32 %v1902, 1.442695
        %v1919 = vpow.pop %v1918
        %v1920 = vmul.f32 %v1903, 1.442695
        %v1921 = vpow.pop %v1920
        %v1922 = vmul.f32 %v1904, 1.442695
        %v1923 = vpow.pop %v1922
        %v1924 = vmul.f32 %v1905, 1.442695
        %v1925 = vpow.pop %v1924
        %v1926 = vmul.f32 %v1906, 1.442695
        %v1927 = vpow.pop %v1926
        %v1928 = vmul.f32 %v1907, 1.442695
        %v1929 = vpow.pop %v1928
        %v1930 = vmul.f32 %v1908, 1.442695
        %v1931 = vpow.pop %v1930
        %v1932 = vmul.f32 %v1909, 1.442695
        %v1933 = vpow.pop %v1932
        %v1934 = vmul.f32 %v1910, 1.442695
        %v1935 = vpow.pop %v1934
        %v1936 = vmul.f32 %v1911, 1.442695
        %v1937 = vpow.pop %v1936
        %v1938 = vmul.f32 %v1912, 1.442695
        %v1939 = vpow.pop %v1938
        %v1940 = vmul.f32 %v1913, 1.442695
        %v1941 = vpow.pop %v1940
        %v1942 = vmul.f32 %v1914, 1.442695
        %v1943 = vpow.pop %v1942
        %v1944 = vmul.f32 %v1915, 1.442695
        %v1945 = vpow.pop %v1944
        %v1946 = vmul.f32 %v1916, 1.442695
        %v1947 = vpow.pop %v1946
        %v1948 = vmul.f32 %v1917, 1.442695
        %v1949 = vpow.pop %v1948
        %v1950 = vsel %vm1853, %v1919, 0.0
        %1951 = vadd.xlane.f32.xlu0 %v1950
        %v1952 = vpop.xlane.xlu0 %1951
        %v1953 = vsel %vm1853, %v1921, 0.0
        %1954 = vadd.xlane.f32.xlu0 %v1953
        %v1955 = vpop.xlane.xlu0 %1954
        %v1956 = vsel %vm1853, %v1923, 0.0
        %1957 = vadd.xlane.f32.xlu0 %v1956
        %v1958 = vpop.xlane.xlu0 %1957
        %v1959 = vsel %vm1853, %v1925, 0.0
        %1960 = vadd.xlane.f32.xlu0 %v1959
        %v1961 = vpop.xlane.xlu0 %1960
        %v1962 = vsel %vm1853, %v1927, 0.0
        %1963 = vadd.xlane.f32.xlu0 %v1962
        %v1964 = vpop.xlane.xlu0 %1963
        %v1965 = vsel %vm1853, %v1929, 0.0
        %1966 = vadd.xlane.f32.xlu0 %v1965
        %v1967 = vpop.xlane.xlu0 %1966
        %v1968 = vsel %vm1853, %v1931, 0.0
        %1969 = vadd.xlane.f32.xlu0 %v1968
        %v1970 = vpop.xlane.xlu0 %1969
        %v1971 = vsel %vm1853, %v1933, 0.0
        %1972 = vadd.xlane.f32.xlu0 %v1971
        %v1973 = vpop.xlane.xlu0 %1972
        %v1974 = vsel %vm1853, %v1935, 0.0
        %1975 = vadd.xlane.f32.xlu0 %v1974
        %v1976 = vpop.xlane.xlu0 %1975
        %v1977 = vsel %vm1853, %v1937, 0.0
        %1978 = vadd.xlane.f32.xlu0 %v1977
        %v1979 = vpop.xlane.xlu0 %1978
        %v1980 = vsel %vm1853, %v1939, 0.0
        %1981 = vadd.xlane.f32.xlu0 %v1980
        %v1982 = vpop.xlane.xlu0 %1981
        %v1983 = vsel %vm1853, %v1941, 0.0
        %1984 = vadd.xlane.f32.xlu0 %v1983
        %v1985 = vpop.xlane.xlu0 %1984
        %v1986 = vsel %vm1853, %v1943, 0.0
        %1987 = vadd.xlane.f32.xlu0 %v1986
        %v1988 = vpop.xlane.xlu0 %1987
        %v1989 = vsel %vm1853, %v1945, 0.0
        %1990 = vadd.xlane.f32.xlu0 %v1989
        %v1991 = vpop.xlane.xlu0 %1990
        %v1992 = vsel %vm1853, %v1947, 0.0
        %1993 = vadd.xlane.f32.xlu0 %v1992
        %v1994 = vpop.xlane.xlu0 %1993
        %v1995 = vsel %vm1853, %v1949, 0.0
        %1996 = vadd.xlane.f32.xlu0 %v1995
        %v1997 = vpop.xlane.xlu0 %1996
        %v1998 = vrcp.pop %v1952
        %v1999 = vrcp.pop %v1955
        %v2000 = vrcp.pop %v1958
        %v2001 = vrcp.pop %v1961
        %v2002 = vrcp.pop %v1964
        %v2003 = vrcp.pop %v1967
        %v2004 = vrcp.pop %v1970
        %v2005 = vrcp.pop %v1973
        %v2006 = vrcp.pop %v1976
        %v2007 = vrcp.pop %v1979
        %v2008 = vrcp.pop %v1982
        %v2009 = vrcp.pop %v1985
        %v2010 = vrcp.pop %v1988
        %v2011 = vrcp.pop %v1991
        %v2012 = vrcp.pop %v1994
        %v2013 = vrcp.pop %v1997
        %v2014 = vmul.f32 %v1919, %v1998
        %v2015 = vmul.f32 %v1921, %v1999
        %v2016 = vmul.f32 %v1923, %v2000
        %v2017 = vmul.f32 %v1925, %v2001
        %v2018 = vmul.f32 %v1927, %v2002
        %v2019 = vmul.f32 %v1929, %v2003
        %v2020 = vmul.f32 %v1931, %v2004
        %v2021 = vmul.f32 %v1933, %v2005
        %v2022 = vmul.f32 %v1935, %v2006
        %v2023 = vmul.f32 %v1937, %v2007
        %v2024 = vmul.f32 %v1939, %v2008
        %v2025 = vmul.f32 %v1941, %v2009
        %v2026 = vmul.f32 %v1943, %v2010
        %v2027 = vmul.f32 %v1945, %v2011
        %v2028 = vmul.f32 %v1947, %v2012
        %v2029 = vmul.f32 %v1949, %v2013
        %v2030 = vpack.c.bf16 %v2015, %v2014
        %v2031 = vpack.c.bf16 %v2017, %v2016
        %v2032 = vpack.c.bf16 %v2019, %v2018
        %v2033 = vpack.c.bf16 %v2021, %v2020
        %v2034 = vpack.c.bf16 %v2023, %v2022
        %v2035 = vpack.c.bf16 %v2025, %v2024
        %v2036 = vpack.c.bf16 %v2027, %v2026
        %v2037 = vpack.c.bf16 %v2029, %v2028
        %v2039 = vsel %vm1853, %v2030, 0
        %2041 = vmatprep.subr.bf16.mxu0 0
        %2042 = vmatpush1.bf16.msra.mxu0 %v1452
        %2043 = vmatprep.subr.bf16.mxu0 0
        %2044 = vmatpush1.bf16.msra.mxu0 0
        %2045 = vmatprep.subr.bf16.mxu0 0
        %2046 = vmatpush1.bf16.msra.mxu0 0
        %2047 = vmatprep.subr.bf16.mxu0 0
        %2048 = vmatpush1.bf16.msra.mxu0 0
        %2049 = vmatprep.subr.bf16.mxu0 0
        %2050 = vmatpush1.bf16.msra.mxu0 0
        %2051 = vmatprep.subr.bf16.mxu0 0
        %2052 = vmatpush1.bf16.msra.mxu0 0
        %2053 = vmatprep.subr.bf16.mxu0 0
        %2054 = vmatpush1.bf16.msra.mxu0 0
        %2055 = vmatprep.subr.bf16.mxu0 0
        %2056 = vmatpush1.bf16.msra.mxu0 0
        %2057 = vmatprep.subr.bf16.mxu0 0
        %2058 = vmatpush1.bf16.msra.mxu0 0
        %2059 = vmatprep.subr.bf16.mxu0 0
        %2060 = vmatpush1.bf16.msra.mxu0 0
        %2061 = vmatprep.subr.bf16.mxu0 0
        %2062 = vmatpush1.bf16.msra.mxu0 0
        %2063 = vmatprep.subr.bf16.mxu0 0
        %2064 = vmatpush1.bf16.msra.mxu0 0
        %2065 = vmatprep.subr.bf16.mxu0 0
        %2066 = vmatpush1.bf16.msra.mxu0 0
        %2067 = vmatprep.subr.bf16.mxu0 0
        %2068 = vmatpush1.bf16.msra.mxu0 0
        %2069 = vmatprep.subr.bf16.mxu0 0
        %2070 = vmatpush1.bf16.msra.mxu0 0
        %2071 = vmatprep.subr.bf16.mxu0 0
        %2072 = vmatpush1.bf16.msra.mxu0 0
        %2073 = vmatprep.mubr.bf16.mxu0 0
        %2074 = vmatmul.mubr.bf16.gmra.mrb[0].mxu0 %v2039
        %v2075 = vpop.f32.mrb[0].mxu0
        %v2076 = vadd.f32 0.0, %v2075
        %v2077 = vpop.f32.mrb[0].mxu0
        %v2078 = vpop.f32.mrb[0].mxu0
        %v2079 = vadd.f32 0.0, %v2078
        %v2080 = vpop.f32.mrb[0].mxu0
        %2081 = vdwg.mxu0
        %v2083 = vsel %vm1853, %v2031, 0
        %2085 = vmatprep.subr.bf16.mxu0 0
        %2086 = vmatpush1.bf16.msra.mxu0 %v1453
        %2087 = vmatprep.subr.bf16.mxu0 0
        %2088 = vmatpush1.bf16.msra.mxu0 0
        %2089 = vmatprep.subr.bf16.mxu0 0
        %2090 = vmatpush1.bf16.msra.mxu0 0
        %2091 = vmatprep.subr.bf16.mxu0 0
        %2092 = vmatpush1.bf16.msra.mxu0 0
        %2093 = vmatprep.subr.bf16.mxu0 0
        %2094 = vmatpush1.bf16.msra.mxu0 0
        %2095 = vmatprep.subr.bf16.mxu0 0
        %2096 = vmatpush1.bf16.msra.mxu0 0
        %2097 = vmatprep.subr.bf16.mxu0 0
        %2098 = vmatpush1.bf16.msra.mxu0 0
        %2099 = vmatprep.subr.bf16.mxu0 0
        %2100 = vmatpush1.bf16.msra.mxu0 0
        %2101 = vmatprep.subr.bf16.mxu0 0
        %2102 = vmatpush1.bf16.msra.mxu0 0
        %2103 = vmatprep.subr.bf16.mxu0 0
        %2104 = vmatpush1.bf16.msra.mxu0 0
        %2105 = vmatprep.subr.bf16.mxu0 0
        %2106 = vmatpush1.bf16.msra.mxu0 0
        %2107 = vmatprep.subr.bf16.mxu0 0
        %2108 = vmatpush1.bf16.msra.mxu0 0
        %2109 = vmatprep.subr.bf16.mxu0 0
        %2110 = vmatpush1.bf16.msra.mxu0 0
        %2111 = vmatprep.subr.bf16.mxu0 0
        %2112 = vmatpush1.bf16.msra.mxu0 0
        %2113 = vmatprep.subr.bf16.mxu0 0
        %2114 = vmatpush1.bf16.msra.mxu0 0
        %2115 = vmatprep.subr.bf16.mxu0 0
        %2116 = vmatpush1.bf16.msra.mxu0 0
        %2117 = vmatprep.mubr.bf16.mxu0 0
        %2118 = vmatmul.mubr.bf16.gmra.mrb[0].mxu0 %v2083
        %v2119 = vpop.f32.mrb[0].mxu0
        %v2120 = vadd.f32 0.0, %v2119
        %v2121 = vpop.f32.mrb[0].mxu0
        %v2122 = vpop.f32.mrb[0].mxu0
        %v2123 = vadd.f32 0.0, %v2122
        %v2124 = vpop.f32.mrb[0].mxu0
        %2125 = vdwg.mxu0
        %v2127 = vsel %vm1853, %v2032, 0
        %2129 = vmatprep.subr.bf16.mxu0 0
        %2130 = vmatpush1.bf16.msra.mxu0 %v1454
        %2131 = vmatprep.subr.bf16.mxu0 0
        %2132 = vmatpush1.bf16.msra.mxu0 0
        %2133 = vmatprep.subr.bf16.mxu0 0
        %2134 = vmatpush1.bf16.msra.mxu0 0
        %2135 = vmatprep.subr.bf16.mxu0 0
        %2136 = vmatpush1.bf16.msra.mxu0 0
        %2137 = vmatprep.subr.bf16.mxu0 0
        %2138 = vmatpush1.bf16.msra.mxu0 0
        %2139 = vmatprep.subr.bf16.mxu0 0
        %2140 = vmatpush1.bf16.msra.mxu0 0
        %2141 = vmatprep.subr.bf16.mxu0 0
        %2142 = vmatpush1.bf16.msra.mxu0 0
        %2143 = vmatprep.subr.bf16.mxu0 0
        %2144 = vmatpush1.bf16.msra.mxu0 0
        %2145 = vmatprep.subr.bf16.mxu0 0
        %2146 = vmatpush1.bf16.msra.mxu0 0
        %2147 = vmatprep.subr.bf16.mxu0 0
        %2148 = vmatpush1.bf16.msra.mxu0 0
        %2149 = vmatprep.subr.bf16.mxu0 0
        %2150 = vmatpush1.bf16.msra.mxu0 0
        %2151 = vmatprep.subr.bf16.mxu0 0
        %2152 = vmatpush1.bf16.msra.mxu0 0
        %2153 = vmatprep.subr.bf16.mxu0 0
        %2154 = vmatpush1.bf16.msra.mxu0 0
        %2155 = vmatprep.subr.bf16.mxu0 0
        %2156 = vmatpush1.bf16.msra.mxu0 0
        %2157 = vmatprep.subr.bf16.mxu0 0
        %2158 = vmatpush1.bf16.msra.mxu0 0
        %2159 = vmatprep.subr.bf16.mxu0 0
        %2160 = vmatpush1.bf16.msra.mxu0 0
        %2161 = vmatprep.mubr.bf16.mxu0 0
        %2162 = vmatmul.mubr.bf16.gmra.mrb[0].mxu0 %v2127
        %v2163 = vpop.f32.mrb[0].mxu0
        %v2164 = vadd.f32 0.0, %v2163
        %v2165 = vpop.f32.mrb[0].mxu0
        %v2166 = vpop.f32.mrb[0].mxu0
        %v2167 = vadd.f32 0.0, %v2166
        %v2168 = vpop.f32.mrb[0].mxu0
        %2169 = vdwg.mxu0
        %v2171 = vsel %vm1853, %v2033, 0
        %2173 = vmatprep.subr.bf16.mxu0 0
        %2174 = vmatpush1.bf16.msra.mxu0 %v1455
        %2175 = vmatprep.subr.bf16.mxu0 0
        %2176 = vmatpush1.bf16.msra.mxu0 0
        %2177 = vmatprep.subr.bf16.mxu0 0
        %2178 = vmatpush1.bf16.msra.mxu0 0
        %2179 = vmatprep.subr.bf16.mxu0 0
        %2180 = vmatpush1.bf16.msra.mxu0 0
        %2181 = vmatprep.subr.bf16.mxu0 0
        %2182 = vmatpush1.bf16.msra.mxu0 0
        %2183 = vmatprep.subr.bf16.mxu0 0
        %2184 = vmatpush1.bf16.msra.mxu0 0
        %2185 = vmatprep.subr.bf16.mxu0 0
        %2186 = vmatpush1.bf16.msra.mxu0 0
        %2187 = vmatprep.subr.bf16.mxu0 0
        %2188 = vmatpush1.bf16.msra.mxu0 0
        %2189 = vmatprep.subr.bf16.mxu0 0
        %2190 = vmatpush1.bf16.msra.mxu0 0
        %2191 = vmatprep.subr.bf16.mxu0 0
        %2192 = vmatpush1.bf16.msra.mxu0 0
        %2193 = vmatprep.subr.bf16.mxu0 0
        %2194 = vmatpush1.bf16.msra.mxu0 0
        %2195 = vmatprep.subr.bf16.mxu0 0
        %2196 = vmatpush1.bf16.msra.mxu0 0
        %2197 = vmatprep.subr.bf16.mxu0 0
        %2198 = vmatpush1.bf16.msra.mxu0 0
        %2199 = vmatprep.subr.bf16.mxu0 0
        %2200 = vmatpush1.bf16.msra.mxu0 0
        %2201 = vmatprep.subr.bf16.mxu0 0
        %2202 = vmatpush1.bf16.msra.mxu0 0
        %2203 = vmatprep.subr.bf16.mxu0 0
        %2204 = vmatpush1.bf16.msra.mxu0 0
        %2205 = vmatprep.mubr.bf16.mxu0 0
        %2206 = vmatmul.mubr.bf16.gmra.mrb[0].mxu0 %v2171
        %v2207 = vpop.f32.mrb[0].mxu0
        %v2208 = vadd.f32 0.0, %v2207
        %v2209 = vpop.f32.mrb[0].mxu0
        %v2210 = vpop.f32.mrb[0].mxu0
        %v2211 = vadd.f32 0.0, %v2210
        %v2212 = vpop.f32.mrb[0].mxu0
        %2213 = vdwg.mxu0
        %v2215 = vsel %vm1853, %v2034, 0
        %2217 = vmatprep.subr.bf16.mxu0 0
        %2218 = vmatpush1.bf16.msra.mxu0 %v1456
        %2219 = vmatprep.subr.bf16.mxu0 0
        %2220 = vmatpush1.bf16.msra.mxu0 0
        %2221 = vmatprep.subr.bf16.mxu0 0
        %2222 = vmatpush1.bf16.msra.mxu0 0
        %2223 = vmatprep.subr.bf16.mxu0 0
        %2224 = vmatpush1.bf16.msra.mxu0 0
        %2225 = vmatprep.subr.bf16.mxu0 0
        %2226 = vmatpush1.bf16.msra.mxu0 0
        %2227 = vmatprep.subr.bf16.mxu0 0
        %2228 = vmatpush1.bf16.msra.mxu0 0
        %2229 = vmatprep.subr.bf16.mxu0 0
        %2230 = vmatpush1.bf16.msra.mxu0 0
        %2231 = vmatprep.subr.bf16.mxu0 0
        %2232 = vmatpush1.bf16.msra.mxu0 0
        %2233 = vmatprep.subr.bf16.mxu0 0
        %2234 = vmatpush1.bf16.msra.mxu0 0
        %2235 = vmatprep.subr.bf16.mxu0 0
        %2236 = vmatpush1.bf16.msra.mxu0 0
        %2237 = vmatprep.subr.bf16.mxu0 0
        %2238 = vmatpush1.bf16.msra.mxu0 0
        %2239 = vmatprep.subr.bf16.mxu0 0
        %2240 = vmatpush1.bf16.msra.mxu0 0
        %2241 = vmatprep.subr.bf16.mxu0 0
        %2242 = vmatpush1.bf16.msra.mxu0 0
        %2243 = vmatprep.subr.bf16.mxu0 0
        %2244 = vmatpush1.bf16.msra.mxu0 0
        %2245 = vmatprep.subr.bf16.mxu0 0
        %2246 = vmatpush1.bf16.msra.mxu0 0
        %2247 = vmatprep.subr.bf16.mxu0 0
        %2248 = vmatpush1.bf16.msra.mxu0 0
        %2249 = vmatprep.mubr.bf16.mxu0 0
        %2250 = vmatmul.mubr.bf16.gmra.mrb[0].mxu0 %v2215
        %v2251 = vpop.f32.mrb[0].mxu0
        %v2252 = vadd.f32 0.0, %v2251
        %v2253 = vpop.f32.mrb[0].mxu0
        %v2254 = vpop.f32.mrb[0].mxu0
        %v2255 = vadd.f32 0.0, %v2254
        %v2256 = vpop.f32.mrb[0].mxu0
        %2257 = vdwg.mxu0
        %v2259 = vsel %vm1853, %v2035, 0
        %2261 = vmatprep.subr.bf16.mxu0 0
        %2262 = vmatpush1.bf16.msra.mxu0 %v1457
        %2263 = vmatprep.subr.bf16.mxu0 0
        %2264 = vmatpush1.bf16.msra.mxu0 0
        %2265 = vmatprep.subr.bf16.mxu0 0
        %2266 = vmatpush1.bf16.msra.mxu0 0
        %2267 = vmatprep.subr.bf16.mxu0 0
        %2268 = vmatpush1.bf16.msra.mxu0 0
        %2269 = vmatprep.subr.bf16.mxu0 0
        %2270 = vmatpush1.bf16.msra.mxu0 0
        %2271 = vmatprep.subr.bf16.mxu0 0
        %2272 = vmatpush1.bf16.msra.mxu0 0
        %2273 = vmatprep.subr.bf16.mxu0 0
        %2274 = vmatpush1.bf16.msra.mxu0 0
        %2275 = vmatprep.subr.bf16.mxu0 0
        %2276 = vmatpush1.bf16.msra.mxu0 0
        %2277 = vmatprep.subr.bf16.mxu0 0
        %2278 = vmatpush1.bf16.msra.mxu0 0
        %2279 = vmatprep.subr.bf16.mxu0 0
        %2280 = vmatpush1.bf16.msra.mxu0 0
        %2281 = vmatprep.subr.bf16.mxu0 0
        %2282 = vmatpush1.bf16.msra.mxu0 0
        %2283 = vmatprep.subr.bf16.mxu0 0
        %2284 = vmatpush1.bf16.msra.mxu0 0
        %2285 = vmatprep.subr.bf16.mxu0 0
        %2286 = vmatpush1.bf16.msra.mxu0 0
        %2287 = vmatprep.subr.bf16.mxu0 0
        %2288 = vmatpush1.bf16.msra.mxu0 0
        %2289 = vmatprep.subr.bf16.mxu0 0
        %2290 = vmatpush1.bf16.msra.mxu0 0
        %2291 = vmatprep.subr.bf16.mxu0 0
        %2292 = vmatpush1.bf16.msra.mxu0 0
        %2293 = vmatprep.mubr.bf16.mxu0 0
        %2294 = vmatmul.mubr.bf16.gmra.mrb[0].mxu0 %v2259
        %v2295 = vpop.f32.mrb[0].mxu0
        %v2296 = vadd.f32 0.0, %v2295
        %v2297 = vpop.f32.mrb[0].mxu0
        %v2298 = vpop.f32.mrb[0].mxu0
        %v2299 = vadd.f32 0.0, %v2298
        %v2300 = vpop.f32.mrb[0].mxu0
        %2301 = vdwg.mxu0
        %v2303 = vsel %vm1853, %v2036, 0
        %2305 = vmatprep.subr.bf16.mxu0 0
        %2306 = vmatpush1.bf16.msra.mxu0 %v1458
        %2307 = vmatprep.subr.bf16.mxu0 0
        %2308 = vmatpush1.bf16.msra.mxu0 0
        %2309 = vmatprep.subr.bf16.mxu0 0
        %2310 = vmatpush1.bf16.msra.mxu0 0
        %2311 = vmatprep.subr.bf16.mxu0 0
        %2312 = vmatpush1.bf16.msra.mxu0 0
        %2313 = vmatprep.subr.bf16.mxu0 0
        %2314 = vmatpush1.bf16.msra.mxu0 0
        %2315 = vmatprep.subr.bf16.mxu0 0
        %2316 = vmatpush1.bf16.msra.mxu0 0
        %2317 = vmatprep.subr.bf16.mxu0 0
        %2318 = vmatpush1.bf16.msra.mxu0 0
        %2319 = vmatprep.subr.bf16.mxu0 0
        %2320 = vmatpush1.bf16.msra.mxu0 0
        %2321 = vmatprep.subr.bf16.mxu0 0
        %2322 = vmatpush1.bf16.msra.mxu0 0
        %2323 = vmatprep.subr.bf16.mxu0 0
        %2324 = vmatpush1.bf16.msra.mxu0 0
        %2325 = vmatprep.subr.bf16.mxu0 0
        %2326 = vmatpush1.bf16.msra.mxu0 0
        %2327 = vmatprep.subr.bf16.mxu0 0
        %2328 = vmatpush1.bf16.msra.mxu0 0
        %2329 = vmatprep.subr.bf16.mxu0 0
        %2330 = vmatpush1.bf16.msra.mxu0 0
        %2331 = vmatprep.subr.bf16.mxu0 0
        %2332 = vmatpush1.bf16.msra.mxu0 0
        %2333 = vmatprep.subr.bf16.mxu0 0
        %2334 = vmatpush1.bf16.msra.mxu0 0
        %2335 = vmatprep.subr.bf16.mxu0 0
        %2336 = vmatpush1.bf16.msra.mxu0 0
        %2337 = vmatprep.mubr.bf16.mxu0 0
        %2338 = vmatmul.mubr.bf16.gmra.mrb[0].mxu0 %v2303
        %v2339 = vpop.f32.mrb[0].mxu0
        %v2340 = vadd.f32 0.0, %v2339
        %v2341 = vpop.f32.mrb[0].mxu0
        %v2342 = vpop.f32.mrb[0].mxu0
        %v2343 = vadd.f32 0.0, %v2342
        %v2344 = vpop.f32.mrb[0].mxu0
        %2345 = vdwg.mxu0
        %v2347 = vsel %vm1853, %v2037, 0
        %2349 = vmatprep.subr.bf16.mxu0 0
        %2350 = vmatpush1.bf16.msra.mxu0 %v1459
        %2351 = vmatprep.subr.bf16.mxu0 0
        %2352 = vmatpush1.bf16.msra.mxu0 0
        %2353 = vmatprep.subr.bf16.mxu0 0
        %2354 = vmatpush1.bf16.msra.mxu0 0
        %2355 = vmatprep.subr.bf16.mxu0 0
        %2356 = vmatpush1.bf16.msra.mxu0 0
        %2357 = vmatprep.subr.bf16.mxu0 0
        %2358 = vmatpush1.bf16.msra.mxu0 0
        %2359 = vmatprep.subr.bf16.mxu0 0
        %2360 = vmatpush1.bf16.msra.mxu0 0
        %2361 = vmatprep.subr.bf16.mxu0 0
        %2362 = vmatpush1.bf16.msra.mxu0 0
        %2363 = vmatprep.subr.bf16.mxu0 0
        %2364 = vmatpush1.bf16.msra.mxu0 0
        %2365 = vmatprep.subr.bf16.mxu0 0
        %2366 = vmatpush1.bf16.msra.mxu0 0
        %2367 = vmatprep.subr.bf16.mxu0 0
        %2368 = vmatpush1.bf16.msra.mxu0 0
        %2369 = vmatprep.subr.bf16.mxu0 0
        %2370 = vmatpush1.bf16.msra.mxu0 0
        %2371 = vmatprep.subr.bf16.mxu0 0
        %2372 = vmatpush1.bf16.msra.mxu0 0
        %2373 = vmatprep.subr.bf16.mxu0 0
        %2374 = vmatpush1.bf16.msra.mxu0 0
        %2375 = vmatprep.subr.bf16.mxu0 0
        %2376 = vmatpush1.bf16.msra.mxu0 0
        %2377 = vmatprep.subr.bf16.mxu0 0
        %2378 = vmatpush1.bf16.msra.mxu0 0
        %2379 = vmatprep.subr.bf16.mxu0 0
        %2380 = vmatpush1.bf16.msra.mxu0 0
        %2381 = vmatprep.mubr.bf16.mxu0 0
        %2382 = vmatmul.mubr.bf16.gmra.mrb[0].mxu0 %v2347
        %v2383 = vpop.f32.mrb[0].mxu0
        %v2384 = vadd.f32 0.0, %v2383
        %v2385 = vpop.f32.mrb[0].mxu0
        %v2386 = vpop.f32.mrb[0].mxu0
        %v2387 = vadd.f32 0.0, %v2386
        %v2388 = vpop.f32.mrb[0].mxu0
        %2389 = vdwg.mxu0
        %2391 = vrot.lane.b32.xlu0 %v1436, 64
        %v2392 = vpop.permute.xlu0 %2391
        %2394 = vrot.lane.b32.xlu0 %v1444, 64
        %v2395 = vpop.permute.xlu0 %2394
        %v2397 = vsel %vm1460, %v2392, 0
        %v2400 = vsel %vm1460, %v2395, 0
        %2402 = vmatprep.subr.bf16.mxu0 0
        %2403 = vmatpush1.bf16.xpose.msra.mxu0 %v2400
        %2404 = vmatprep.subr.bf16.mxu0 0
        %2405 = vmatpush1.bf16.xpose.msra.mxu0 0
        %2406 = vmatprep.subr.bf16.mxu0 0
        %2407 = vmatpush1.bf16.xpose.msra.mxu0 0
        %2408 = vmatprep.subr.bf16.mxu0 0
        %2409 = vmatpush1.bf16.xpose.msra.mxu0 0
        %2410 = vmatprep.subr.bf16.mxu0 0
        %2411 = vmatpush1.bf16.xpose.msra.mxu0 0
        %2412 = vmatprep.subr.bf16.mxu0 0
        %2413 = vmatpush1.bf16.xpose.msra.mxu0 0
        %2414 = vmatprep.subr.bf16.mxu0 0
        %2415 = vmatpush1.bf16.xpose.msra.mxu0 0
        %2416 = vmatprep.subr.bf16.mxu0 0
        %2417 = vmatpush1.bf16.xpose.msra.mxu0 0
        %2418 = vmatprep.subr.bf16.mxu0 0
        %2419 = vmatpush1.bf16.xpose.msra.mxu0 0
        %2420 = vmatprep.subr.bf16.mxu0 0
        %2421 = vmatpush1.bf16.xpose.msra.mxu0 0
        %2422 = vmatprep.subr.bf16.mxu0 0
        %2423 = vmatpush1.bf16.xpose.msra.mxu0 0
        %2424 = vmatprep.subr.bf16.mxu0 0
        %2425 = vmatpush1.bf16.xpose.msra.mxu0 0
        %2426 = vmatprep.subr.bf16.mxu0 0
        %2427 = vmatpush1.bf16.xpose.msra.mxu0 0
        %2428 = vmatprep.subr.bf16.mxu0 0
        %2429 = vmatpush1.bf16.xpose.msra.mxu0 0
        %2430 = vmatprep.subr.bf16.mxu0 0
        %2431 = vmatpush1.bf16.xpose.msra.mxu0 0
        %2432 = vmatprep.subr.bf16.mxu0 0
        %2433 = vmatpush1.bf16.xpose.msra.mxu0 0
        %2434 = vmatprep.mubr.bf16.mxu0 0
        %2435 = vmatmul.mubr.bf16.gmra.mrb[0].mxu0 %v2397
        %v2436 = vpop.f32.mrb[0].mxu0
        %v2437 = vadd.f32 0.0, %v2436
        %v2438 = vpop.f32.mrb[0].mxu0
        %v2439 = vpop.f32.mrb[0].mxu0
        %v2440 = vadd.f32 0.0, %v2439
        %v2441 = vpop.f32.mrb[0].mxu0
        %2442 = vdwg.mxu0
        %2444 = vrot.lane.b32.xlu0 %v1437, 64
        %v2445 = vpop.permute.xlu0 %2444
        %2447 = vrot.lane.b32.xlu0 %v1445, 64
        %v2448 = vpop.permute.xlu0 %2447
        %v2450 = vsel %vm1460, %v2445, 0
        %v2453 = vsel %vm1460, %v2448, 0
        %2455 = vmatprep.subr.bf16.mxu0 0
        %2456 = vmatpush1.bf16.xpose.msra.mxu0 %v2453
        %2457 = vmatprep.subr.bf16.mxu0 0
        %2458 = vmatpush1.bf16.xpose.msra.mxu0 0
        %2459 = vmatprep.subr.bf16.mxu0 0
        %2460 = vmatpush1.bf16.xpose.msra.mxu0 0
        %2461 = vmatprep.subr.bf16.mxu0 0
        %2462 = vmatpush1.bf16.xpose.msra.mxu0 0
        %2463 = vmatprep.subr.bf16.mxu0 0
        %2464 = vmatpush1.bf16.xpose.msra.mxu0 0
        %2465 = vmatprep.subr.bf16.mxu0 0
        %2466 = vmatpush1.bf16.xpose.msra.mxu0 0
        %2467 = vmatprep.subr.bf16.mxu0 0
        %2468 = vmatpush1.bf16.xpose.msra.mxu0 0
        %2469 = vmatprep.subr.bf16.mxu0 0
        %2470 = vmatpush1.bf16.xpose.msra.mxu0 0
        %2471 = vmatprep.subr.bf16.mxu0 0
        %2472 = vmatpush1.bf16.xpose.msra.mxu0 0
        %2473 = vmatprep.subr.bf16.mxu0 0
        %2474 = vmatpush1.bf16.xpose.msra.mxu0 0
        %2475 = vmatprep.subr.bf16.mxu0 0
        %2476 = vmatpush1.bf16.xpose.msra.mxu0 0
        %2477 = vmatprep.subr.bf16.mxu0 0
        %2478 = vmatpush1.bf16.xpose.msra.mxu0 0
        %2479 = vmatprep.subr.bf16.mxu0 0
        %2480 = vmatpush1.bf16.xpose.msra.mxu0 0
        %2481 = vmatprep.subr.bf16.mxu0 0
        %2482 = vmatpush1.bf16.xpose.msra.mxu0 0
        %2483 = vmatprep.subr.bf16.mxu0 0
        %2484 = vmatpush1.bf16.xpose.msra.mxu0 0
        %2485 = vmatprep.subr.bf16.mxu0 0
        %2486 = vmatpush1.bf16.xpose.msra.mxu0 0
        %2487 = vmatprep.mubr.bf16.mxu0 0
        %2488 = vmatmul.mubr.bf16.gmra.mrb[0].mxu0 %v2450
        %v2489 = vpop.f32.mrb[0].mxu0
        %v2490 = vadd.f32 0.0, %v2489
        %v2491 = vpop.f32.mrb[0].mxu0
        %v2492 = vpop.f32.mrb[0].mxu0
        %v2493 = vadd.f32 0.0, %v2492
        %v2494 = vpop.f32.mrb[0].mxu0
        %2495 = vdwg.mxu0
        %2497 = vrot.lane.b32.xlu0 %v1438, 64
        %v2498 = vpop.permute.xlu0 %2497
        %2500 = vrot.lane.b32.xlu0 %v1446, 64
        %v2501 = vpop.permute.xlu0 %2500
        %v2503 = vsel %vm1460, %v2498, 0
        %v2506 = vsel %vm1460, %v2501, 0
        %2508 = vmatprep.subr.bf16.mxu0 0
        %2509 = vmatpush1.bf16.xpose.msra.mxu0 %v2506
        %2510 = vmatprep.subr.bf16.mxu0 0
        %2511 = vmatpush1.bf16.xpose.msra.mxu0 0
        %2512 = vmatprep.subr.bf16.mxu0 0
        %2513 = vmatpush1.bf16.xpose.msra.mxu0 0
        %2514 = vmatprep.subr.bf16.mxu0 0
        %2515 = vmatpush1.bf16.xpose.msra.mxu0 0
        %2516 = vmatprep.subr.bf16.mxu0 0
        %2517 = vmatpush1.bf16.xpose.msra.mxu0 0
        %2518 = vmatprep.subr.bf16.mxu0 0
        %2519 = vmatpush1.bf16.xpose.msra.mxu0 0
        %2520 = vmatprep.subr.bf16.mxu0 0
        %2521 = vmatpush1.bf16.xpose.msra.mxu0 0
        %2522 = vmatprep.subr.bf16.mxu0 0
        %2523 = vmatpush1.bf16.xpose.msra.mxu0 0
        %2524 = vmatprep.subr.bf16.mxu0 0
        %2525 = vmatpush1.bf16.xpose.msra.mxu0 0
        %2526 = vmatprep.subr.bf16.mxu0 0
        %2527 = vmatpush1.bf16.xpose.msra.mxu0 0
        %2528 = vmatprep.subr.bf16.mxu0 0
        %2529 = vmatpush1.bf16.xpose.msra.mxu0 0
        %2530 = vmatprep.subr.bf16.mxu0 0
        %2531 = vmatpush1.bf16.xpose.msra.mxu0 0
        %2532 = vmatprep.subr.bf16.mxu0 0
        %2533 = vmatpush1.bf16.xpose.msra.mxu0 0
        %2534 = vmatprep.subr.bf16.mxu0 0
        %2535 = vmatpush1.bf16.xpose.msra.mxu0 0
        %2536 = vmatprep.subr.bf16.mxu0 0
        %2537 = vmatpush1.bf16.xpose.msra.mxu0 0
        %2538 = vmatprep.subr.bf16.mxu0 0
        %2539 = vmatpush1.bf16.xpose.msra.mxu0 0
        %2540 = vmatprep.mubr.bf16.mxu0 0
        %2541 = vmatmul.mubr.bf16.gmra.mrb[0].mxu0 %v2503
        %v2542 = vpop.f32.mrb[0].mxu0
        %v2543 = vadd.f32 0.0, %v2542
        %v2544 = vpop.f32.mrb[0].mxu0
        %v2545 = vpop.f32.mrb[0].mxu0
        %v2546 = vadd.f32 0.0, %v2545
        %v2547 = vpop.f32.mrb[0].mxu0
        %2548 = vdwg.mxu0
        %2550 = vrot.lane.b32.xlu0 %v1439, 64
        %v2551 = vpop.permute.xlu0 %2550
        %2553 = vrot.lane.b32.xlu0 %v1447, 64
        %v2554 = vpop.permute.xlu0 %2553
        %v2556 = vsel %vm1460, %v2551, 0
        %v2559 = vsel %vm1460, %v2554, 0
        %2561 = vmatprep.subr.bf16.mxu0 0
        %2562 = vmatpush1.bf16.xpose.msra.mxu0 %v2559
        %2563 = vmatprep.subr.bf16.mxu0 0
        %2564 = vmatpush1.bf16.xpose.msra.mxu0 0
        %2565 = vmatprep.subr.bf16.mxu0 0
        %2566 = vmatpush1.bf16.xpose.msra.mxu0 0
        %2567 = vmatprep.subr.bf16.mxu0 0
        %2568 = vmatpush1.bf16.xpose.msra.mxu0 0
        %2569 = vmatprep.subr.bf16.mxu0 0
        %2570 = vmatpush1.bf16.xpose.msra.mxu0 0
        %2571 = vmatprep.subr.bf16.mxu0 0
        %2572 = vmatpush1.bf16.xpose.msra.mxu0 0
        %2573 = vmatprep.subr.bf16.mxu0 0
        %2574 = vmatpush1.bf16.xpose.msra.mxu0 0
        %2575 = vmatprep.subr.bf16.mxu0 0
        %2576 = vmatpush1.bf16.xpose.msra.mxu0 0
        %2577 = vmatprep.subr.bf16.mxu0 0
        %2578 = vmatpush1.bf16.xpose.msra.mxu0 0
        %2579 = vmatprep.subr.bf16.mxu0 0
        %2580 = vmatpush1.bf16.xpose.msra.mxu0 0
        %2581 = vmatprep.subr.bf16.mxu0 0
        %2582 = vmatpush1.bf16.xpose.msra.mxu0 0
        %2583 = vmatprep.subr.bf16.mxu0 0
        %2584 = vmatpush1.bf16.xpose.msra.mxu0 0
        %2585 = vmatprep.subr.bf16.mxu0 0
        %2586 = vmatpush1.bf16.xpose.msra.mxu0 0
        %2587 = vmatprep.subr.bf16.mxu0 0
        %2588 = vmatpush1.bf16.xpose.msra.mxu0 0
        %2589 = vmatprep.subr.bf16.mxu0 0
        %2590 = vmatpush1.bf16.xpose.msra.mxu0 0
        %2591 = vmatprep.subr.bf16.mxu0 0
        %2592 = vmatpush1.bf16.xpose.msra.mxu0 0
        %2593 = vmatprep.mubr.bf16.mxu0 0
        %2594 = vmatmul.mubr.bf16.gmra.mrb[0].mxu0 %v2556
        %v2595 = vpop.f32.mrb[0].mxu0
        %v2596 = vadd.f32 0.0, %v2595
        %v2597 = vpop.f32.mrb[0].mxu0
        %v2598 = vpop.f32.mrb[0].mxu0
        %v2599 = vadd.f32 0.0, %v2598
        %v2600 = vpop.f32.mrb[0].mxu0
        %2601 = vdwg.mxu0
        %2603 = vrot.lane.b32.xlu0 %v1440, 64
        %v2604 = vpop.permute.xlu0 %2603
        %2606 = vrot.lane.b32.xlu0 %v1448, 64
        %v2607 = vpop.permute.xlu0 %2606
        %v2609 = vsel %vm1460, %v2604, 0
        %v2612 = vsel %vm1460, %v2607, 0
        %2614 = vmatprep.subr.bf16.mxu0 0
        %2615 = vmatpush1.bf16.xpose.msra.mxu0 %v2612
        %2616 = vmatprep.subr.bf16.mxu0 0
        %2617 = vmatpush1.bf16.xpose.msra.mxu0 0
        %2618 = vmatprep.subr.bf16.mxu0 0
        %2619 = vmatpush1.bf16.xpose.msra.mxu0 0
        %2620 = vmatprep.subr.bf16.mxu0 0
        %2621 = vmatpush1.bf16.xpose.msra.mxu0 0
        %2622 = vmatprep.subr.bf16.mxu0 0
        %2623 = vmatpush1.bf16.xpose.msra.mxu0 0
        %2624 = vmatprep.subr.bf16.mxu0 0
        %2625 = vmatpush1.bf16.xpose.msra.mxu0 0
        %2626 = vmatprep.subr.bf16.mxu0 0
        %2627 = vmatpush1.bf16.xpose.msra.mxu0 0
        %2628 = vmatprep.subr.bf16.mxu0 0
        %2629 = vmatpush1.bf16.xpose.msra.mxu0 0
        %2630 = vmatprep.subr.bf16.mxu0 0
        %2631 = vmatpush1.bf16.xpose.msra.mxu0 0
        %2632 = vmatprep.subr.bf16.mxu0 0
        %2633 = vmatpush1.bf16.xpose.msra.mxu0 0
        %2634 = vmatprep.subr.bf16.mxu0 0
        %2635 = vmatpush1.bf16.xpose.msra.mxu0 0
        %2636 = vmatprep.subr.bf16.mxu0 0
        %2637 = vmatpush1.bf16.xpose.msra.mxu0 0
        %2638 = vmatprep.subr.bf16.mxu0 0
        %2639 = vmatpush1.bf16.xpose.msra.mxu0 0
        %2640 = vmatprep.subr.bf16.mxu0 0
        %2641 = vmatpush1.bf16.xpose.msra.mxu0 0
        %2642 = vmatprep.subr.bf16.mxu0 0
        %2643 = vmatpush1.bf16.xpose.msra.mxu0 0
        %2644 = vmatprep.subr.bf16.mxu0 0
        %2645 = vmatpush1.bf16.xpose.msra.mxu0 0
        %2646 = vmatprep.mubr.bf16.mxu0 0
        %2647 = vmatmul.mubr.bf16.gmra.mrb[0].mxu0 %v2609
        %v2648 = vpop.f32.mrb[0].mxu0
        %v2649 = vadd.f32 0.0, %v2648
        %v2650 = vpop.f32.mrb[0].mxu0
        %v2651 = vpop.f32.mrb[0].mxu0
        %v2652 = vadd.f32 0.0, %v2651
        %v2653 = vpop.f32.mrb[0].mxu0
        %2654 = vdwg.mxu0
        %2656 = vrot.lane.b32.xlu0 %v1441, 64
        %v2657 = vpop.permute.xlu0 %2656
        %2659 = vrot.lane.b32.xlu0 %v1449, 64
        %v2660 = vpop.permute.xlu0 %2659
        %v2662 = vsel %vm1460, %v2657, 0
        %v2665 = vsel %vm1460, %v2660, 0
        %2667 = vmatprep.subr.bf16.mxu0 0
        %2668 = vmatpush1.bf16.xpose.msra.mxu0 %v2665
        %2669 = vmatprep.subr.bf16.mxu0 0
        %2670 = vmatpush1.bf16.xpose.msra.mxu0 0
        %2671 = vmatprep.subr.bf16.mxu0 0
        %2672 = vmatpush1.bf16.xpose.msra.mxu0 0
        %2673 = vmatprep.subr.bf16.mxu0 0
        %2674 = vmatpush1.bf16.xpose.msra.mxu0 0
        %2675 = vmatprep.subr.bf16.mxu0 0
        %2676 = vmatpush1.bf16.xpose.msra.mxu0 0
        %2677 = vmatprep.subr.bf16.mxu0 0
        %2678 = vmatpush1.bf16.xpose.msra.mxu0 0
        %2679 = vmatprep.subr.bf16.mxu0 0
        %2680 = vmatpush1.bf16.xpose.msra.mxu0 0
        %2681 = vmatprep.subr.bf16.mxu0 0
        %2682 = vmatpush1.bf16.xpose.msra.mxu0 0
        %2683 = vmatprep.subr.bf16.mxu0 0
        %2684 = vmatpush1.bf16.xpose.msra.mxu0 0
        %2685 = vmatprep.subr.bf16.mxu0 0
        %2686 = vmatpush1.bf16.xpose.msra.mxu0 0
        %2687 = vmatprep.subr.bf16.mxu0 0
        %2688 = vmatpush1.bf16.xpose.msra.mxu0 0
        %2689 = vmatprep.subr.bf16.mxu0 0
        %2690 = vmatpush1.bf16.xpose.msra.mxu0 0
        %2691 = vmatprep.subr.bf16.mxu0 0
        %2692 = vmatpush1.bf16.xpose.msra.mxu0 0
        %2693 = vmatprep.subr.bf16.mxu0 0
        %2694 = vmatpush1.bf16.xpose.msra.mxu0 0
        %2695 = vmatprep.subr.bf16.mxu0 0
        %2696 = vmatpush1.bf16.xpose.msra.mxu0 0
        %2697 = vmatprep.subr.bf16.mxu0 0
        %2698 = vmatpush1.bf16.xpose.msra.mxu0 0
        %2699 = vmatprep.mubr.bf16.mxu0 0
        %2700 = vmatmul.mubr.bf16.gmra.mrb[0].mxu0 %v2662
        %v2701 = vpop.f32.mrb[0].mxu0
        %v2702 = vadd.f32 0.0, %v2701
        %v2703 = vpop.f32.mrb[0].mxu0
        %v2704 = vpop.f32.mrb[0].mxu0
        %v2705 = vadd.f32 0.0, %v2704
        %v2706 = vpop.f32.mrb[0].mxu0
        %2707 = vdwg.mxu0
        %2709 = vrot.lane.b32.xlu0 %v1442, 64
        %v2710 = vpop.permute.xlu0 %2709
        %2712 = vrot.lane.b32.xlu0 %v1450, 64
        %v2713 = vpop.permute.xlu0 %2712
        %v2715 = vsel %vm1460, %v2710, 0
        %v2718 = vsel %vm1460, %v2713, 0
        %2720 = vmatprep.subr.bf16.mxu0 0
        %2721 = vmatpush1.bf16.xpose.msra.mxu0 %v2718
        %2722 = vmatprep.subr.bf16.mxu0 0
        %2723 = vmatpush1.bf16.xpose.msra.mxu0 0
        %2724 = vmatprep.subr.bf16.mxu0 0
        %2725 = vmatpush1.bf16.xpose.msra.mxu0 0
        %2726 = vmatprep.subr.bf16.mxu0 0
        %2727 = vmatpush1.bf16.xpose.msra.mxu0 0
        %2728 = vmatprep.subr.bf16.mxu0 0
        %2729 = vmatpush1.bf16.xpose.msra.mxu0 0
        %2730 = vmatprep.subr.bf16.mxu0 0
        %2731 = vmatpush1.bf16.xpose.msra.mxu0 0
        %2732 = vmatprep.subr.bf16.mxu0 0
        %2733 = vmatpush1.bf16.xpose.msra.mxu0 0
        %2734 = vmatprep.subr.bf16.mxu0 0
        %2735 = vmatpush1.bf16.xpose.msra.mxu0 0
        %2736 = vmatprep.subr.bf16.mxu0 0
        %2737 = vmatpush1.bf16.xpose.msra.mxu0 0
        %2738 = vmatprep.subr.bf16.mxu0 0
        %2739 = vmatpush1.bf16.xpose.msra.mxu0 0
        %2740 = vmatprep.subr.bf16.mxu0 0
        %2741 = vmatpush1.bf16.xpose.msra.mxu0 0
        %2742 = vmatprep.subr.bf16.mxu0 0
        %2743 = vmatpush1.bf16.xpose.msra.mxu0 0
        %2744 = vmatprep.subr.bf16.mxu0 0
        %2745 = vmatpush1.bf16.xpose.msra.mxu0 0
        %2746 = vmatprep.subr.bf16.mxu0 0
        %2747 = vmatpush1.bf16.xpose.msra.mxu0 0
        %2748 = vmatprep.subr.bf16.mxu0 0
        %2749 = vmatpush1.bf16.xpose.msra.mxu0 0
        %2750 = vmatprep.subr.bf16.mxu0 0
        %2751 = vmatpush1.bf16.xpose.msra.mxu0 0
        %2752 = vmatprep.mubr.bf16.mxu0 0
        %2753 = vmatmul.mubr.bf16.gmra.mrb[0].mxu0 %v2715
        %v2754 = vpop.f32.mrb[0].mxu0
        %v2755 = vadd.f32 0.0, %v2754
        %v2756 = vpop.f32.mrb[0].mxu0
        %v2757 = vpop.f32.mrb[0].mxu0
        %v2758 = vadd.f32 0.0, %v2757
        %v2759 = vpop.f32.mrb[0].mxu0
        %2760 = vdwg.mxu0
        %2762 = vrot.lane.b32.xlu0 %v1443, 64
        %v2763 = vpop.permute.xlu0 %2762
        %2765 = vrot.lane.b32.xlu0 %v1451, 64
        %v2766 = vpop.permute.xlu0 %2765
        %v2768 = vsel %vm1460, %v2763, 0
        %v2771 = vsel %vm1460, %v2766, 0
        %2773 = vmatprep.subr.bf16.mxu0 0
        %2774 = vmatpush1.bf16.xpose.msra.mxu0 %v2771
        %2775 = vmatprep.subr.bf16.mxu0 0
        %2776 = vmatpush1.bf16.xpose.msra.mxu0 0
        %2777 = vmatprep.subr.bf16.mxu0 0
        %2778 = vmatpush1.bf16.xpose.msra.mxu0 0
        %2779 = vmatprep.subr.bf16.mxu0 0
        %2780 = vmatpush1.bf16.xpose.msra.mxu0 0
        %2781 = vmatprep.subr.bf16.mxu0 0
        %2782 = vmatpush1.bf16.xpose.msra.mxu0 0
        %2783 = vmatprep.subr.bf16.mxu0 0
        %2784 = vmatpush1.bf16.xpose.msra.mxu0 0
        %2785 = vmatprep.subr.bf16.mxu0 0
        %2786 = vmatpush1.bf16.xpose.msra.mxu0 0
        %2787 = vmatprep.subr.bf16.mxu0 0
        %2788 = vmatpush1.bf16.xpose.msra.mxu0 0
        %2789 = vmatprep.subr.bf16.mxu0 0
        %2790 = vmatpush1.bf16.xpose.msra.mxu0 0
        %2791 = vmatprep.subr.bf16.mxu0 0
        %2792 = vmatpush1.bf16.xpose.msra.mxu0 0
        %2793 = vmatprep.subr.bf16.mxu0 0
        %2794 = vmatpush1.bf16.xpose.msra.mxu0 0
        %2795 = vmatprep.subr.bf16.mxu0 0
        %2796 = vmatpush1.bf16.xpose.msra.mxu0 0
        %2797 = vmatprep.subr.bf16.mxu0 0
        %2798 = vmatpush1.bf16.xpose.msra.mxu0 0
        %2799 = vmatprep.subr.bf16.mxu0 0
        %2800 = vmatpush1.bf16.xpose.msra.mxu0 0
        %2801 = vmatprep.subr.bf16.mxu0 0
        %2802 = vmatpush1.bf16.xpose.msra.mxu0 0
        %2803 = vmatprep.subr.bf16.mxu0 0
        %2804 = vmatpush1.bf16.xpose.msra.mxu0 0
        %2805 = vmatprep.mubr.bf16.mxu0 0
        %2806 = vmatmul.mubr.bf16.gmra.mrb[0].mxu0 %v2768
        %v2807 = vpop.f32.mrb[0].mxu0
        %v2808 = vadd.f32 0.0, %v2807
        %v2809 = vpop.f32.mrb[0].mxu0
        %v2810 = vpop.f32.mrb[0].mxu0
        %v2811 = vadd.f32 0.0, %v2810
        %v2812 = vpop.f32.mrb[0].mxu0
        %2813 = vdwg.mxu0
        %v2814 = vmul.f32 %v2437, 0.125
        %v2815 = vmul.f32 %v2440, 0.125
        %v2816 = vmul.f32 %v2490, 0.125
        %v2817 = vmul.f32 %v2493, 0.125
        %v2818 = vmul.f32 %v2543, 0.125
        %v2819 = vmul.f32 %v2546, 0.125
        %v2820 = vmul.f32 %v2596, 0.125
        %v2821 = vmul.f32 %v2599, 0.125
        %v2822 = vmul.f32 %v2649, 0.125
        %v2823 = vmul.f32 %v2652, 0.125
        %v2824 = vmul.f32 %v2702, 0.125
        %v2825 = vmul.f32 %v2705, 0.125
        %v2826 = vmul.f32 %v2755, 0.125
        %v2827 = vmul.f32 %v2758, 0.125
        %v2828 = vmul.f32 %v2808, 0.125
        %v2829 = vmul.f32 %v2811, 0.125
        %v2830 = vsel %vm1853, %v2814, -inf
        %2831 = vmax.xlane.f32.xlu0 %v2830
        %v2832 = vpop.xlane.xlu0 %2831
        %v2833 = vsel %vm1853, %v2815, -inf
        %2834 = vmax.xlane.f32.xlu0 %v2833
        %v2835 = vpop.xlane.xlu0 %2834
        %v2836 = vsel %vm1853, %v2816, -inf
        %2837 = vmax.xlane.f32.xlu0 %v2836
        %v2838 = vpop.xlane.xlu0 %2837
        %v2839 = vsel %vm1853, %v2817, -inf
        %2840 = vmax.xlane.f32.xlu0 %v2839
        %v2841 = vpop.xlane.xlu0 %2840
        %v2842 = vsel %vm1853, %v2818, -inf
        %2843 = vmax.xlane.f32.xlu0 %v2842
        %v2844 = vpop.xlane.xlu0 %2843
        %v2845 = vsel %vm1853, %v2819, -inf
        %2846 = vmax.xlane.f32.xlu0 %v2845
        %v2847 = vpop.xlane.xlu0 %2846
        %v2848 = vsel %vm1853, %v2820, -inf
        %2849 = vmax.xlane.f32.xlu0 %v2848
        %v2850 = vpop.xlane.xlu0 %2849
        %v2851 = vsel %vm1853, %v2821, -inf
        %2852 = vmax.xlane.f32.xlu0 %v2851
        %v2853 = vpop.xlane.xlu0 %2852
        %v2854 = vsel %vm1853, %v2822, -inf
        %2855 = vmax.xlane.f32.xlu0 %v2854
        %v2856 = vpop.xlane.xlu0 %2855
        %v2857 = vsel %vm1853, %v2823, -inf
        %2858 = vmax.xlane.f32.xlu0 %v2857
        %v2859 = vpop.xlane.xlu0 %2858
        %v2860 = vsel %vm1853, %v2824, -inf
        %2861 = vmax.xlane.f32.xlu0 %v2860
        %v2862 = vpop.xlane.xlu0 %2861
        %v2863 = vsel %vm1853, %v2825, -inf
        %2864 = vmax.xlane.f32.xlu0 %v2863
        %v2865 = vpop.xlane.xlu0 %2864
        %v2866 = vsel %vm1853, %v2826, -inf
        %2867 = vmax.xlane.f32.xlu0 %v2866
        %v2868 = vpop.xlane.xlu0 %2867
        %v2869 = vsel %vm1853, %v2827, -inf
        %2870 = vmax.xlane.f32.xlu0 %v2869
        %v2871 = vpop.xlane.xlu0 %2870
        %v2872 = vsel %vm1853, %v2828, -inf
        %2873 = vmax.xlane.f32.xlu0 %v2872
        %v2874 = vpop.xlane.xlu0 %2873
        %v2875 = vsel %vm1853, %v2829, -inf
        %2876 = vmax.xlane.f32.xlu0 %v2875
        %v2877 = vpop.xlane.xlu0 %2876
        %v2878 = vsub.f32 %v2814, %v2832
        %v2879 = vsub.f32 %v2815, %v2835
        %v2880 = vsub.f32 %v2816, %v2838
        %v2881 = vsub.f32 %v2817, %v2841
        %v2882 = vsub.f32 %v2818, %v2844
        %v2883 = vsub.f32 %v2819, %v2847
        %v2884 = vsub.f32 %v2820, %v2850
        %v2885 = vsub.f32 %v2821, %v2853
        %v2886 = vsub.f32 %v2822, %v2856
        %v2887 = vsub.f32 %v2823, %v2859
        %v2888 = vsub.f32 %v2824, %v2862
        %v2889 = vsub.f32 %v2825, %v2865
        %v2890 = vsub.f32 %v2826, %v2868
        %v2891 = vsub.f32 %v2827, %v2871
        %v2892 = vsub.f32 %v2828, %v2874
        %v2893 = vsub.f32 %v2829, %v2877
        %v2894 = vmul.f32 %v2878, 1.442695
        %v2895 = vpow.pop %v2894
        %v2896 = vmul.f32 %v2879, 1.442695
        %v2897 = vpow.pop %v2896
        %v2898 = vmul.f32 %v2880, 1.442695
        %v2899 = vpow.pop %v2898
        %v2900 = vmul.f32 %v2881, 1.442695
        %v2901 = vpow.pop %v2900
        %v2902 = vmul.f32 %v2882, 1.442695
        %v2903 = vpow.pop %v2902
        %v2904 = vmul.f32 %v2883, 1.442695
        %v2905 = vpow.pop %v2904
        %v2906 = vmul.f32 %v2884, 1.442695
        %v2907 = vpow.pop %v2906
        %v2908 = vmul.f32 %v2885, 1.442695
        %v2909 = vpow.pop %v2908
        %v2910 = vmul.f32 %v2886, 1.442695
        %v2911 = vpow.pop %v2910
        %v2912 = vmul.f32 %v2887, 1.442695
        %v2913 = vpow.pop %v2912
        %v2914 = vmul.f32 %v2888, 1.442695
        %v2915 = vpow.pop %v2914
        %v2916 = vmul.f32 %v2889, 1.442695
        %v2917 = vpow.pop %v2916
        %v2918 = vmul.f32 %v2890, 1.442695
        %v2919 = vpow.pop %v2918
        %v2920 = vmul.f32 %v2891, 1.442695
        %v2921 = vpow.pop %v2920
        %v2922 = vmul.f32 %v2892, 1.442695
        %v2923 = vpow.pop %v2922
        %v2924 = vmul.f32 %v2893, 1.442695
        %v2925 = vpow.pop %v2924
        %v2926 = vsel %vm1853, %v2895, 0.0
        %2927 = vadd.xlane.f32.xlu0 %v2926
        %v2928 = vpop.xlane.xlu0 %2927
        %v2929 = vsel %vm1853, %v2897, 0.0
        %2930 = vadd.xlane.f32.xlu0 %v2929
        %v2931 = vpop.xlane.xlu0 %2930
        %v2932 = vsel %vm1853, %v2899, 0.0
        %2933 = vadd.xlane.f32.xlu0 %v2932
        %v2934 = vpop.xlane.xlu0 %2933
        %v2935 = vsel %vm1853, %v2901, 0.0
        %2936 = vadd.xlane.f32.xlu0 %v2935
        %v2937 = vpop.xlane.xlu0 %2936
        %v2938 = vsel %vm1853, %v2903, 0.0
        %2939 = vadd.xlane.f32.xlu0 %v2938
        %v2940 = vpop.xlane.xlu0 %2939
        %v2941 = vsel %vm1853, %v2905, 0.0
        %2942 = vadd.xlane.f32.xlu0 %v2941
        %v2943 = vpop.xlane.xlu0 %2942
        %v2944 = vsel %vm1853, %v2907, 0.0
        %2945 = vadd.xlane.f32.xlu0 %v2944
        %v2946 = vpop.xlane.xlu0 %2945
        %v2947 = vsel %vm1853, %v2909, 0.0
        %2948 = vadd.xlane.f32.xlu0 %v2947
        %v2949 = vpop.xlane.xlu0 %2948
        %v2950 = vsel %vm1853, %v2911, 0.0
        %2951 = vadd.xlane.f32.xlu0 %v2950
        %v2952 = vpop.xlane.xlu0 %2951
        %v2953 = vsel %vm1853, %v2913, 0.0
        %2954 = vadd.xlane.f32.xlu0 %v2953
        %v2955 = vpop.xlane.xlu0 %2954
        %v2956 = vsel %vm1853, %v2915, 0.0
        %2957 = vadd.xlane.f32.xlu0 %v2956
        %v2958 = vpop.xlane.xlu0 %2957
        %v2959 = vsel %vm1853, %v2917, 0.0
        %2960 = vadd.xlane.f32.xlu0 %v2959
        %v2961 = vpop.xlane.xlu0 %2960
        %v2962 = vsel %vm1853, %v2919, 0.0
        %2963 = vadd.xlane.f32.xlu0 %v2962
        %v2964 = vpop.xlane.xlu0 %2963
        %v2965 = vsel %vm1853, %v2921, 0.0
        %2966 = vadd.xlane.f32.xlu0 %v2965
        %v2967 = vpop.xlane.xlu0 %2966
        %v2968 = vsel %vm1853, %v2923, 0.0
        %2969 = vadd.xlane.f32.xlu0 %v2968
        %v2970 = vpop.xlane.xlu0 %2969
        %v2971 = vsel %vm1853, %v2925, 0.0
        %2972 = vadd.xlane.f32.xlu0 %v2971
        %v2973 = vpop.xlane.xlu0 %2972
        %v2974 = vrcp.pop %v2928
        %v2975 = vrcp.pop %v2931
        %v2976 = vrcp.pop %v2934
        %v2977 = vrcp.pop %v2937
        %v2978 = vrcp.pop %v2940
        %v2979 = vrcp.pop %v2943
        %v2980 = vrcp.pop %v2946
        %v2981 = vrcp.pop %v2949
        %v2982 = vrcp.pop %v2952
        %v2983 = vrcp.pop %v2955
        %v2984 = vrcp.pop %v2958
        %v2985 = vrcp.pop %v2961
        %v2986 = vrcp.pop %v2964
        %v2987 = vrcp.pop %v2967
        %v2988 = vrcp.pop %v2970
        %v2989 = vrcp.pop %v2973
        %v2990 = vmul.f32 %v2895, %v2974
        %v2991 = vmul.f32 %v2897, %v2975
        %v2992 = vmul.f32 %v2899, %v2976
        %v2993 = vmul.f32 %v2901, %v2977
        %v2994 = vmul.f32 %v2903, %v2978
        %v2995 = vmul.f32 %v2905, %v2979
        %v2996 = vmul.f32 %v2907, %v2980
        %v2997 = vmul.f32 %v2909, %v2981
        %v2998 = vmul.f32 %v2911, %v2982
        %v2999 = vmul.f32 %v2913, %v2983
        %v3000 = vmul.f32 %v2915, %v2984
        %v3001 = vmul.f32 %v2917, %v2985
        %v3002 = vmul.f32 %v2919, %v2986
        %v3003 = vmul.f32 %v2921, %v2987
        %v3004 = vmul.f32 %v2923, %v2988
        %v3005 = vmul.f32 %v2925, %v2989
        %v3006 = vpack.c.bf16 %v2991, %v2990
        %v3007 = vpack.c.bf16 %v2993, %v2992
        %v3008 = vpack.c.bf16 %v2995, %v2994
        %v3009 = vpack.c.bf16 %v2997, %v2996
        %v3010 = vpack.c.bf16 %v2999, %v2998
        %v3011 = vpack.c.bf16 %v3001, %v3000
        %v3012 = vpack.c.bf16 %v3003, %v3002
        %v3013 = vpack.c.bf16 %v3005, %v3004
        %3015 = vrot.lane.b32.xlu0 %v1452, 64
        %v3016 = vpop.permute.xlu0 %3015
        %v3019 = vsel %vm1853, %v3006, 0
        %3021 = vmatprep.subr.bf16.mxu0 0
        %3022 = vmatpush1.bf16.msra.mxu0 %v3016
        %3023 = vmatprep.subr.bf16.mxu0 0
        %3024 = vmatpush1.bf16.msra.mxu0 0
        %3025 = vmatprep.subr.bf16.mxu0 0
        %3026 = vmatpush1.bf16.msra.mxu0 0
        %3027 = vmatprep.subr.bf16.mxu0 0
        %3028 = vmatpush1.bf16.msra.mxu0 0
        %3029 = vmatprep.subr.bf16.mxu0 0
        %3030 = vmatpush1.bf16.msra.mxu0 0
        %3031 = vmatprep.subr.bf16.mxu0 0
        %3032 = vmatpush1.bf16.msra.mxu0 0
        %3033 = vmatprep.subr.bf16.mxu0 0
        %3034 = vmatpush1.bf16.msra.mxu0 0
        %3035 = vmatprep.subr.bf16.mxu0 0
        %3036 = vmatpush1.bf16.msra.mxu0 0
        %3037 = vmatprep.subr.bf16.mxu0 0
        %3038 = vmatpush1.bf16.msra.mxu0 0
        %3039 = vmatprep.subr.bf16.mxu0 0
        %3040 = vmatpush1.bf16.msra.mxu0 0
        %3041 = vmatprep.subr.bf16.mxu0 0
        %3042 = vmatpush1.bf16.msra.mxu0 0
        %3043 = vmatprep.subr.bf16.mxu0 0
        %3044 = vmatpush1.bf16.msra.mxu0 0
        %3045 = vmatprep.subr.bf16.mxu0 0
        %3046 = vmatpush1.bf16.msra.mxu0 0
        %3047 = vmatprep.subr.bf16.mxu0 0
        %3048 = vmatpush1.bf16.msra.mxu0 0
        %3049 = vmatprep.subr.bf16.mxu0 0
        %3050 = vmatpush1.bf16.msra.mxu0 0
        %3051 = vmatprep.subr.bf16.mxu0 0
        %3052 = vmatpush1.bf16.msra.mxu0 0
        %3053 = vmatprep.mubr.bf16.mxu0 0
        %3054 = vmatmul.mubr.bf16.gmra.mrb[0].mxu0 %v3019
        %v3055 = vpop.f32.mrb[0].mxu0
        %v3056 = vadd.f32 0.0, %v3055
        %v3057 = vpop.f32.mrb[0].mxu0
        %v3058 = vpop.f32.mrb[0].mxu0
        %v3059 = vadd.f32 0.0, %v3058
        %v3060 = vpop.f32.mrb[0].mxu0
        %3061 = vdwg.mxu0
        %3063 = vrot.lane.b32.xlu0 %v1453, 64
        %v3064 = vpop.permute.xlu0 %3063
        %v3067 = vsel %vm1853, %v3007, 0
        %3069 = vmatprep.subr.bf16.mxu0 0
        %3070 = vmatpush1.bf16.msra.mxu0 %v3064
        %3071 = vmatprep.subr.bf16.mxu0 0
        %3072 = vmatpush1.bf16.msra.mxu0 0
        %3073 = vmatprep.subr.bf16.mxu0 0
        %3074 = vmatpush1.bf16.msra.mxu0 0
        %3075 = vmatprep.subr.bf16.mxu0 0
        %3076 = vmatpush1.bf16.msra.mxu0 0
        %3077 = vmatprep.subr.bf16.mxu0 0
        %3078 = vmatpush1.bf16.msra.mxu0 0
        %3079 = vmatprep.subr.bf16.mxu0 0
        %3080 = vmatpush1.bf16.msra.mxu0 0
        %3081 = vmatprep.subr.bf16.mxu0 0
        %3082 = vmatpush1.bf16.msra.mxu0 0
        %3083 = vmatprep.subr.bf16.mxu0 0
        %3084 = vmatpush1.bf16.msra.mxu0 0
        %3085 = vmatprep.subr.bf16.mxu0 0
        %3086 = vmatpush1.bf16.msra.mxu0 0
        %3087 = vmatprep.subr.bf16.mxu0 0
        %3088 = vmatpush1.bf16.msra.mxu0 0
        %3089 = vmatprep.subr.bf16.mxu0 0
        %3090 = vmatpush1.bf16.msra.mxu0 0
        %3091 = vmatprep.subr.bf16.mxu0 0
        %3092 = vmatpush1.bf16.msra.mxu0 0
        %3093 = vmatprep.subr.bf16.mxu0 0
        %3094 = vmatpush1.bf16.msra.mxu0 0
        %3095 = vmatprep.subr.bf16.mxu0 0
        %3096 = vmatpush1.bf16.msra.mxu0 0
        %3097 = vmatprep.subr.bf16.mxu0 0
        %3098 = vmatpush1.bf16.msra.mxu0 0
        %3099 = vmatprep.subr.bf16.mxu0 0
        %3100 = vmatpush1.bf16.msra.mxu0 0
        %3101 = vmatprep.mubr.bf16.mxu0 0
        %3102 = vmatmul.mubr.bf16.gmra.mrb[0].mxu0 %v3067
        %v3103 = vpop.f32.mrb[0].mxu0
        %v3104 = vadd.f32 0.0, %v3103
        %v3105 = vpop.f32.mrb[0].mxu0
        %v3106 = vpop.f32.mrb[0].mxu0
        %v3107 = vadd.f32 0.0, %v3106
        %v3108 = vpop.f32.mrb[0].mxu0
        %3109 = vdwg.mxu0
        %3111 = vrot.lane.b32.xlu0 %v1454, 64
        %v3112 = vpop.permute.xlu0 %3111
        %v3115 = vsel %vm1853, %v3008, 0
        %3117 = vmatprep.subr.bf16.mxu0 0
        %3118 = vmatpush1.bf16.msra.mxu0 %v3112
        %3119 = vmatprep.subr.bf16.mxu0 0
        %3120 = vmatpush1.bf16.msra.mxu0 0
        %3121 = vmatprep.subr.bf16.mxu0 0
        %3122 = vmatpush1.bf16.msra.mxu0 0
        %3123 = vmatprep.subr.bf16.mxu0 0
        %3124 = vmatpush1.bf16.msra.mxu0 0
        %3125 = vmatprep.subr.bf16.mxu0 0
        %3126 = vmatpush1.bf16.msra.mxu0 0
        %3127 = vmatprep.subr.bf16.mxu0 0
        %3128 = vmatpush1.bf16.msra.mxu0 0
        %3129 = vmatprep.subr.bf16.mxu0 0
        %3130 = vmatpush1.bf16.msra.mxu0 0
        %3131 = vmatprep.subr.bf16.mxu0 0
        %3132 = vmatpush1.bf16.msra.mxu0 0
        %3133 = vmatprep.subr.bf16.mxu0 0
        %3134 = vmatpush1.bf16.msra.mxu0 0
        %3135 = vmatprep.subr.bf16.mxu0 0
        %3136 = vmatpush1.bf16.msra.mxu0 0
        %3137 = vmatprep.subr.bf16.mxu0 0
        %3138 = vmatpush1.bf16.msra.mxu0 0
        %3139 = vmatprep.subr.bf16.mxu0 0
        %3140 = vmatpush1.bf16.msra.mxu0 0
        %3141 = vmatprep.subr.bf16.mxu0 0
        %3142 = vmatpush1.bf16.msra.mxu0 0
        %3143 = vmatprep.subr.bf16.mxu0 0
        %3144 = vmatpush1.bf16.msra.mxu0 0
        %3145 = vmatprep.subr.bf16.mxu0 0
        %3146 = vmatpush1.bf16.msra.mxu0 0
        %3147 = vmatprep.subr.bf16.mxu0 0
        %3148 = vmatpush1.bf16.msra.mxu0 0
        %3149 = vmatprep.mubr.bf16.mxu0 0
        %3150 = vmatmul.mubr.bf16.gmra.mrb[0].mxu0 %v3115
        %v3151 = vpop.f32.mrb[0].mxu0
        %v3152 = vadd.f32 0.0, %v3151
        %v3153 = vpop.f32.mrb[0].mxu0
        %v3154 = vpop.f32.mrb[0].mxu0
        %v3155 = vadd.f32 0.0, %v3154
        %v3156 = vpop.f32.mrb[0].mxu0
        %3157 = vdwg.mxu0
        %3159 = vrot.lane.b32.xlu0 %v1455, 64
        %v3160 = vpop.permute.xlu0 %3159
        %v3163 = vsel %vm1853, %v3009, 0
        %3165 = vmatprep.subr.bf16.mxu0 0
        %3166 = vmatpush1.bf16.msra.mxu0 %v3160
        %3167 = vmatprep.subr.bf16.mxu0 0
        %3168 = vmatpush1.bf16.msra.mxu0 0
        %3169 = vmatprep.subr.bf16.mxu0 0
        %3170 = vmatpush1.bf16.msra.mxu0 0
        %3171 = vmatprep.subr.bf16.mxu0 0
        %3172 = vmatpush1.bf16.msra.mxu0 0
        %3173 = vmatprep.subr.bf16.mxu0 0
        %3174 = vmatpush1.bf16.msra.mxu0 0
        %3175 = vmatprep.subr.bf16.mxu0 0
        %3176 = vmatpush1.bf16.msra.mxu0 0
        %3177 = vmatprep.subr.bf16.mxu0 0
        %3178 = vmatpush1.bf16.msra.mxu0 0
        %3179 = vmatprep.subr.bf16.mxu0 0
        %3180 = vmatpush1.bf16.msra.mxu0 0
        %3181 = vmatprep.subr.bf16.mxu0 0
        %3182 = vmatpush1.bf16.msra.mxu0 0
        %3183 = vmatprep.subr.bf16.mxu0 0
        %3184 = vmatpush1.bf16.msra.mxu0 0
        %3185 = vmatprep.subr.bf16.mxu0 0
        %3186 = vmatpush1.bf16.msra.mxu0 0
        %3187 = vmatprep.subr.bf16.mxu0 0
        %3188 = vmatpush1.bf16.msra.mxu0 0
        %3189 = vmatprep.subr.bf16.mxu0 0
        %3190 = vmatpush1.bf16.msra.mxu0 0
        %3191 = vmatprep.subr.bf16.mxu0 0
        %3192 = vmatpush1.bf16.msra.mxu0 0
        %3193 = vmatprep.subr.bf16.mxu0 0
        %3194 = vmatpush1.bf16.msra.mxu0 0
        %3195 = vmatprep.subr.bf16.mxu0 0
        %3196 = vmatpush1.bf16.msra.mxu0 0
        %3197 = vmatprep.mubr.bf16.mxu0 0
        %3198 = vmatmul.mubr.bf16.gmra.mrb[0].mxu0 %v3163
        %v3199 = vpop.f32.mrb[0].mxu0
        %v3200 = vadd.f32 0.0, %v3199
        %v3201 = vpop.f32.mrb[0].mxu0
        %v3202 = vpop.f32.mrb[0].mxu0
        %v3203 = vadd.f32 0.0, %v3202
        %v3204 = vpop.f32.mrb[0].mxu0
        %3205 = vdwg.mxu0
        %3207 = vrot.lane.b32.xlu0 %v1456, 64
        %v3208 = vpop.permute.xlu0 %3207
        %v3211 = vsel %vm1853, %v3010, 0
        %3213 = vmatprep.subr.bf16.mxu0 0
        %3214 = vmatpush1.bf16.msra.mxu0 %v3208
        %3215 = vmatprep.subr.bf16.mxu0 0
        %3216 = vmatpush1.bf16.msra.mxu0 0
        %3217 = vmatprep.subr.bf16.mxu0 0
        %3218 = vmatpush1.bf16.msra.mxu0 0
        %3219 = vmatprep.subr.bf16.mxu0 0
        %3220 = vmatpush1.bf16.msra.mxu0 0
        %3221 = vmatprep.subr.bf16.mxu0 0
        %3222 = vmatpush1.bf16.msra.mxu0 0
        %3223 = vmatprep.subr.bf16.mxu0 0
        %3224 = vmatpush1.bf16.msra.mxu0 0
        %3225 = vmatprep.subr.bf16.mxu0 0
        %3226 = vmatpush1.bf16.msra.mxu0 0
        %3227 = vmatprep.subr.bf16.mxu0 0
        %3228 = vmatpush1.bf16.msra.mxu0 0
        %3229 = vmatprep.subr.bf16.mxu0 0
        %3230 = vmatpush1.bf16.msra.mxu0 0
        %3231 = vmatprep.subr.bf16.mxu0 0
        %3232 = vmatpush1.bf16.msra.mxu0 0
        %3233 = vmatprep.subr.bf16.mxu0 0
        %3234 = vmatpush1.bf16.msra.mxu0 0
        %3235 = vmatprep.subr.bf16.mxu0 0
        %3236 = vmatpush1.bf16.msra.mxu0 0
        %3237 = vmatprep.subr.bf16.mxu0 0
        %3238 = vmatpush1.bf16.msra.mxu0 0
        %3239 = vmatprep.subr.bf16.mxu0 0
        %3240 = vmatpush1.bf16.msra.mxu0 0
        %3241 = vmatprep.subr.bf16.mxu0 0
        %3242 = vmatpush1.bf16.msra.mxu0 0
        %3243 = vmatprep.subr.bf16.mxu0 0
        %3244 = vmatpush1.bf16.msra.mxu0 0
        %3245 = vmatprep.mubr.bf16.mxu0 0
        %3246 = vmatmul.mubr.bf16.gmra.mrb[0].mxu0 %v3211
        %v3247 = vpop.f32.mrb[0].mxu0
        %v3248 = vadd.f32 0.0, %v3247
        %v3249 = vpop.f32.mrb[0].mxu0
        %v3250 = vpop.f32.mrb[0].mxu0
        %v3251 = vadd.f32 0.0, %v3250
        %v3252 = vpop.f32.mrb[0].mxu0
        %3253 = vdwg.mxu0
        %3255 = vrot.lane.b32.xlu0 %v1457, 64
        %v3256 = vpop.permute.xlu0 %3255
        %v3259 = vsel %vm1853, %v3011, 0
        %3261 = vmatprep.subr.bf16.mxu0 0
        %3262 = vmatpush1.bf16.msra.mxu0 %v3256
        %3263 = vmatprep.subr.bf16.mxu0 0
        %3264 = vmatpush1.bf16.msra.mxu0 0
        %3265 = vmatprep.subr.bf16.mxu0 0
        %3266 = vmatpush1.bf16.msra.mxu0 0
        %3267 = vmatprep.subr.bf16.mxu0 0
        %3268 = vmatpush1.bf16.msra.mxu0 0
        %3269 = vmatprep.subr.bf16.mxu0 0
        %3270 = vmatpush1.bf16.msra.mxu0 0
        %3271 = vmatprep.subr.bf16.mxu0 0
        %3272 = vmatpush1.bf16.msra.mxu0 0
        %3273 = vmatprep.subr.bf16.mxu0 0
        %3274 = vmatpush1.bf16.msra.mxu0 0
        %3275 = vmatprep.subr.bf16.mxu0 0
        %3276 = vmatpush1.bf16.msra.mxu0 0
        %3277 = vmatprep.subr.bf16.mxu0 0
        %3278 = vmatpush1.bf16.msra.mxu0 0
        %3279 = vmatprep.subr.bf16.mxu0 0
        %3280 = vmatpush1.bf16.msra.mxu0 0
        %3281 = vmatprep.subr.bf16.mxu0 0
        %3282 = vmatpush1.bf16.msra.mxu0 0
        %3283 = vmatprep.subr.bf16.mxu0 0
        %3284 = vmatpush1.bf16.msra.mxu0 0
        %3285 = vmatprep.subr.bf16.mxu0 0
        %3286 = vmatpush1.bf16.msra.mxu0 0
        %3287 = vmatprep.subr.bf16.mxu0 0
        %3288 = vmatpush1.bf16.msra.mxu0 0
        %3289 = vmatprep.subr.bf16.mxu0 0
        %3290 = vmatpush1.bf16.msra.mxu0 0
        %3291 = vmatprep.subr.bf16.mxu0 0
        %3292 = vmatpush1.bf16.msra.mxu0 0
        %3293 = vmatprep.mubr.bf16.mxu0 0
        %3294 = vmatmul.mubr.bf16.gmra.mrb[0].mxu0 %v3259
        %v3295 = vpop.f32.mrb[0].mxu0
        %v3296 = vadd.f32 0.0, %v3295
        %v3297 = vpop.f32.mrb[0].mxu0
        %v3298 = vpop.f32.mrb[0].mxu0
        %v3299 = vadd.f32 0.0, %v3298
        %v3300 = vpop.f32.mrb[0].mxu0
        %3301 = vdwg.mxu0
        %3303 = vrot.lane.b32.xlu0 %v1458, 64
        %v3304 = vpop.permute.xlu0 %3303
        %v3307 = vsel %vm1853, %v3012, 0
        %3309 = vmatprep.subr.bf16.mxu0 0
        %3310 = vmatpush1.bf16.msra.mxu0 %v3304
        %3311 = vmatprep.subr.bf16.mxu0 0
        %3312 = vmatpush1.bf16.msra.mxu0 0
        %3313 = vmatprep.subr.bf16.mxu0 0
        %3314 = vmatpush1.bf16.msra.mxu0 0
        %3315 = vmatprep.subr.bf16.mxu0 0
        %3316 = vmatpush1.bf16.msra.mxu0 0
        %3317 = vmatprep.subr.bf16.mxu0 0
        %3318 = vmatpush1.bf16.msra.mxu0 0
        %3319 = vmatprep.subr.bf16.mxu0 0
        %3320 = vmatpush1.bf16.msra.mxu0 0
        %3321 = vmatprep.subr.bf16.mxu0 0
        %3322 = vmatpush1.bf16.msra.mxu0 0
        %3323 = vmatprep.subr.bf16.mxu0 0
        %3324 = vmatpush1.bf16.msra.mxu0 0
        %3325 = vmatprep.subr.bf16.mxu0 0
        %3326 = vmatpush1.bf16.msra.mxu0 0
        %3327 = vmatprep.subr.bf16.mxu0 0
        %3328 = vmatpush1.bf16.msra.mxu0 0
        %3329 = vmatprep.subr.bf16.mxu0 0
        %3330 = vmatpush1.bf16.msra.mxu0 0
        %3331 = vmatprep.subr.bf16.mxu0 0
        %3332 = vmatpush1.bf16.msra.mxu0 0
        %3333 = vmatprep.subr.bf16.mxu0 0
        %3334 = vmatpush1.bf16.msra.mxu0 0
        %3335 = vmatprep.subr.bf16.mxu0 0
        %3336 = vmatpush1.bf16.msra.mxu0 0
        %3337 = vmatprep.subr.bf16.mxu0 0
        %3338 = vmatpush1.bf16.msra.mxu0 0
        %3339 = vmatprep.subr.bf16.mxu0 0
        %3340 = vmatpush1.bf16.msra.mxu0 0
        %3341 = vmatprep.mubr.bf16.mxu0 0
        %3342 = vmatmul.mubr.bf16.gmra.mrb[0].mxu0 %v3307
        %v3343 = vpop.f32.mrb[0].mxu0
        %v3344 = vadd.f32 0.0, %v3343
        %v3345 = vpop.f32.mrb[0].mxu0
        %v3346 = vpop.f32.mrb[0].mxu0
        %v3347 = vadd.f32 0.0, %v3346
        %v3348 = vpop.f32.mrb[0].mxu0
        %3349 = vdwg.mxu0
        %3351 = vrot.lane.b32.xlu0 %v1459, 64
        %v3352 = vpop.permute.xlu0 %3351
        %v3355 = vsel %vm1853, %v3013, 0
        %3357 = vmatprep.subr.bf16.mxu0 0
        %3358 = vmatpush1.bf16.msra.mxu0 %v3352
        %3359 = vmatprep.subr.bf16.mxu0 0
        %3360 = vmatpush1.bf16.msra.mxu0 0
        %3361 = vmatprep.subr.bf16.mxu0 0
        %3362 = vmatpush1.bf16.msra.mxu0 0
        %3363 = vmatprep.subr.bf16.mxu0 0
        %3364 = vmatpush1.bf16.msra.mxu0 0
        %3365 = vmatprep.subr.bf16.mxu0 0
        %3366 = vmatpush1.bf16.msra.mxu0 0
        %3367 = vmatprep.subr.bf16.mxu0 0
        %3368 = vmatpush1.bf16.msra.mxu0 0
        %3369 = vmatprep.subr.bf16.mxu0 0
        %3370 = vmatpush1.bf16.msra.mxu0 0
        %3371 = vmatprep.subr.bf16.mxu0 0
        %3372 = vmatpush1.bf16.msra.mxu0 0
        %3373 = vmatprep.subr.bf16.mxu0 0
        %3374 = vmatpush1.bf16.msra.mxu0 0
        %3375 = vmatprep.subr.bf16.mxu0 0
        %3376 = vmatpush1.bf16.msra.mxu0 0
        %3377 = vmatprep.subr.bf16.mxu0 0
        %3378 = vmatpush1.bf16.msra.mxu0 0
        %3379 = vmatprep.subr.bf16.mxu0 0
        %3380 = vmatpush1.bf16.msra.mxu0 0
        %3381 = vmatprep.subr.bf16.mxu0 0
        %3382 = vmatpush1.bf16.msra.mxu0 0
        %3383 = vmatprep.subr.bf16.mxu0 0
        %3384 = vmatpush1.bf16.msra.mxu0 0
        %3385 = vmatprep.subr.bf16.mxu0 0
        %3386 = vmatpush1.bf16.msra.mxu0 0
        %3387 = vmatprep.subr.bf16.mxu0 0
        %3388 = vmatpush1.bf16.msra.mxu0 0
        %3389 = vmatprep.mubr.bf16.mxu0 0
        %3390 = vmatmul.mubr.bf16.gmra.mrb[0].mxu0 %v3355
        %v3391 = vpop.f32.mrb[0].mxu0
        %v3392 = vadd.f32 0.0, %v3391
        %v3393 = vpop.f32.mrb[0].mxu0
        %v3394 = vpop.f32.mrb[0].mxu0
        %v3395 = vadd.f32 0.0, %v3394
        %v3396 = vpop.f32.mrb[0].mxu0
        %3397 = vdwg.mxu0
        %3414 = vrot.lane.b32.xlu0 %v3056, 64
        %v3415 = vpop.permute.xlu0 %3414
        %3416 = vrot.lane.b32.xlu0 %v3059, 64
        %v3417 = vpop.permute.xlu0 %3416
        %3418 = vrot.lane.b32.xlu0 %v3104, 64
        %v3419 = vpop.permute.xlu0 %3418
        %3420 = vrot.lane.b32.xlu0 %v3107, 64
        %v3421 = vpop.permute.xlu0 %3420
        %3422 = vrot.lane.b32.xlu0 %v3152, 64
        %v3423 = vpop.permute.xlu0 %3422
        %3424 = vrot.lane.b32.xlu0 %v3155, 64
        %v3425 = vpop.permute.xlu0 %3424
        %3426 = vrot.lane.b32.xlu0 %v3200, 64
        %v3427 = vpop.permute.xlu0 %3426
        %3428 = vrot.lane.b32.xlu0 %v3203, 64
        %v3429 = vpop.permute.xlu0 %3428
        %3430 = vrot.lane.b32.xlu0 %v3248, 64
        %v3431 = vpop.permute.xlu0 %3430
        %3432 = vrot.lane.b32.xlu0 %v3251, 64
        %v3433 = vpop.permute.xlu0 %3432
        %3434 = vrot.lane.b32.xlu0 %v3296, 64
        %v3435 = vpop.permute.xlu0 %3434
        %3436 = vrot.lane.b32.xlu0 %v3299, 64
        %v3437 = vpop.permute.xlu0 %3436
        %3438 = vrot.lane.b32.xlu0 %v3344, 64
        %v3439 = vpop.permute.xlu0 %3438
        %3440 = vrot.lane.b32.xlu0 %v3347, 64
        %v3441 = vpop.permute.xlu0 %3440
        %3442 = vrot.lane.b32.xlu0 %v3392, 64
        %v3443 = vpop.permute.xlu0 %3442
        %3444 = vrot.lane.b32.xlu0 %v3395, 64
        %v3445 = vpop.permute.xlu0 %3444
        %v3462 = vsel %vm1460, %v2076, %v3415
        %v3463 = vsel %vm1460, %v2079, %v3417
        %v3464 = vsel %vm1460, %v2120, %v3419
        %v3465 = vsel %vm1460, %v2123, %v3421
        %v3466 = vsel %vm1460, %v2164, %v3423
        %v3467 = vsel %vm1460, %v2167, %v3425
        %v3468 = vsel %vm1460, %v2208, %v3427
        %v3469 = vsel %vm1460, %v2211, %v3429
        %v3470 = vsel %vm1460, %v2252, %v3431
        %v3471 = vsel %vm1460, %v2255, %v3433
        %v3472 = vsel %vm1460, %v2296, %v3435
        %v3473 = vsel %vm1460, %v2299, %v3437
        %v3474 = vsel %vm1460, %v2340, %v3439
        %v3475 = vsel %vm1460, %v2343, %v3441
        %v3476 = vsel %vm1460, %v2384, %v3443
        %v3477 = vsel %vm1460, %v2387, %v3445
        %v3478 = vpack.c.bf16 %v3463, %v3462
        %v3479 = vpack.c.bf16 %v3465, %v3464
        %v3480 = vpack.c.bf16 %v3467, %v3466
        %v3481 = vpack.c.bf16 %v3469, %v3468
        %v3482 = vpack.c.bf16 %v3471, %v3470
        %v3483 = vpack.c.bf16 %v3473, %v3472
        %v3484 = vpack.c.bf16 %v3475, %v3474
        %v3485 = vpack.c.bf16 %v3477, %v3476
        %v3486 = vld [vmem:[#allocation10] sm:$0xf]
        %v3487 = vld [vmem:[#allocation10 + $0x4] sm:$0xf]
        %v3488 = vld [vmem:[#allocation10 + $0x8] sm:$0xf]
        %v3489 = vld [vmem:[#allocation10 + $0xc] sm:$0xf]
        %v3490 = vld [vmem:[#allocation10 + $0x10] sm:$0xf]
        %v3491 = vld [vmem:[#allocation10 + $0x14] sm:$0xf]
        %v3492 = vld [vmem:[#allocation10 + $0x18] sm:$0xf]
        %v3493 = vld [vmem:[#allocation10 + $0x1c] sm:$0xf]
        %v3494 = vld [vmem:[#allocation10 + $0x20] sm:$0xf]
        %v3495 = vld [vmem:[#allocation10 + $0x24] sm:$0xf]
        %v3496 = vld [vmem:[#allocation10 + $0x28] sm:$0xf]
        %v3497 = vld [vmem:[#allocation10 + $0x2c] sm:$0xf]
        %v3498 = vld [vmem:[#allocation10 + $0x30] sm:$0xf]
        %v3499 = vld [vmem:[#allocation10 + $0x34] sm:$0xf]
        %v3500 = vld [vmem:[#allocation10 + $0x38] sm:$0xf]
        %v3501 = vld [vmem:[#allocation10 + $0x3c] sm:$0xf]
        %v3502 = vld [vmem:[%s9] sm:$0x1]
        %v3504 = vlaneseq
        %v3505 = vshrl.u32 %v3504, 7
        %v3506 = vsub.s32 0, %v3505
        %v3507 = vrot.slane %v3502, %v3506
        %v3525 = vunpack.c.l.b16 %v3486
        %v3526 = vunpack.c.l.b16 %v3487
        %v3527 = vunpack.c.l.b16 %v3488
        %v3528 = vunpack.c.l.b16 %v3489
        %v3529 = vunpack.c.l.b16 %v3490
        %v3530 = vunpack.c.l.b16 %v3491
        %v3531 = vunpack.c.l.b16 %v3492
        %v3532 = vunpack.c.l.b16 %v3493
        %v3533 = vunpack.c.l.b16 %v3494
        %v3534 = vunpack.c.l.b16 %v3495
        %v3535 = vunpack.c.l.b16 %v3496
        %v3536 = vunpack.c.l.b16 %v3497
        %v3537 = vunpack.c.l.b16 %v3498
        %v3538 = vunpack.c.l.b16 %v3499
        %v3539 = vunpack.c.l.b16 %v3500
        %v3540 = vunpack.c.l.b16 %v3501
        %v3541 = vpack.c.b16 %v3526, %v3525
        %v3542 = vpack.c.b16 %v3528, %v3527
        %v3543 = vpack.c.b16 %v3530, %v3529
        %v3544 = vpack.c.b16 %v3532, %v3531
        %v3545 = vpack.c.b16 %v3534, %v3533
        %v3546 = vpack.c.b16 %v3536, %v3535
        %v3547 = vpack.c.b16 %v3538, %v3537
        %v3548 = vpack.c.b16 %v3540, %v3539
        %3557 = vmatprep.subr.bf16.mxu0 0
        %3558 = vmatpush1.bf16.msra.mxu0 %v3541
        %3559 = vmatprep.subr.bf16.mxu0 0
        %3560 = vmatpush1.bf16.msra.mxu0 %v3542
        %3561 = vmatprep.subr.bf16.mxu0 0
        %3562 = vmatpush1.bf16.msra.mxu0 %v3543
        %3563 = vmatprep.subr.bf16.mxu0 0
        %3564 = vmatpush1.bf16.msra.mxu0 %v3544
        %3565 = vmatprep.subr.bf16.mxu0 0
        %3566 = vmatpush1.bf16.msra.mxu0 %v3545
        %3567 = vmatprep.subr.bf16.mxu0 0
        %3568 = vmatpush1.bf16.msra.mxu0 %v3546
        %3569 = vmatprep.subr.bf16.mxu0 0
        %3570 = vmatpush1.bf16.msra.mxu0 %v3547
        %3571 = vmatprep.subr.bf16.mxu0 0
        %3572 = vmatpush1.bf16.msra.mxu0 %v3548
        %3573 = vmatprep.subr.bf16.mxu0 0
        %3574 = vmatpush1.bf16.msra.mxu0 0
        %3575 = vmatprep.subr.bf16.mxu0 0
        %3576 = vmatpush1.bf16.msra.mxu0 0
        %3577 = vmatprep.subr.bf16.mxu0 0
        %3578 = vmatpush1.bf16.msra.mxu0 0
        %3579 = vmatprep.subr.bf16.mxu0 0
        %3580 = vmatpush1.bf16.msra.mxu0 0
        %3581 = vmatprep.subr.bf16.mxu0 0
        %3582 = vmatpush1.bf16.msra.mxu0 0
        %3583 = vmatprep.subr.bf16.mxu0 0
        %3584 = vmatpush1.bf16.msra.mxu0 0
        %3585 = vmatprep.subr.bf16.mxu0 0
        %3586 = vmatpush1.bf16.msra.mxu0 0
        %3587 = vmatprep.subr.bf16.mxu0 0
        %3588 = vmatpush1.bf16.msra.mxu0 0
        %3589 = vmatprep.mubr.bf16.mxu0 0
        %3590 = vmatmul.mubr.bf16.gmra.mrb[0].mxu0 %v3478
        %v3591 = vpop.f32.mrb[0].mxu0
        %v3592 = vadd.f32 %v3507, %v3591
        %v3593 = vpop.f32.mrb[0].mxu0
        %v3594 = vpop.f32.mrb[0].mxu0
        %v3595 = vadd.f32 %v3507, %v3594
        %v3596 = vpop.f32.mrb[0].mxu0
        %3597 = vmatprep.mubr.bf16.mxu0 0
        %3598 = vmatmul.mubr.bf16.gmra.mrb[0].mxu0 %v3479
        %v3599 = vpop.f32.mrb[0].mxu0
        %v3600 = vadd.f32 %v3507, %v3599
        %v3601 = vpop.f32.mrb[0].mxu0
        %v3602 = vpop.f32.mrb[0].mxu0
        %v3603 = vadd.f32 %v3507, %v3602
        %v3604 = vpop.f32.mrb[0].mxu0
        %3605 = vmatprep.mubr.bf16.mxu0 0
        %3606 = vmatmul.mubr.bf16.gmra.mrb[0].mxu0 %v3480
        %v3607 = vpop.f32.mrb[0].mxu0
        %v3608 = vadd.f32 %v3507, %v3607
        %v3609 = vpop.f32.mrb[0].mxu0
        %v3610 = vpop.f32.mrb[0].mxu0
        %v3611 = vadd.f32 %v3507, %v3610
        %v3612 = vpop.f32.mrb[0].mxu0
        %3613 = vmatprep.mubr.bf16.mxu0 0
        %3614 = vmatmul.mubr.bf16.gmra.mrb[0].mxu0 %v3481
        %v3615 = vpop.f32.mrb[0].mxu0
        %v3616 = vadd.f32 %v3507, %v3615
        %v3617 = vpop.f32.mrb[0].mxu0
        %v3618 = vpop.f32.mrb[0].mxu0
        %v3619 = vadd.f32 %v3507, %v3618
        %v3620 = vpop.f32.mrb[0].mxu0
        %3621 = vmatprep.mubr.bf16.mxu0 0
        %3622 = vmatmul.mubr.bf16.gmra.mrb[0].mxu0 %v3482
        %v3623 = vpop.f32.mrb[0].mxu0
        %v3624 = vadd.f32 %v3507, %v3623
        %v3625 = vpop.f32.mrb[0].mxu0
        %v3626 = vpop.f32.mrb[0].mxu0
        %v3627 = vadd.f32 %v3507, %v3626
        %v3628 = vpop.f32.mrb[0].mxu0
        %3629 = vmatprep.mubr.bf16.mxu0 0
        %3630 = vmatmul.mubr.bf16.gmra.mrb[0].mxu0 %v3483
        %v3631 = vpop.f32.mrb[0].mxu0
        %v3632 = vadd.f32 %v3507, %v3631
        %v3633 = vpop.f32.mrb[0].mxu0
        %v3634 = vpop.f32.mrb[0].mxu0
        %v3635 = vadd.f32 %v3507, %v3634
        %v3636 = vpop.f32.mrb[0].mxu0
        %3637 = vmatprep.mubr.bf16.mxu0 0
        %3638 = vmatmul.mubr.bf16.gmra.mrb[0].mxu0 %v3484
        %v3639 = vpop.f32.mrb[0].mxu0
        %v3640 = vadd.f32 %v3507, %v3639
        %v3641 = vpop.f32.mrb[0].mxu0
        %v3642 = vpop.f32.mrb[0].mxu0
        %v3643 = vadd.f32 %v3507, %v3642
        %v3644 = vpop.f32.mrb[0].mxu0
        %3645 = vmatprep.mubr.bf16.mxu0 0
        %3646 = vmatmul.mubr.bf16.gmra.mrb[0].mxu0 %v3485
        %v3647 = vpop.f32.mrb[0].mxu0
        %v3648 = vadd.f32 %v3507, %v3647
        %v3649 = vpop.f32.mrb[0].mxu0
        %v3650 = vpop.f32.mrb[0].mxu0
        %v3651 = vadd.f32 %v3507, %v3650
        %v3652 = vpop.f32.mrb[0].mxu0
        %3653 = vdwg.mxu0
        %v3654 = vadd.f32 %v1025, %v3592
        %v3655 = vadd.f32 %v1026, %v3595
        %v3656 = vadd.f32 %v1027, %v3600
        %v3657 = vadd.f32 %v1028, %v3603
        %v3658 = vadd.f32 %v1029, %v3608
        %v3659 = vadd.f32 %v1030, %v3611
        %v3660 = vadd.f32 %v1031, %v3616
        %v3661 = vadd.f32 %v1032, %v3619
        %v3662 = vadd.f32 %v1033, %v3624
        %v3663 = vadd.f32 %v1034, %v3627
        %v3664 = vadd.f32 %v1035, %v3632
        %v3665 = vadd.f32 %v1036, %v3635
        %v3666 = vadd.f32 %v1037, %v3640
        %v3667 = vadd.f32 %v1038, %v3643
        %v3668 = vadd.f32 %v1039, %v3648
        %v3669 = vadd.f32 %v1040, %v3651
        %v3670 = vld [vmem:[%s10] sm:$0x1]
        %v3671 = vld [vmem:[%s11] sm:$0x1]
        %3672 = vadd.xlane.f32.xlu0 %v3654
        %v3673 = vpop.xlane.xlu0 %3672
        %3674 = vadd.xlane.f32.xlu0 %v3655
        %v3675 = vpop.xlane.xlu0 %3674
        %3676 = vadd.xlane.f32.xlu0 %v3656
        %v3677 = vpop.xlane.xlu0 %3676
        %3678 = vadd.xlane.f32.xlu0 %v3657
        %v3679 = vpop.xlane.xlu0 %3678
        %3680 = vadd.xlane.f32.xlu0 %v3658
        %v3681 = vpop.xlane.xlu0 %3680
        %3682 = vadd.xlane.f32.xlu0 %v3659
        %v3683 = vpop.xlane.xlu0 %3682
        %3684 = vadd.xlane.f32.xlu0 %v3660
        %v3685 = vpop.xlane.xlu0 %3684
        %3686 = vadd.xlane.f32.xlu0 %v3661
        %v3687 = vpop.xlane.xlu0 %3686
        %3688 = vadd.xlane.f32.xlu0 %v3662
        %v3689 = vpop.xlane.xlu0 %3688
        %3690 = vadd.xlane.f32.xlu0 %v3663
        %v3691 = vpop.xlane.xlu0 %3690
        %3692 = vadd.xlane.f32.xlu0 %v3664
        %v3693 = vpop.xlane.xlu0 %3692
        %3694 = vadd.xlane.f32.xlu0 %v3665
        %v3695 = vpop.xlane.xlu0 %3694
        %3696 = vadd.xlane.f32.xlu0 %v3666
        %v3697 = vpop.xlane.xlu0 %3696
        %3698 = vadd.xlane.f32.xlu0 %v3667
        %v3699 = vpop.xlane.xlu0 %3698
        %3700 = vadd.xlane.f32.xlu0 %v3668
        %v3701 = vpop.xlane.xlu0 %3700
        %3702 = vadd.xlane.f32.xlu0 %v3669
        %v3703 = vpop.xlane.xlu0 %3702
        %v3704 = vmul.f32 %v3673, %v852
        %v3705 = vmul.f32 %v3675, %v852
        %v3706 = vmul.f32 %v3677, %v852
        %v3707 = vmul.f32 %v3679, %v852
        %v3708 = vmul.f32 %v3681, %v852
        %v3709 = vmul.f32 %v3683, %v852
        %v3710 = vmul.f32 %v3685, %v852
        %v3711 = vmul.f32 %v3687, %v852
        %v3712 = vmul.f32 %v3689, %v852
        %v3713 = vmul.f32 %v3691, %v852
        %v3714 = vmul.f32 %v3693, %v852
        %v3715 = vmul.f32 %v3695, %v852
        %v3716 = vmul.f32 %v3697, %v852
        %v3717 = vmul.f32 %v3699, %v852
        %v3718 = vmul.f32 %v3701, %v852
        %v3719 = vmul.f32 %v3703, %v852
        %v3720 = vsub.f32 %v3654, %v3704
        %v3721 = vsub.f32 %v3655, %v3705
        %v3722 = vsub.f32 %v3656, %v3706
        %v3723 = vsub.f32 %v3657, %v3707
        %v3724 = vsub.f32 %v3658, %v3708
        %v3725 = vsub.f32 %v3659, %v3709
        %v3726 = vsub.f32 %v3660, %v3710
        %v3727 = vsub.f32 %v3661, %v3711
        %v3728 = vsub.f32 %v3662, %v3712
        %v3729 = vsub.f32 %v3663, %v3713
        %v3730 = vsub.f32 %v3664, %v3714
        %v3731 = vsub.f32 %v3665, %v3715
        %v3732 = vsub.f32 %v3666, %v3716
        %v3733 = vsub.f32 %v3667, %v3717
        %v3734 = vsub.f32 %v3668, %v3718
        %v3735 = vsub.f32 %v3669, %v3719
        %v3736 = vmul.f32 %v3720, %v3720
        %v3737 = vmul.f32 %v3721, %v3721
        %v3738 = vmul.f32 %v3722, %v3722
        %v3739 = vmul.f32 %v3723, %v3723
        %v3740 = vmul.f32 %v3724, %v3724
        %v3741 = vmul.f32 %v3725, %v3725
        %v3742 = vmul.f32 %v3726, %v3726
        %v3743 = vmul.f32 %v3727, %v3727
        %v3744 = vmul.f32 %v3728, %v3728
        %v3745 = vmul.f32 %v3729, %v3729
        %v3746 = vmul.f32 %v3730, %v3730
        %v3747 = vmul.f32 %v3731, %v3731
        %v3748 = vmul.f32 %v3732, %v3732
        %v3749 = vmul.f32 %v3733, %v3733
        %v3750 = vmul.f32 %v3734, %v3734
        %v3751 = vmul.f32 %v3735, %v3735
        %3752 = vadd.xlane.f32.xlu0 %v3736
        %v3753 = vpop.xlane.xlu0 %3752
        %3754 = vadd.xlane.f32.xlu0 %v3737
        %v3755 = vpop.xlane.xlu0 %3754
        %3756 = vadd.xlane.f32.xlu0 %v3738
        %v3757 = vpop.xlane.xlu0 %3756
        %3758 = vadd.xlane.f32.xlu0 %v3739
        %v3759 = vpop.xlane.xlu0 %3758
        %3760 = vadd.xlane.f32.xlu0 %v3740
        %v3761 = vpop.xlane.xlu0 %3760
        %3762 = vadd.xlane.f32.xlu0 %v3741
        %v3763 = vpop.xlane.xlu0 %3762
        %3764 = vadd.xlane.f32.xlu0 %v3742
        %v3765 = vpop.xlane.xlu0 %3764
        %3766 = vadd.xlane.f32.xlu0 %v3743
        %v3767 = vpop.xlane.xlu0 %3766
        %3768 = vadd.xlane.f32.xlu0 %v3744
        %v3769 = vpop.xlane.xlu0 %3768
        %3770 = vadd.xlane.f32.xlu0 %v3745
        %v3771 = vpop.xlane.xlu0 %3770
        %3772 = vadd.xlane.f32.xlu0 %v3746
        %v3773 = vpop.xlane.xlu0 %3772
        %3774 = vadd.xlane.f32.xlu0 %v3747
        %v3775 = vpop.xlane.xlu0 %3774
        %3776 = vadd.xlane.f32.xlu0 %v3748
        %v3777 = vpop.xlane.xlu0 %3776
        %3778 = vadd.xlane.f32.xlu0 %v3749
        %v3779 = vpop.xlane.xlu0 %3778
        %3780 = vadd.xlane.f32.xlu0 %v3750
        %v3781 = vpop.xlane.xlu0 %3780
        %3782 = vadd.xlane.f32.xlu0 %v3751
        %v3783 = vpop.xlane.xlu0 %3782
        %v3784 = vmul.f32 %v3753, %v852
        %v3785 = vmul.f32 %v3755, %v852
        %v3786 = vmul.f32 %v3757, %v852
        %v3787 = vmul.f32 %v3759, %v852
        %v3788 = vmul.f32 %v3761, %v852
        %v3789 = vmul.f32 %v3763, %v852
        %v3790 = vmul.f32 %v3765, %v852
        %v3791 = vmul.f32 %v3767, %v852
        %v3792 = vmul.f32 %v3769, %v852
        %v3793 = vmul.f32 %v3771, %v852
        %v3794 = vmul.f32 %v3773, %v852
        %v3795 = vmul.f32 %v3775, %v852
        %v3796 = vmul.f32 %v3777, %v852
        %v3797 = vmul.f32 %v3779, %v852
        %v3798 = vmul.f32 %v3781, %v852
        %v3799 = vmul.f32 %v3783, %v852
        %v3800 = vadd.f32 %v3784, 1e-05
        %v3801 = vadd.f32 %v3785, 1e-05
        %v3802 = vadd.f32 %v3786, 1e-05
        %v3803 = vadd.f32 %v3787, 1e-05
        %v3804 = vadd.f32 %v3788, 1e-05
        %v3805 = vadd.f32 %v3789, 1e-05
        %v3806 = vadd.f32 %v3790, 1e-05
        %v3807 = vadd.f32 %v3791, 1e-05
        %v3808 = vadd.f32 %v3792, 1e-05
        %v3809 = vadd.f32 %v3793, 1e-05
        %v3810 = vadd.f32 %v3794, 1e-05
        %v3811 = vadd.f32 %v3795, 1e-05
        %v3812 = vadd.f32 %v3796, 1e-05
        %v3813 = vadd.f32 %v3797, 1e-05
        %v3814 = vadd.f32 %v3798, 1e-05
        %v3815 = vadd.f32 %v3799, 1e-05
        %v3816 = vrsqrt.pop %v3800
        %v3817 = vrsqrt.pop %v3801
        %v3818 = vrsqrt.pop %v3802
        %v3819 = vrsqrt.pop %v3803
        %v3820 = vrsqrt.pop %v3804
        %v3821 = vrsqrt.pop %v3805
        %v3822 = vrsqrt.pop %v3806
        %v3823 = vrsqrt.pop %v3807
        %v3824 = vrsqrt.pop %v3808
        %v3825 = vrsqrt.pop %v3809
        %v3826 = vrsqrt.pop %v3810
        %v3827 = vrsqrt.pop %v3811
        %v3828 = vrsqrt.pop %v3812
        %v3829 = vrsqrt.pop %v3813
        %v3830 = vrsqrt.pop %v3814
        %v3831 = vrsqrt.pop %v3815
        %v3832 = vmul.f32 %v3720, %v3816
        %v3833 = vmul.f32 %v3721, %v3817
        %v3834 = vmul.f32 %v3722, %v3818
        %v3835 = vmul.f32 %v3723, %v3819
        %v3836 = vmul.f32 %v3724, %v3820
        %v3837 = vmul.f32 %v3725, %v3821
        %v3838 = vmul.f32 %v3726, %v3822
        %v3839 = vmul.f32 %v3727, %v3823
        %v3840 = vmul.f32 %v3728, %v3824
        %v3841 = vmul.f32 %v3729, %v3825
        %v3842 = vmul.f32 %v3730, %v3826
        %v3843 = vmul.f32 %v3731, %v3827
        %v3844 = vmul.f32 %v3732, %v3828
        %v3845 = vmul.f32 %v3733, %v3829
        %v3846 = vmul.f32 %v3734, %v3830
        %v3847 = vmul.f32 %v3735, %v3831
        %v3849 = vlaneseq
        %v3850 = vshrl.u32 %v3849, 7
        %v3851 = vsub.s32 0, %v3850
        %v3852 = vrot.slane %v3670, %v3851
        %v3854 = vmul.f32 %v3832, %v3852
        %v3855 = vmul.f32 %v3833, %v3852
        %v3856 = vmul.f32 %v3834, %v3852
        %v3857 = vmul.f32 %v3835, %v3852
        %v3858 = vmul.f32 %v3836, %v3852
        %v3859 = vmul.f32 %v3837, %v3852
        %v3860 = vmul.f32 %v3838, %v3852
        %v3861 = vmul.f32 %v3839, %v3852
        %v3862 = vmul.f32 %v3840, %v3852
        %v3863 = vmul.f32 %v3841, %v3852
        %v3864 = vmul.f32 %v3842, %v3852
        %v3865 = vmul.f32 %v3843, %v3852
        %v3866 = vmul.f32 %v3844, %v3852
        %v3867 = vmul.f32 %v3845, %v3852
        %v3868 = vmul.f32 %v3846, %v3852
        %v3869 = vmul.f32 %v3847, %v3852
        %v3871 = vlaneseq
        %v3872 = vshrl.u32 %v3871, 7
        %v3873 = vsub.s32 0, %v3872
        %v3874 = vrot.slane %v3671, %v3873
        %v3876 = vadd.f32 %v3854, %v3874
        %v3877 = vadd.f32 %v3855, %v3874
        %v3878 = vadd.f32 %v3856, %v3874
        %v3879 = vadd.f32 %v3857, %v3874
        %v3880 = vadd.f32 %v3858, %v3874
        %v3881 = vadd.f32 %v3859, %v3874
        %v3882 = vadd.f32 %v3860, %v3874
        %v3883 = vadd.f32 %v3861, %v3874
        %v3884 = vadd.f32 %v3862, %v3874
        %v3885 = vadd.f32 %v3863, %v3874
        %v3886 = vadd.f32 %v3864, %v3874
        %v3887 = vadd.f32 %v3865, %v3874
        %v3888 = vadd.f32 %v3866, %v3874
        %v3889 = vadd.f32 %v3867, %v3874
        %v3890 = vadd.f32 %v3868, %v3874
        %v3891 = vadd.f32 %v3869, %v3874
        %v3892 = vpack.c.bf16 %v3877, %v3876
        %v3893 = vpack.c.bf16 %v3879, %v3878
        %v3894 = vpack.c.bf16 %v3881, %v3880
        %v3895 = vpack.c.bf16 %v3883, %v3882
        %v3896 = vpack.c.bf16 %v3885, %v3884
        %v3897 = vpack.c.bf16 %v3887, %v3886
        %v3898 = vpack.c.bf16 %v3889, %v3888
        %v3899 = vpack.c.bf16 %v3891, %v3890
        %v3900 = vld [vmem:[#allocation11] sm:$0xff]
        %v3901 = vld [vmem:[#allocation11 + $0x8] sm:$0xff]
        %v3902 = vld [vmem:[#allocation11 + $0x10] sm:$0xff]
        %v3903 = vld [vmem:[#allocation11 + $0x18] sm:$0xff]
        %v3904 = vld [vmem:[#allocation11 + $0x20] sm:$0xff]
        %v3905 = vld [vmem:[#allocation11 + $0x28] sm:$0xff]
        %v3906 = vld [vmem:[#allocation11 + $0x30] sm:$0xff]
        %v3907 = vld [vmem:[#allocation11 + $0x38] sm:$0xff]
        %v3908 = vld [vmem:[#allocation11 + $0x40] sm:$0xff]
        %v3909 = vld [vmem:[#allocation11 + $0x48] sm:$0xff]
        %v3910 = vld [vmem:[#allocation11 + $0x50] sm:$0xff]
        %v3911 = vld [vmem:[#allocation11 + $0x58] sm:$0xff]
        %v3912 = vld [vmem:[#allocation11 + $0x60] sm:$0xff]
        %v3913 = vld [vmem:[#allocation11 + $0x68] sm:$0xff]
        %v3914 = vld [vmem:[#allocation11 + $0x70] sm:$0xff]
        %v3915 = vld [vmem:[#allocation11 + $0x78] sm:$0xff]
        %v3916 = vld [vmem:[#allocation11 + $0x80] sm:$0xff]
        %v3917 = vld [vmem:[#allocation11 + $0x88] sm:$0xff]
        %v3918 = vld [vmem:[#allocation11 + $0x90] sm:$0xff]
        %v3919 = vld [vmem:[#allocation11 + $0x98] sm:$0xff]
        %v3920 = vld [vmem:[#allocation11 + $0xa0] sm:$0xff]
        %v3921 = vld [vmem:[#allocation11 + $0xa8] sm:$0xff]
        %v3922 = vld [vmem:[#allocation11 + $0xb0] sm:$0xff]
        %v3923 = vld [vmem:[#allocation11 + $0xb8] sm:$0xff]
        %v3924 = vld [vmem:[#allocation11 + $0xc0] sm:$0xff]
        %v3925 = vld [vmem:[#allocation11 + $0xc8] sm:$0xff]
        %v3926 = vld [vmem:[#allocation11 + $0xd0] sm:$0xff]
        %v3927 = vld [vmem:[#allocation11 + $0xd8] sm:$0xff]
        %v3928 = vld [vmem:[#allocation11 + $0xe0] sm:$0xff]
        %v3929 = vld [vmem:[#allocation11 + $0xe8] sm:$0xff]
        %v3930 = vld [vmem:[#allocation11 + $0xf0] sm:$0xff]
        %v3931 = vld [vmem:[#allocation11 + $0xf8] sm:$0xff]
        %v3932 = vld [vmem:[%s13] sm:$0xf]
        %v3934 = vlaneseq
        %v3935 = vshrl.u32 %v3934, 7
        %v3936 = vsub.s32 0, %v3935
        %v3937 = vrot.slane %v3932, %v3936
        %v3938 = vlaneseq
        %v3939 = vshrl.u32 %v3938, 7
        %v3940 = vsub.s32 1, %v3939
        %v3941 = vrot.slane %v3932, %v3940
        %v3942 = vlaneseq
        %v3943 = vshrl.u32 %v3942, 7
        %v3944 = vsub.s32 2, %v3943
        %v3945 = vrot.slane %v3932, %v3944
        %v3946 = vlaneseq
        %v3947 = vshrl.u32 %v3946, 7
        %v3948 = vsub.s32 3, %v3947
        %v3949 = vrot.slane %v3932, %v3948
        %v3986 = vunpack.c.l.b16 %v3900
        %v3987 = vunpack.c.h.b16 %v3900
        %v3988 = vunpack.c.l.b16 %v3901
        %v3989 = vunpack.c.h.b16 %v3901
        %v3990 = vunpack.c.l.b16 %v3902
        %v3991 = vunpack.c.h.b16 %v3902
        %v3992 = vunpack.c.l.b16 %v3903
        %v3993 = vunpack.c.h.b16 %v3903
        %v3994 = vunpack.c.l.b16 %v3904
        %v3995 = vunpack.c.h.b16 %v3904
        %v3996 = vunpack.c.l.b16 %v3905
        %v3997 = vunpack.c.h.b16 %v3905
        %v3998 = vunpack.c.l.b16 %v3906
        %v3999 = vunpack.c.h.b16 %v3906
        %v4000 = vunpack.c.l.b16 %v3907
        %v4001 = vunpack.c.h.b16 %v3907
        %v4002 = vunpack.c.l.b16 %v3908
        %v4003 = vunpack.c.h.b16 %v3908
        %v4004 = vunpack.c.l.b16 %v3909
        %v4005 = vunpack.c.h.b16 %v3909
        %v4006 = vunpack.c.l.b16 %v3910
        %v4007 = vunpack.c.h.b16 %v3910
        %v4008 = vunpack.c.l.b16 %v3911
        %v4009 = vunpack.c.h.b16 %v3911
        %v4010 = vunpack.c.l.b16 %v3912
        %v4011 = vunpack.c.h.b16 %v3912
        %v4012 = vunpack.c.l.b16 %v3913
        %v4013 = vunpack.c.h.b16 %v3913
        %v4014 = vunpack.c.l.b16 %v3914
        %v4015 = vunpack.c.h.b16 %v3914
        %v4016 = vunpack.c.l.b16 %v3915
        %v4017 = vunpack.c.h.b16 %v3915
        %v4018 = vunpack.c.l.b16 %v3916
        %v4019 = vunpack.c.h.b16 %v3916
        %v4020 = vunpack.c.l.b16 %v3917
        %v4021 = vunpack.c.h.b16 %v3917
        %v4022 = vunpack.c.l.b16 %v3918
        %v4023 = vunpack.c.h.b16 %v3918
        %v4024 = vunpack.c.l.b16 %v3919
        %v4025 = vunpack.c.h.b16 %v3919
        %v4026 = vunpack.c.l.b16 %v3920
        %v4027 = vunpack.c.h.b16 %v3920
        %v4028 = vunpack.c.l.b16 %v3921
        %v4029 = vunpack.c.h.b16 %v3921
        %v4030 = vunpack.c.l.b16 %v3922
        %v4031 = vunpack.c.h.b16 %v3922
        %v4032 = vunpack.c.l.b16 %v3923
        %v4033 = vunpack.c.h.b16 %v3923
        %v4034 = vunpack.c.l.b16 %v3924
        %v4035 = vunpack.c.h.b16 %v3924
        %v4036 = vunpack.c.l.b16 %v3925
        %v4037 = vunpack.c.h.b16 %v3925
        %v4038 = vunpack.c.l.b16 %v3926
        %v4039 = vunpack.c.h.b16 %v3926
        %v4040 = vunpack.c.l.b16 %v3927
        %v4041 = vunpack.c.h.b16 %v3927
        %v4042 = vunpack.c.l.b16 %v3928
        %v4043 = vunpack.c.h.b16 %v3928
        %v4044 = vunpack.c.l.b16 %v3929
        %v4045 = vunpack.c.h.b16 %v3929
        %v4046 = vunpack.c.l.b16 %v3930
        %v4047 = vunpack.c.h.b16 %v3930
        %v4048 = vunpack.c.l.b16 %v3931
        %v4049 = vunpack.c.h.b16 %v3931
        %v4050 = vpack.c.b16 %v3990, %v3986
        %v4051 = vpack.c.b16 %v3991, %v3987
        %v4052 = vpack.c.b16 %v3992, %v3988
        %v4053 = vpack.c.b16 %v3993, %v3989
        %v4054 = vpack.c.b16 %v3998, %v3994
        %v4055 = vpack.c.b16 %v3999, %v3995
        %v4056 = vpack.c.b16 %v4000, %v3996
        %v4057 = vpack.c.b16 %v4001, %v3997
        %v4058 = vpack.c.b16 %v4006, %v4002
        %v4059 = vpack.c.b16 %v4007, %v4003
        %v4060 = vpack.c.b16 %v4008, %v4004
        %v4061 = vpack.c.b16 %v4009, %v4005
        %v4062 = vpack.c.b16 %v4014, %v4010
        %v4063 = vpack.c.b16 %v4015, %v4011
        %v4064 = vpack.c.b16 %v4016, %v4012
        %v4065 = vpack.c.b16 %v4017, %v4013
        %v4066 = vpack.c.b16 %v4022, %v4018
        %v4067 = vpack.c.b16 %v4023, %v4019
        %v4068 = vpack.c.b16 %v4024, %v4020
        %v4069 = vpack.c.b16 %v4025, %v4021
        %v4070 = vpack.c.b16 %v4030, %v4026
        %v4071 = vpack.c.b16 %v4031, %v4027
        %v4072 = vpack.c.b16 %v4032, %v4028
        %v4073 = vpack.c.b16 %v4033, %v4029
        %v4074 = vpack.c.b16 %v4038, %v4034
        %v4075 = vpack.c.b16 %v4039, %v4035
        %v4076 = vpack.c.b16 %v4040, %v4036
        %v4077 = vpack.c.b16 %v4041, %v4037
        %v4078 = vpack.c.b16 %v4046, %v4042
        %v4079 = vpack.c.b16 %v4047, %v4043
        %v4080 = vpack.c.b16 %v4048, %v4044
        %v4081 = vpack.c.b16 %v4049, %v4045
        %4114 = vmatprep.subr.bf16.mxu0 %v4051
        %4115 = vmatpush1.bf16.msra.mxu0 %v4050
        %4116 = vmatprep.subr.bf16.mxu0 %v4055
        %4117 = vmatpush1.bf16.msra.mxu0 %v4054
        %4118 = vmatprep.subr.bf16.mxu0 %v4059
        %4119 = vmatpush1.bf16.msra.mxu0 %v4058
        %4120 = vmatprep.subr.bf16.mxu0 %v4063
        %4121 = vmatpush1.bf16.msra.mxu0 %v4062
        %4122 = vmatprep.subr.bf16.mxu0 %v4067
        %4123 = vmatpush1.bf16.msra.mxu0 %v4066
        %4124 = vmatprep.subr.bf16.mxu0 %v4071
        %4125 = vmatpush1.bf16.msra.mxu0 %v4070
        %4126 = vmatprep.subr.bf16.mxu0 %v4075
        %4127 = vmatpush1.bf16.msra.mxu0 %v4074
        %4128 = vmatprep.subr.bf16.mxu0 %v4079
        %4129 = vmatpush1.bf16.msra.mxu0 %v4078
        %4130 = vmatprep.subr.bf16.mxu0 0
        %4131 = vmatpush1.bf16.msra.mxu0 0
        %4132 = vmatprep.subr.bf16.mxu0 0
        %4133 = vmatpush1.bf16.msra.mxu0 0
        %4134 = vmatprep.subr.bf16.mxu0 0
        %4135 = vmatpush1.bf16.msra.mxu0 0
        %4136 = vmatprep.subr.bf16.mxu0 0
        %4137 = vmatpush1.bf16.msra.mxu0 0
        %4138 = vmatprep.subr.bf16.mxu0 0
        %4139 = vmatpush1.bf16.msra.mxu0 0
        %4140 = vmatprep.subr.bf16.mxu0 0
        %4141 = vmatpush1.bf16.msra.mxu0 0
        %4142 = vmatprep.subr.bf16.mxu0 0
        %4143 = vmatpush1.bf16.msra.mxu0 0
        %4144 = vmatprep.subr.bf16.mxu0 0
        %4145 = vmatpush1.bf16.msra.mxu0 0
        %4146 = vmatprep.mubr.bf16.mxu0 0
        %4147 = vmatmul.mubr.bf16.gmra.mrb[0].mxu0 %v3892
        %v4148 = vpop.f32.mrb[0].mxu0
        %v4149 = vadd.f32 %v3937, %v4148
        %v4150 = vpop.f32.mrb[0].mxu0
        %v4151 = vadd.f32 %v3941, %v4150
        %v4152 = vpop.f32.mrb[0].mxu0
        %v4153 = vadd.f32 %v3937, %v4152
        %v4154 = vpop.f32.mrb[0].mxu0
        %v4155 = vadd.f32 %v3941, %v4154
        %4156 = vmatprep.mubr.bf16.mxu0 0
        %4157 = vmatmul.mubr.bf16.gmra.mrb[0].mxu0 %v3893
        %v4158 = vpop.f32.mrb[0].mxu0
        %v4159 = vadd.f32 %v3937, %v4158
        %v4160 = vpop.f32.mrb[0].mxu0
        %v4161 = vadd.f32 %v3941, %v4160
        %v4162 = vpop.f32.mrb[0].mxu0
        %v4163 = vadd.f32 %v3937, %v4162
        %v4164 = vpop.f32.mrb[0].mxu0
        %v4165 = vadd.f32 %v3941, %v4164
        %4166 = vmatprep.mubr.bf16.mxu0 0
        %4167 = vmatmul.mubr.bf16.gmra.mrb[0].mxu0 %v3894
        %v4168 = vpop.f32.mrb[0].mxu0
        %v4169 = vadd.f32 %v3937, %v4168
        %v4170 = vpop.f32.mrb[0].mxu0
        %v4171 = vadd.f32 %v3941, %v4170
        %v4172 = vpop.f32.mrb[0].mxu0
        %v4173 = vadd.f32 %v3937, %v4172
        %v4174 = vpop.f32.mrb[0].mxu0
        %v4175 = vadd.f32 %v3941, %v4174
        %4176 = vmatprep.mubr.bf16.mxu0 0
        %4177 = vmatmul.mubr.bf16.gmra.mrb[0].mxu0 %v3895
        %v4178 = vpop.f32.mrb[0].mxu0
        %v4179 = vadd.f32 %v3937, %v4178
        %v4180 = vpop.f32.mrb[0].mxu0
        %v4181 = vadd.f32 %v3941, %v4180
        %v4182 = vpop.f32.mrb[0].mxu0
        %v4183 = vadd.f32 %v3937, %v4182
        %v4184 = vpop.f32.mrb[0].mxu0
        %v4185 = vadd.f32 %v3941, %v4184
        %4186 = vmatprep.mubr.bf16.mxu0 0
        %4187 = vmatmul.mubr.bf16.gmra.mrb[0].mxu0 %v3896
        %v4188 = vpop.f32.mrb[0].mxu0
        %v4189 = vadd.f32 %v3937, %v4188
        %v4190 = vpop.f32.mrb[0].mxu0
        %v4191 = vadd.f32 %v3941, %v4190
        %v4192 = vpop.f32.mrb[0].mxu0
        %v4193 = vadd.f32 %v3937, %v4192
        %v4194 = vpop.f32.mrb[0].mxu0
        %v4195 = vadd.f32 %v3941, %v4194
        %4196 = vmatprep.mubr.bf16.mxu0 0
        %4197 = vmatmul.mubr.bf16.gmra.mrb[0].mxu0 %v3897
        %v4198 = vpop.f32.mrb[0].mxu0
        %v4199 = vadd.f32 %v3937, %v4198
        %v4200 = vpop.f32.mrb[0].mxu0
        %v4201 = vadd.f32 %v3941, %v4200
        %v4202 = vpop.f32.mrb[0].mxu0
        %v4203 = vadd.f32 %v3937, %v4202
        %v4204 = vpop.f32.mrb[0].mxu0
        %v4205 = vadd.f32 %v3941, %v4204
        %4206 = vmatprep.mubr.bf16.mxu0 0
        %4207 = vmatmul.mubr.bf16.gmra.mrb[0].mxu0 %v3898
        %v4208 = vpop.f32.mrb[0].mxu0
        %v4209 = vadd.f32 %v3937, %v4208
        %v4210 = vpop.f32.mrb[0].mxu0
        %v4211 = vadd.f32 %v3941, %v4210
        %v4212 = vpop.f32.mrb[0].mxu0
        %v4213 = vadd.f32 %v3937, %v4212
        %v4214 = vpop.f32.mrb[0].mxu0
        %v4215 = vadd.f32 %v3941, %v4214
        %4216 = vmatprep.mubr.bf16.mxu0 0
        %4217 = vmatmul.mubr.bf16.gmra.mrb[0].mxu0 %v3899
        %v4218 = vpop.f32.mrb[0].mxu0
        %v4219 = vadd.f32 %v3937, %v4218
        %v4220 = vpop.f32.mrb[0].mxu0
        %v4221 = vadd.f32 %v3941, %v4220
        %v4222 = vpop.f32.mrb[0].mxu0
        %v4223 = vadd.f32 %v3937, %v4222
        %v4224 = vpop.f32.mrb[0].mxu0
        %v4225 = vadd.f32 %v3941, %v4224
        %4226 = vdwg.mxu0
        %4227 = vmatprep.subr.bf16.mxu0 %v4053
        %4228 = vmatpush1.bf16.msra.mxu0 %v4052
        %4229 = vmatprep.subr.bf16.mxu0 %v4057
        %4230 = vmatpush1.bf16.msra.mxu0 %v4056
        %4231 = vmatprep.subr.bf16.mxu0 %v4061
        %4232 = vmatpush1.bf16.msra.mxu0 %v4060
        %4233 = vmatprep.subr.bf16.mxu0 %v4065
        %4234 = vmatpush1.bf16.msra.mxu0 %v4064
        %4235 = vmatprep.subr.bf16.mxu0 %v4069
        %4236 = vmatpush1.bf16.msra.mxu0 %v4068
        %4237 = vmatprep.subr.bf16.mxu0 %v4073
        %4238 = vmatpush1.bf16.msra.mxu0 %v4072
        %4239 = vmatprep.subr.bf16.mxu0 %v4077
        %4240 = vmatpush1.bf16.msra.mxu0 %v4076
        %4241 = vmatprep.subr.bf16.mxu0 %v4081
        %4242 = vmatpush1.bf16.msra.mxu0 %v4080
        %4243 = vmatprep.subr.bf16.mxu0 0
        %4244 = vmatpush1.bf16.msra.mxu0 0
        %4245 = vmatprep.subr.bf16.mxu0 0
        %4246 = vmatpush1.bf16.msra.mxu0 0
        %4247 = vmatprep.subr.bf16.mxu0 0
        %4248 = vmatpush1.bf16.msra.mxu0 0
        %4249 = vmatprep.subr.bf16.mxu0 0
        %4250 = vmatpush1.bf16.msra.mxu0 0
        %4251 = vmatprep.subr.bf16.mxu0 0
        %4252 = vmatpush1.bf16.msra.mxu0 0
        %4253 = vmatprep.subr.bf16.mxu0 0
        %4254 = vmatpush1.bf16.msra.mxu0 0
        %4255 = vmatprep.subr.bf16.mxu0 0
        %4256 = vmatpush1.bf16.msra.mxu0 0
        %4257 = vmatprep.subr.bf16.mxu0 0
        %4258 = vmatpush1.bf16.msra.mxu0 0
        %4259 = vmatprep.mubr.bf16.mxu0 0
        %4260 = vmatmul.mubr.bf16.gmra.mrb[0].mxu0 %v3892
        %v4261 = vpop.f32.mrb[0].mxu0
        %v4262 = vadd.f32 %v3945, %v4261
        %v4263 = vpop.f32.mrb[0].mxu0
        %v4264 = vadd.f32 %v3949, %v4263
        %v4265 = vpop.f32.mrb[0].mxu0
        %v4266 = vadd.f32 %v3945, %v4265
        %v4267 = vpop.f32.mrb[0].mxu0
        %v4268 = vadd.f32 %v3949, %v4267
        %4269 = vmatprep.mubr.bf16.mxu0 0
        %4270 = vmatmul.mubr.bf16.gmra.mrb[0].mxu0 %v3893
        %v4271 = vpop.f32.mrb[0].mxu0
        %v4272 = vadd.f32 %v3945, %v4271
        %v4273 = vpop.f32.mrb[0].mxu0
        %v4274 = vadd.f32 %v3949, %v4273
        %v4275 = vpop.f32.mrb[0].mxu0
        %v4276 = vadd.f32 %v3945, %v4275
        %v4277 = vpop.f32.mrb[0].mxu0
        %v4278 = vadd.f32 %v3949, %v4277
        %4279 = vmatprep.mubr.bf16.mxu0 0
        %4280 = vmatmul.mubr.bf16.gmra.mrb[0].mxu0 %v3894
        %v4281 = vpop.f32.mrb[0].mxu0
        %v4282 = vadd.f32 %v3945, %v4281
        %v4283 = vpop.f32.mrb[0].mxu0
        %v4284 = vadd.f32 %v3949, %v4283
        %v4285 = vpop.f32.mrb[0].mxu0
        %v4286 = vadd.f32 %v3945, %v4285
        %v4287 = vpop.f32.mrb[0].mxu0
        %v4288 = vadd.f32 %v3949, %v4287
        %4289 = vmatprep.mubr.bf16.mxu0 0
        %4290 = vmatmul.mubr.bf16.gmra.mrb[0].mxu0 %v3895
        %v4291 = vpop.f32.mrb[0].mxu0
        %v4292 = vadd.f32 %v3945, %v4291
        %v4293 = vpop.f32.mrb[0].mxu0
        %v4294 = vadd.f32 %v3949, %v4293
        %v4295 = vpop.f32.mrb[0].mxu0
        %v4296 = vadd.f32 %v3945, %v4295
        %v4297 = vpop.f32.mrb[0].mxu0
        %v4298 = vadd.f32 %v3949, %v4297
        %4299 = vmatprep.mubr.bf16.mxu0 0
        %4300 = vmatmul.mubr.bf16.gmra.mrb[0].mxu0 %v3896
        %v4301 = vpop.f32.mrb[0].mxu0
        %v4302 = vadd.f32 %v3945, %v4301
        %v4303 = vpop.f32.mrb[0].mxu0
        %v4304 = vadd.f32 %v3949, %v4303
        %v4305 = vpop.f32.mrb[0].mxu0
        %v4306 = vadd.f32 %v3945, %v4305
        %v4307 = vpop.f32.mrb[0].mxu0
        %v4308 = vadd.f32 %v3949, %v4307
        %4309 = vmatprep.mubr.bf16.mxu0 0
        %4310 = vmatmul.mubr.bf16.gmra.mrb[0].mxu0 %v3897
        %v4311 = vpop.f32.mrb[0].mxu0
        %v4312 = vadd.f32 %v3945, %v4311
        %v4313 = vpop.f32.mrb[0].mxu0
        %v4314 = vadd.f32 %v3949, %v4313
        %v4315 = vpop.f32.mrb[0].mxu0
        %v4316 = vadd.f32 %v3945, %v4315
        %v4317 = vpop.f32.mrb[0].mxu0
        %v4318 = vadd.f32 %v3949, %v4317
        %4319 = vmatprep.mubr.bf16.mxu0 0
        %4320 = vmatmul.mubr.bf16.gmra.mrb[0].mxu0 %v3898
        %v4321 = vpop.f32.mrb[0].mxu0
        %v4322 = vadd.f32 %v3945, %v4321
        %v4323 = vpop.f32.mrb[0].mxu0
        %v4324 = vadd.f32 %v3949, %v4323
        %v4325 = vpop.f32.mrb[0].mxu0
        %v4326 = vadd.f32 %v3945, %v4325
        %v4327 = vpop.f32.mrb[0].mxu0
        %v4328 = vadd.f32 %v3949, %v4327
        %4329 = vmatprep.mubr.bf16.mxu0 0
        %4330 = vmatmul.mubr.bf16.gmra.mrb[0].mxu0 %v3899
        %v4331 = vpop.f32.mrb[0].mxu0
        %v4332 = vadd.f32 %v3945, %v4331
        %v4333 = vpop.f32.mrb[0].mxu0
        %v4334 = vadd.f32 %v3949, %v4333
        %v4335 = vpop.f32.mrb[0].mxu0
        %v4336 = vadd.f32 %v3945, %v4335
        %v4337 = vpop.f32.mrb[0].mxu0
        %v4338 = vadd.f32 %v3949, %v4337
        %4339 = vdwg.mxu0
        %v4340 = vmul.f32 %v4149, 0.5
        %v4341 = vmul.f32 %v4151, 0.5
        %v4342 = vmul.f32 %v4262, 0.5
        %v4343 = vmul.f32 %v4264, 0.5
        %v4344 = vmul.f32 %v4153, 0.5
        %v4345 = vmul.f32 %v4155, 0.5
        %v4346 = vmul.f32 %v4266, 0.5
        %v4347 = vmul.f32 %v4268, 0.5
        %v4348 = vmul.f32 %v4159, 0.5
        %v4349 = vmul.f32 %v4161, 0.5
        %v4350 = vmul.f32 %v4272, 0.5
        %v4351 = vmul.f32 %v4274, 0.5
        %v4352 = vmul.f32 %v4163, 0.5
        %v4353 = vmul.f32 %v4165, 0.5
        %v4354 = vmul.f32 %v4276, 0.5
        %v4355 = vmul.f32 %v4278, 0.5
        %v4356 = vmul.f32 %v4169, 0.5
        %v4357 = vmul.f32 %v4171, 0.5
        %v4358 = vmul.f32 %v4282, 0.5
        %v4359 = vmul.f32 %v4284, 0.5
        %v4360 = vmul.f32 %v4173, 0.5
        %v4361 = vmul.f32 %v4175, 0.5
        %v4362 = vmul.f32 %v4286, 0.5
        %v4363 = vmul.f32 %v4288, 0.5
        %v4364 = vmul.f32 %v4179, 0.5
        %v4365 = vmul.f32 %v4181, 0.5
        %v4366 = vmul.f32 %v4292, 0.5
        %v4367 = vmul.f32 %v4294, 0.5
        %v4368 = vmul.f32 %v4183, 0.5
        %v4369 = vmul.f32 %v4185, 0.5
        %v4370 = vmul.f32 %v4296, 0.5
        %v4371 = vmul.f32 %v4298, 0.5
        %v4372 = vmul.f32 %v4189, 0.5
        %v4373 = vmul.f32 %v4191, 0.5
        %v4374 = vmul.f32 %v4302, 0.5
        %v4375 = vmul.f32 %v4304, 0.5
        %v4376 = vmul.f32 %v4193, 0.5
        %v4377 = vmul.f32 %v4195, 0.5
        %v4378 = vmul.f32 %v4306, 0.5
        %v4379 = vmul.f32 %v4308, 0.5
        %v4380 = vmul.f32 %v4199, 0.5
        %v4381 = vmul.f32 %v4201, 0.5
        %v4382 = vmul.f32 %v4312, 0.5
        %v4383 = vmul.f32 %v4314, 0.5
        %v4384 = vmul.f32 %v4203, 0.5
        %v4385 = vmul.f32 %v4205, 0.5
        %v4386 = vmul.f32 %v4316, 0.5
        %v4387 = vmul.f32 %v4318, 0.5
        %v4388 = vmul.f32 %v4209, 0.5
        %v4389 = vmul.f32 %v4211, 0.5
        %v4390 = vmul.f32 %v4322, 0.5
        %v4391 = vmul.f32 %v4324, 0.5
        %v4392 = vmul.f32 %v4213, 0.5
        %v4393 = vmul.f32 %v4215, 0.5
        %v4394 = vmul.f32 %v4326, 0.5
        %v4395 = vmul.f32 %v4328, 0.5
        %v4396 = vmul.f32 %v4219, 0.5
        %v4397 = vmul.f32 %v4221, 0.5
        %v4398 = vmul.f32 %v4332, 0.5
        %v4399 = vmul.f32 %v4334, 0.5
        %v4400 = vmul.f32 %v4223, 0.5
        %v4401 = vmul.f32 %v4225, 0.5
        %v4402 = vmul.f32 %v4336, 0.5
        %v4403 = vmul.f32 %v4338, 0.5
        %v4404 = vmul.f32 %v4149, 0.70710677
        %v4405 = vmul.f32 %v4151, 0.70710677
        %v4406 = vmul.f32 %v4262, 0.70710677
        %v4407 = vmul.f32 %v4264, 0.70710677
        %v4408 = vmul.f32 %v4153, 0.70710677
        %v4409 = vmul.f32 %v4155, 0.70710677
        %v4410 = vmul.f32 %v4266, 0.70710677
        %v4411 = vmul.f32 %v4268, 0.70710677
        %v4412 = vmul.f32 %v4159, 0.70710677
        %v4413 = vmul.f32 %v4161, 0.70710677
        %v4414 = vmul.f32 %v4272, 0.70710677
        %v4415 = vmul.f32 %v4274, 0.70710677
        %v4416 = vmul.f32 %v4163, 0.70710677
        %v4417 = vmul.f32 %v4165, 0.70710677
        %v4418 = vmul.f32 %v4276, 0.70710677
        %v4419 = vmul.f32 %v4278, 0.70710677
        %v4420 = vmul.f32 %v4169, 0.70710677
        %v4421 = vmul.f32 %v4171, 0.70710677
        %v4422 = vmul.f32 %v4282, 0.70710677
        %v4423 = vmul.f32 %v4284, 0.70710677
        %v4424 = vmul.f32 %v4173, 0.70710677
        %v4425 = vmul.f32 %v4175, 0.70710677
        %v4426 = vmul.f32 %v4286, 0.70710677
        %v4427 = vmul.f32 %v4288, 0.70710677
        %v4428 = vmul.f32 %v4179, 0.70710677
        %v4429 = vmul.f32 %v4181, 0.70710677
        %v4430 = vmul.f32 %v4292, 0.70710677
        %v4431 = vmul.f32 %v4294, 0.70710677
        %v4432 = vmul.f32 %v4183, 0.70710677
        %v4433 = vmul.f32 %v4185, 0.70710677
        %v4434 = vmul.f32 %v4296, 0.70710677
        %v4435 = vmul.f32 %v4298, 0.70710677
        %v4436 = vmul.f32 %v4189, 0.70710677
        %v4437 = vmul.f32 %v4191, 0.70710677
        %v4438 = vmul.f32 %v4302, 0.70710677
        %v4439 = vmul.f32 %v4304, 0.70710677
        %v4440 = vmul.f32 %v4193, 0.70710677
        %v4441 = vmul.f32 %v4195, 0.70710677
        %v4442 = vmul.f32 %v4306, 0.70710677
        %v4443 = vmul.f32 %v4308, 0.70710677
        %v4444 = vmul.f32 %v4199, 0.70710677
        %v4445 = vmul.f32 %v4201, 0.70710677
        %v4446 = vmul.f32 %v4312, 0.70710677
        %v4447 = vmul.f32 %v4314, 0.70710677
        %v4448 = vmul.f32 %v4203, 0.70710677
        %v4449 = vmul.f32 %v4205, 0.70710677
        %v4450 = vmul.f32 %v4316, 0.70710677
        %v4451 = vmul.f32 %v4318, 0.70710677
        %v4452 = vmul.f32 %v4209, 0.70710677
        %v4453 = vmul.f32 %v4211, 0.70710677
        %v4454 = vmul.f32 %v4322, 0.70710677
        %v4455 = vmul.f32 %v4324, 0.70710677
        %v4456 = vmul.f32 %v4213, 0.70710677
        %v4457 = vmul.f32 %v4215, 0.70710677
        %v4458 = vmul.f32 %v4326, 0.70710677
        %v4459 = vmul.f32 %v4328, 0.70710677
        %v4460 = vmul.f32 %v4219, 0.70710677
        %v4461 = vmul.f32 %v4221, 0.70710677
        %v4462 = vmul.f32 %v4332, 0.70710677
        %v4463 = vmul.f32 %v4334, 0.70710677
        %v4464 = vmul.f32 %v4223, 0.70710677
        %v4465 = vmul.f32 %v4225, 0.70710677
        %v4466 = vmul.f32 %v4336, 0.70710677
        %v4467 = vmul.f32 %v4338, 0.70710677
        %v4468 = verf.f32.pop %v4404
        %v4469 = verf.f32.pop %v4405
        %v4470 = verf.f32.pop %v4406
        %v4471 = verf.f32.pop %v4407
        %v4472 = verf.f32.pop %v4408
        %v4473 = verf.f32.pop %v4409
        %v4474 = verf.f32.pop %v4410
        %v4475 = verf.f32.pop %v4411
        %v4476 = verf.f32.pop %v4412
        %v4477 = verf.f32.pop %v4413
        %v4478 = verf.f32.pop %v4414
        %v4479 = verf.f32.pop %v4415
        %v4480 = verf.f32.pop %v4416
        %v4481 = verf.f32.pop %v4417
        %v4482 = verf.f32.pop %v4418
        %v4483 = verf.f32.pop %v4419
        %v4484 = verf.f32.pop %v4420
        %v4485 = verf.f32.pop %v4421
        %v4486 = verf.f32.pop %v4422
        %v4487 = verf.f32.pop %v4423
        %v4488 = verf.f32.pop %v4424
        %v4489 = verf.f32.pop %v4425
        %v4490 = verf.f32.pop %v4426
        %v4491 = verf.f32.pop %v4427
        %v4492 = verf.f32.pop %v4428
        %v4493 = verf.f32.pop %v4429
        %v4494 = verf.f32.pop %v4430
        %v4495 = verf.f32.pop %v4431
        %v4496 = verf.f32.pop %v4432
        %v4497 = verf.f32.pop %v4433
        %v4498 = verf.f32.pop %v4434
        %v4499 = verf.f32.pop %v4435
        %v4500 = verf.f32.pop %v4436
        %v4501 = verf.f32.pop %v4437
        %v4502 = verf.f32.pop %v4438
        %v4503 = verf.f32.pop %v4439
        %v4504 = verf.f32.pop %v4440
        %v4505 = verf.f32.pop %v4441
        %v4506 = verf.f32.pop %v4442
        %v4507 = verf.f32.pop %v4443
        %v4508 = verf.f32.pop %v4444
        %v4509 = verf.f32.pop %v4445
        %v4510 = verf.f32.pop %v4446
        %v4511 = verf.f32.pop %v4447
        %v4512 = verf.f32.pop %v4448
        %v4513 = verf.f32.pop %v4449
        %v4514 = verf.f32.pop %v4450
        %v4515 = verf.f32.pop %v4451
        %v4516 = verf.f32.pop %v4452
        %v4517 = verf.f32.pop %v4453
        %v4518 = verf.f32.pop %v4454
        %v4519 = verf.f32.pop %v4455
        %v4520 = verf.f32.pop %v4456
        %v4521 = verf.f32.pop %v4457
        %v4522 = verf.f32.pop %v4458
        %v4523 = verf.f32.pop %v4459
        %v4524 = verf.f32.pop %v4460
        %v4525 = verf.f32.pop %v4461
        %v4526 = verf.f32.pop %v4462
        %v4527 = verf.f32.pop %v4463
        %v4528 = verf.f32.pop %v4464
        %v4529 = verf.f32.pop %v4465
        %v4530 = verf.f32.pop %v4466
        %v4531 = verf.f32.pop %v4467
        %v4532 = vadd.f32 %v4468, 1.0
        %v4533 = vadd.f32 %v4469, 1.0
        %v4534 = vadd.f32 %v4470, 1.0
        %v4535 = vadd.f32 %v4471, 1.0
        %v4536 = vadd.f32 %v4472, 1.0
        %v4537 = vadd.f32 %v4473, 1.0
        %v4538 = vadd.f32 %v4474, 1.0
        %v4539 = vadd.f32 %v4475, 1.0
        %v4540 = vadd.f32 %v4476, 1.0
        %v4541 = vadd.f32 %v4477, 1.0
        %v4542 = vadd.f32 %v4478, 1.0
        %v4543 = vadd.f32 %v4479, 1.0
        %v4544 = vadd.f32 %v4480, 1.0
        %v4545 = vadd.f32 %v4481, 1.0
        %v4546 = vadd.f32 %v4482, 1.0
        %v4547 = vadd.f32 %v4483, 1.0
        %v4548 = vadd.f32 %v4484, 1.0
        %v4549 = vadd.f32 %v4485, 1.0
        %v4550 = vadd.f32 %v4486, 1.0
        %v4551 = vadd.f32 %v4487, 1.0
        %v4552 = vadd.f32 %v4488, 1.0
        %v4553 = vadd.f32 %v4489, 1.0
        %v4554 = vadd.f32 %v4490, 1.0
        %v4555 = vadd.f32 %v4491, 1.0
        %v4556 = vadd.f32 %v4492, 1.0
        %v4557 = vadd.f32 %v4493, 1.0
        %v4558 = vadd.f32 %v4494, 1.0
        %v4559 = vadd.f32 %v4495, 1.0
        %v4560 = vadd.f32 %v4496, 1.0
        %v4561 = vadd.f32 %v4497, 1.0
        %v4562 = vadd.f32 %v4498, 1.0
        %v4563 = vadd.f32 %v4499, 1.0
        %v4564 = vadd.f32 %v4500, 1.0
        %v4565 = vadd.f32 %v4501, 1.0
        %v4566 = vadd.f32 %v4502, 1.0
        %v4567 = vadd.f32 %v4503, 1.0
        %v4568 = vadd.f32 %v4504, 1.0
        %v4569 = vadd.f32 %v4505, 1.0
        %v4570 = vadd.f32 %v4506, 1.0
        %v4571 = vadd.f32 %v4507, 1.0
        %v4572 = vadd.f32 %v4508, 1.0
        %v4573 = vadd.f32 %v4509, 1.0
        %v4574 = vadd.f32 %v4510, 1.0
        %v4575 = vadd.f32 %v4511, 1.0
        %v4576 = vadd.f32 %v4512, 1.0
        %v4577 = vadd.f32 %v4513, 1.0
        %v4578 = vadd.f32 %v4514, 1.0
        %v4579 = vadd.f32 %v4515, 1.0
        %v4580 = vadd.f32 %v4516, 1.0
        %v4581 = vadd.f32 %v4517, 1.0
        %v4582 = vadd.f32 %v4518, 1.0
        %v4583 = vadd.f32 %v4519, 1.0
        %v4584 = vadd.f32 %v4520, 1.0
        %v4585 = vadd.f32 %v4521, 1.0
        %v4586 = vadd.f32 %v4522, 1.0
        %v4587 = vadd.f32 %v4523, 1.0
        %v4588 = vadd.f32 %v4524, 1.0
        %v4589 = vadd.f32 %v4525, 1.0
        %v4590 = vadd.f32 %v4526, 1.0
        %v4591 = vadd.f32 %v4527, 1.0
        %v4592 = vadd.f32 %v4528, 1.0
        %v4593 = vadd.f32 %v4529, 1.0
        %v4594 = vadd.f32 %v4530, 1.0
        %v4595 = vadd.f32 %v4531, 1.0
        %v4596 = vmul.f32 %v4340, %v4532
        %v4597 = vmul.f32 %v4341, %v4533
        %v4598 = vmul.f32 %v4342, %v4534
        %v4599 = vmul.f32 %v4343, %v4535
        %v4600 = vmul.f32 %v4344, %v4536
        %v4601 = vmul.f32 %v4345, %v4537
        %v4602 = vmul.f32 %v4346, %v4538
        %v4603 = vmul.f32 %v4347, %v4539
        %v4604 = vmul.f32 %v4348, %v4540
        %v4605 = vmul.f32 %v4349, %v4541
        %v4606 = vmul.f32 %v4350, %v4542
        %v4607 = vmul.f32 %v4351, %v4543
        %v4608 = vmul.f32 %v4352, %v4544
        %v4609 = vmul.f32 %v4353, %v4545
        %v4610 = vmul.f32 %v4354, %v4546
        %v4611 = vmul.f32 %v4355, %v4547
        %v4612 = vmul.f32 %v4356, %v4548
        %v4613 = vmul.f32 %v4357, %v4549
        %v4614 = vmul.f32 %v4358, %v4550
        %v4615 = vmul.f32 %v4359, %v4551
        %v4616 = vmul.f32 %v4360, %v4552
        %v4617 = vmul.f32 %v4361, %v4553
        %v4618 = vmul.f32 %v4362, %v4554
        %v4619 = vmul.f32 %v4363, %v4555
        %v4620 = vmul.f32 %v4364, %v4556
        %v4621 = vmul.f32 %v4365, %v4557
        %v4622 = vmul.f32 %v4366, %v4558
        %v4623 = vmul.f32 %v4367, %v4559
        %v4624 = vmul.f32 %v4368, %v4560
        %v4625 = vmul.f32 %v4369, %v4561
        %v4626 = vmul.f32 %v4370, %v4562
        %v4627 = vmul.f32 %v4371, %v4563
        %v4628 = vmul.f32 %v4372, %v4564
        %v4629 = vmul.f32 %v4373, %v4565
        %v4630 = vmul.f32 %v4374, %v4566
        %v4631 = vmul.f32 %v4375, %v4567
        %v4632 = vmul.f32 %v4376, %v4568
        %v4633 = vmul.f32 %v4377, %v4569
        %v4634 = vmul.f32 %v4378, %v4570
        %v4635 = vmul.f32 %v4379, %v4571
        %v4636 = vmul.f32 %v4380, %v4572
        %v4637 = vmul.f32 %v4381, %v4573
        %v4638 = vmul.f32 %v4382, %v4574
        %v4639 = vmul.f32 %v4383, %v4575
        %v4640 = vmul.f32 %v4384, %v4576
        %v4641 = vmul.f32 %v4385, %v4577
        %v4642 = vmul.f32 %v4386, %v4578
        %v4643 = vmul.f32 %v4387, %v4579
        %v4644 = vmul.f32 %v4388, %v4580
        %v4645 = vmul.f32 %v4389, %v4581
        %v4646 = vmul.f32 %v4390, %v4582
        %v4647 = vmul.f32 %v4391, %v4583
        %v4648 = vmul.f32 %v4392, %v4584
        %v4649 = vmul.f32 %v4393, %v4585
        %v4650 = vmul.f32 %v4394, %v4586
        %v4651 = vmul.f32 %v4395, %v4587
        %v4652 = vmul.f32 %v4396, %v4588
        %v4653 = vmul.f32 %v4397, %v4589
        %v4654 = vmul.f32 %v4398, %v4590
        %v4655 = vmul.f32 %v4399, %v4591
        %v4656 = vmul.f32 %v4400, %v4592
        %v4657 = vmul.f32 %v4401, %v4593
        %v4658 = vmul.f32 %v4402, %v4594
        %v4659 = vmul.f32 %v4403, %v4595
        %v4660 = vpack.c.bf16 %v4600, %v4596
        %v4661 = vpack.c.bf16 %v4601, %v4597
        %v4662 = vpack.c.bf16 %v4602, %v4598
        %v4663 = vpack.c.bf16 %v4603, %v4599
        %v4664 = vpack.c.bf16 %v4608, %v4604
        %v4665 = vpack.c.bf16 %v4609, %v4605
        %v4666 = vpack.c.bf16 %v4610, %v4606
        %v4667 = vpack.c.bf16 %v4611, %v4607
        %v4668 = vpack.c.bf16 %v4616, %v4612
        %v4669 = vpack.c.bf16 %v4617, %v4613
        %v4670 = vpack.c.bf16 %v4618, %v4614
        %v4671 = vpack.c.bf16 %v4619, %v4615
        %v4672 = vpack.c.bf16 %v4624, %v4620
        %v4673 = vpack.c.bf16 %v4625, %v4621
        %v4674 = vpack.c.bf16 %v4626, %v4622
        %v4675 = vpack.c.bf16 %v4627, %v4623
        %v4676 = vpack.c.bf16 %v4632, %v4628
        %v4677 = vpack.c.bf16 %v4633, %v4629
        %v4678 = vpack.c.bf16 %v4634, %v4630
        %v4679 = vpack.c.bf16 %v4635, %v4631
        %v4680 = vpack.c.bf16 %v4640, %v4636
        %v4681 = vpack.c.bf16 %v4641, %v4637
        %v4682 = vpack.c.bf16 %v4642, %v4638
        %v4683 = vpack.c.bf16 %v4643, %v4639
        %v4684 = vpack.c.bf16 %v4648, %v4644
        %v4685 = vpack.c.bf16 %v4649, %v4645
        %v4686 = vpack.c.bf16 %v4650, %v4646
        %v4687 = vpack.c.bf16 %v4651, %v4647
        %v4688 = vpack.c.bf16 %v4656, %v4652
        %v4689 = vpack.c.bf16 %v4657, %v4653
        %v4690 = vpack.c.bf16 %v4658, %v4654
        %v4691 = vpack.c.bf16 %v4659, %v4655
        %v4692 = vld [vmem:[#allocation13] sm:$0xf]
        %v4693 = vld [vmem:[#allocation13 + $0x4] sm:$0xf]
        %v4694 = vld [vmem:[#allocation13 + $0x8] sm:$0xf]
        %v4695 = vld [vmem:[#allocation13 + $0xc] sm:$0xf]
        %v4696 = vld [vmem:[#allocation13 + $0x10] sm:$0xf]
        %v4697 = vld [vmem:[#allocation13 + $0x14] sm:$0xf]
        %v4698 = vld [vmem:[#allocation13 + $0x18] sm:$0xf]
        %v4699 = vld [vmem:[#allocation13 + $0x1c] sm:$0xf]
        %v4700 = vld [vmem:[#allocation13 + $0x20] sm:$0xf]
        %v4701 = vld [vmem:[#allocation13 + $0x24] sm:$0xf]
        %v4702 = vld [vmem:[#allocation13 + $0x28] sm:$0xf]
        %v4703 = vld [vmem:[#allocation13 + $0x2c] sm:$0xf]
        %v4704 = vld [vmem:[#allocation13 + $0x30] sm:$0xf]
        %v4705 = vld [vmem:[#allocation13 + $0x34] sm:$0xf]
        %v4706 = vld [vmem:[#allocation13 + $0x38] sm:$0xf]
        %v4707 = vld [vmem:[#allocation13 + $0x3c] sm:$0xf]
        %v4708 = vld [vmem:[#allocation13 + $0x40] sm:$0xf]
        %v4709 = vld [vmem:[#allocation13 + $0x44] sm:$0xf]
        %v4710 = vld [vmem:[#allocation13 + $0x48] sm:$0xf]
        %v4711 = vld [vmem:[#allocation13 + $0x4c] sm:$0xf]
        %v4712 = vld [vmem:[#allocation13 + $0x50] sm:$0xf]
        %v4713 = vld [vmem:[#allocation13 + $0x54] sm:$0xf]
        %v4714 = vld [vmem:[#allocation13 + $0x58] sm:$0xf]
        %v4715 = vld [vmem:[#allocation13 + $0x5c] sm:$0xf]
        %v4716 = vld [vmem:[#allocation13 + $0x60] sm:$0xf]
        %v4717 = vld [vmem:[#allocation13 + $0x64] sm:$0xf]
        %v4718 = vld [vmem:[#allocation13 + $0x68] sm:$0xf]
        %v4719 = vld [vmem:[#allocation13 + $0x6c] sm:$0xf]
        %v4720 = vld [vmem:[#allocation13 + $0x70] sm:$0xf]
        %v4721 = vld [vmem:[#allocation13 + $0x74] sm:$0xf]
        %v4722 = vld [vmem:[#allocation13 + $0x78] sm:$0xf]
        %v4723 = vld [vmem:[#allocation13 + $0x7c] sm:$0xf]
        %v4724 = vld [vmem:[#allocation13 + $0x80] sm:$0xf]
        %v4725 = vld [vmem:[#allocation13 + $0x84] sm:$0xf]
        %v4726 = vld [vmem:[#allocation13 + $0x88] sm:$0xf]
        %v4727 = vld [vmem:[#allocation13 + $0x8c] sm:$0xf]
        %v4728 = vld [vmem:[#allocation13 + $0x90] sm:$0xf]
        %v4729 = vld [vmem:[#allocation13 + $0x94] sm:$0xf]
        %v4730 = vld [vmem:[#allocation13 + $0x98] sm:$0xf]
        %v4731 = vld [vmem:[#allocation13 + $0x9c] sm:$0xf]
        %v4732 = vld [vmem:[#allocation13 + $0xa0] sm:$0xf]
        %v4733 = vld [vmem:[#allocation13 + $0xa4] sm:$0xf]
        %v4734 = vld [vmem:[#allocation13 + $0xa8] sm:$0xf]
        %v4735 = vld [vmem:[#allocation13 + $0xac] sm:$0xf]
        %v4736 = vld [vmem:[#allocation13 + $0xb0] sm:$0xf]
        %v4737 = vld [vmem:[#allocation13 + $0xb4] sm:$0xf]
        %v4738 = vld [vmem:[#allocation13 + $0xb8] sm:$0xf]
        %v4739 = vld [vmem:[#allocation13 + $0xbc] sm:$0xf]
        %v4740 = vld [vmem:[#allocation13 + $0xc0] sm:$0xf]
        %v4741 = vld [vmem:[#allocation13 + $0xc4] sm:$0xf]
        %v4742 = vld [vmem:[#allocation13 + $0xc8] sm:$0xf]
        %v4743 = vld [vmem:[#allocation13 + $0xcc] sm:$0xf]
        %v4744 = vld [vmem:[#allocation13 + $0xd0] sm:$0xf]
        %v4745 = vld [vmem:[#allocation13 + $0xd4] sm:$0xf]
        %v4746 = vld [vmem:[#allocation13 + $0xd8] sm:$0xf]
        %v4747 = vld [vmem:[#allocation13 + $0xdc] sm:$0xf]
        %v4748 = vld [vmem:[#allocation13 + $0xe0] sm:$0xf]
        %v4749 = vld [vmem:[#allocation13 + $0xe4] sm:$0xf]
        %v4750 = vld [vmem:[#allocation13 + $0xe8] sm:$0xf]
        %v4751 = vld [vmem:[#allocation13 + $0xec] sm:$0xf]
        %v4752 = vld [vmem:[#allocation13 + $0xf0] sm:$0xf]
        %v4753 = vld [vmem:[#allocation13 + $0xf4] sm:$0xf]
        %v4754 = vld [vmem:[#allocation13 + $0xf8] sm:$0xf]
        %v4755 = vld [vmem:[#allocation13 + $0xfc] sm:$0xf]
        %v4756 = vld [vmem:[%s15] sm:$0x1]
        %v4758 = vlaneseq
        %v4759 = vshrl.u32 %v4758, 7
        %v4760 = vsub.s32 0, %v4759
        %v4761 = vrot.slane %v4756, %v4760
        %v4827 = vunpack.c.l.b16 %v4692
        %v4828 = vunpack.c.l.b16 %v4693
        %v4829 = vunpack.c.l.b16 %v4694
        %v4830 = vunpack.c.l.b16 %v4695
        %v4831 = vunpack.c.l.b16 %v4696
        %v4832 = vunpack.c.l.b16 %v4697
        %v4833 = vunpack.c.l.b16 %v4698
        %v4834 = vunpack.c.l.b16 %v4699
        %v4835 = vunpack.c.l.b16 %v4700
        %v4836 = vunpack.c.l.b16 %v4701
        %v4837 = vunpack.c.l.b16 %v4702
        %v4838 = vunpack.c.l.b16 %v4703
        %v4839 = vunpack.c.l.b16 %v4704
        %v4840 = vunpack.c.l.b16 %v4705
        %v4841 = vunpack.c.l.b16 %v4706
        %v4842 = vunpack.c.l.b16 %v4707
        %v4843 = vunpack.c.l.b16 %v4708
        %v4844 = vunpack.c.l.b16 %v4709
        %v4845 = vunpack.c.l.b16 %v4710
        %v4846 = vunpack.c.l.b16 %v4711
        %v4847 = vunpack.c.l.b16 %v4712
        %v4848 = vunpack.c.l.b16 %v4713
        %v4849 = vunpack.c.l.b16 %v4714
        %v4850 = vunpack.c.l.b16 %v4715
        %v4851 = vunpack.c.l.b16 %v4716
        %v4852 = vunpack.c.l.b16 %v4717
        %v4853 = vunpack.c.l.b16 %v4718
        %v4854 = vunpack.c.l.b16 %v4719
        %v4855 = vunpack.c.l.b16 %v4720
        %v4856 = vunpack.c.l.b16 %v4721
        %v4857 = vunpack.c.l.b16 %v4722
        %v4858 = vunpack.c.l.b16 %v4723
        %v4859 = vunpack.c.l.b16 %v4724
        %v4860 = vunpack.c.l.b16 %v4725
        %v4861 = vunpack.c.l.b16 %v4726
        %v4862 = vunpack.c.l.b16 %v4727
        %v4863 = vunpack.c.l.b16 %v4728
        %v4864 = vunpack.c.l.b16 %v4729
        %v4865 = vunpack.c.l.b16 %v4730
        %v4866 = vunpack.c.l.b16 %v4731
        %v4867 = vunpack.c.l.b16 %v4732
        %v4868 = vunpack.c.l.b16 %v4733
        %v4869 = vunpack.c.l.b16 %v4734
        %v4870 = vunpack.c.l.b16 %v4735
        %v4871 = vunpack.c.l.b16 %v4736
        %v4872 = vunpack.c.l.b16 %v4737
        %v4873 = vunpack.c.l.b16 %v4738
        %v4874 = vunpack.c.l.b16 %v4739
        %v4875 = vunpack.c.l.b16 %v4740
        %v4876 = vunpack.c.l.b16 %v4741
        %v4877 = vunpack.c.l.b16 %v4742
        %v4878 = vunpack.c.l.b16 %v4743
        %v4879 = vunpack.c.l.b16 %v4744
        %v4880 = vunpack.c.l.b16 %v4745
        %v4881 = vunpack.c.l.b16 %v4746
        %v4882 = vunpack.c.l.b16 %v4747
        %v4883 = vunpack.c.l.b16 %v4748
        %v4884 = vunpack.c.l.b16 %v4749
        %v4885 = vunpack.c.l.b16 %v4750
        %v4886 = vunpack.c.l.b16 %v4751
        %v4887 = vunpack.c.l.b16 %v4752
        %v4888 = vunpack.c.l.b16 %v4753
        %v4889 = vunpack.c.l.b16 %v4754
        %v4890 = vunpack.c.l.b16 %v4755
        %v4891 = vpack.c.b16 %v4828, %v4827
        %v4892 = vpack.c.b16 %v4830, %v4829
        %v4893 = vpack.c.b16 %v4832, %v4831
        %v4894 = vpack.c.b16 %v4834, %v4833
        %v4895 = vpack.c.b16 %v4836, %v4835
        %v4896 = vpack.c.b16 %v4838, %v4837
        %v4897 = vpack.c.b16 %v4840, %v4839
        %v4898 = vpack.c.b16 %v4842, %v4841
        %v4899 = vpack.c.b16 %v4844, %v4843
        %v4900 = vpack.c.b16 %v4846, %v4845
        %v4901 = vpack.c.b16 %v4848, %v4847
        %v4902 = vpack.c.b16 %v4850, %v4849
        %v4903 = vpack.c.b16 %v4852, %v4851
        %v4904 = vpack.c.b16 %v4854, %v4853
        %v4905 = vpack.c.b16 %v4856, %v4855
        %v4906 = vpack.c.b16 %v4858, %v4857
        %v4907 = vpack.c.b16 %v4860, %v4859
        %v4908 = vpack.c.b16 %v4862, %v4861
        %v4909 = vpack.c.b16 %v4864, %v4863
        %v4910 = vpack.c.b16 %v4866, %v4865
        %v4911 = vpack.c.b16 %v4868, %v4867
        %v4912 = vpack.c.b16 %v4870, %v4869
        %v4913 = vpack.c.b16 %v4872, %v4871
        %v4914 = vpack.c.b16 %v4874, %v4873
        %v4915 = vpack.c.b16 %v4876, %v4875
        %v4916 = vpack.c.b16 %v4878, %v4877
        %v4917 = vpack.c.b16 %v4880, %v4879
        %v4918 = vpack.c.b16 %v4882, %v4881
        %v4919 = vpack.c.b16 %v4884, %v4883
        %v4920 = vpack.c.b16 %v4886, %v4885
        %v4921 = vpack.c.b16 %v4888, %v4887
        %v4922 = vpack.c.b16 %v4890, %v4889
        %4955 = vmatprep.subr.bf16.mxu0 0
        %4956 = vmatpush1.bf16.msra.mxu0 %v4891
        %4957 = vmatprep.subr.bf16.mxu0 0
        %4958 = vmatpush1.bf16.msra.mxu0 %v4892
        %4959 = vmatprep.subr.bf16.mxu0 0
        %4960 = vmatpush1.bf16.msra.mxu0 %v4893
        %4961 = vmatprep.subr.bf16.mxu0 0
        %4962 = vmatpush1.bf16.msra.mxu0 %v4894
        %4963 = vmatprep.subr.bf16.mxu0 0
        %4964 = vmatpush1.bf16.msra.mxu0 %v4895
        %4965 = vmatprep.subr.bf16.mxu0 0
        %4966 = vmatpush1.bf16.msra.mxu0 %v4896
        %4967 = vmatprep.subr.bf16.mxu0 0
        %4968 = vmatpush1.bf16.msra.mxu0 %v4897
        %4969 = vmatprep.subr.bf16.mxu0 0
        %4970 = vmatpush1.bf16.msra.mxu0 %v4898
        %4971 = vmatprep.subr.bf16.mxu0 0
        %4972 = vmatpush1.bf16.msra.mxu0 %v4899
        %4973 = vmatprep.subr.bf16.mxu0 0
        %4974 = vmatpush1.bf16.msra.mxu0 %v4900
        %4975 = vmatprep.subr.bf16.mxu0 0
        %4976 = vmatpush1.bf16.msra.mxu0 %v4901
        %4977 = vmatprep.subr.bf16.mxu0 0
        %4978 = vmatpush1.bf16.msra.mxu0 %v4902
        %4979 = vmatprep.subr.bf16.mxu0 0
        %4980 = vmatpush1.bf16.msra.mxu0 %v4903
        %4981 = vmatprep.subr.bf16.mxu0 0
        %4982 = vmatpush1.bf16.msra.mxu0 %v4904
        %4983 = vmatprep.subr.bf16.mxu0 0
        %4984 = vmatpush1.bf16.msra.mxu0 %v4905
        %4985 = vmatprep.subr.bf16.mxu0 0
        %4986 = vmatpush1.bf16.msra.mxu0 %v4906
        %4987 = vmatprep.mubr.bf16.mxu0 %v4661
        %4988 = vmatmul.mubr.bf16.gmra.mrb[0].mxu0 %v4660
        %v4989 = vpop.f32.mrb[0].mxu0
        %v4990 = vadd.f32 %v4761, %v4989
        %v4991 = vpop.f32.mrb[0].mxu0
        %v4992 = vpop.f32.mrb[0].mxu0
        %v4993 = vadd.f32 %v4761, %v4992
        %v4994 = vpop.f32.mrb[0].mxu0
        %4995 = vmatprep.mubr.bf16.mxu0 %v4665
        %4996 = vmatmul.mubr.bf16.gmra.mrb[0].mxu0 %v4664
        %v4997 = vpop.f32.mrb[0].mxu0
        %v4998 = vadd.f32 %v4761, %v4997
        %v4999 = vpop.f32.mrb[0].mxu0
        %v5000 = vpop.f32.mrb[0].mxu0
        %v5001 = vadd.f32 %v4761, %v5000
        %v5002 = vpop.f32.mrb[0].mxu0
        %5003 = vmatprep.mubr.bf16.mxu0 %v4669
        %5004 = vmatmul.mubr.bf16.gmra.mrb[0].mxu0 %v4668
        %v5005 = vpop.f32.mrb[0].mxu0
        %v5006 = vadd.f32 %v4761, %v5005
        %v5007 = vpop.f32.mrb[0].mxu0
        %v5008 = vpop.f32.mrb[0].mxu0
        %v5009 = vadd.f32 %v4761, %v5008
        %v5010 = vpop.f32.mrb[0].mxu0
        %5011 = vmatprep.mubr.bf16.mxu0 %v4673
        %5012 = vmatmul.mubr.bf16.gmra.mrb[0].mxu0 %v4672
        %v5013 = vpop.f32.mrb[0].mxu0
        %v5014 = vadd.f32 %v4761, %v5013
        %v5015 = vpop.f32.mrb[0].mxu0
        %v5016 = vpop.f32.mrb[0].mxu0
        %v5017 = vadd.f32 %v4761, %v5016
        %v5018 = vpop.f32.mrb[0].mxu0
        %5019 = vmatprep.mubr.bf16.mxu0 %v4677
        %5020 = vmatmul.mubr.bf16.gmra.mrb[0].mxu0 %v4676
        %v5021 = vpop.f32.mrb[0].mxu0
        %v5022 = vadd.f32 %v4761, %v5021
        %v5023 = vpop.f32.mrb[0].mxu0
        %v5024 = vpop.f32.mrb[0].mxu0
        %v5025 = vadd.f32 %v4761, %v5024
        %v5026 = vpop.f32.mrb[0].mxu0
        %5027 = vmatprep.mubr.bf16.mxu0 %v4681
        %5028 = vmatmul.mubr.bf16.gmra.mrb[0].mxu0 %v4680
        %v5029 = vpop.f32.mrb[0].mxu0
        %v5030 = vadd.f32 %v4761, %v5029
        %v5031 = vpop.f32.mrb[0].mxu0
        %v5032 = vpop.f32.mrb[0].mxu0
        %v5033 = vadd.f32 %v4761, %v5032
        %v5034 = vpop.f32.mrb[0].mxu0
        %5035 = vmatprep.mubr.bf16.mxu0 %v4685
        %5036 = vmatmul.mubr.bf16.gmra.mrb[0].mxu0 %v4684
        %v5037 = vpop.f32.mrb[0].mxu0
        %v5038 = vadd.f32 %v4761, %v5037
        %v5039 = vpop.f32.mrb[0].mxu0
        %v5040 = vpop.f32.mrb[0].mxu0
        %v5041 = vadd.f32 %v4761, %v5040
        %v5042 = vpop.f32.mrb[0].mxu0
        %5043 = vmatprep.mubr.bf16.mxu0 %v4689
        %5044 = vmatmul.mubr.bf16.gmra.mrb[0].mxu0 %v4688
        %v5045 = vpop.f32.mrb[0].mxu0
        %v5046 = vadd.f32 %v4761, %v5045
        %v5047 = vpop.f32.mrb[0].mxu0
        %v5048 = vpop.f32.mrb[0].mxu0
        %v5049 = vadd.f32 %v4761, %v5048
        %v5050 = vpop.f32.mrb[0].mxu0
        %5051 = vdwg.mxu0
        %5052 = vmatprep.subr.bf16.mxu0 0
        %5053 = vmatpush1.bf16.msra.mxu0 %v4907
        %5054 = vmatprep.subr.bf16.mxu0 0
        %5055 = vmatpush1.bf16.msra.mxu0 %v4908
        %5056 = vmatprep.subr.bf16.mxu0 0
        %5057 = vmatpush1.bf16.msra.mxu0 %v4909
        %5058 = vmatprep.subr.bf16.mxu0 0
        %5059 = vmatpush1.bf16.msra.mxu0 %v4910
        %5060 = vmatprep.subr.bf16.mxu0 0
        %5061 = vmatpush1.bf16.msra.mxu0 %v4911
        %5062 = vmatprep.subr.bf16.mxu0 0
        %5063 = vmatpush1.bf16.msra.mxu0 %v4912
        %5064 = vmatprep.subr.bf16.mxu0 0
        %5065 = vmatpush1.bf16.msra.mxu0 %v4913
        %5066 = vmatprep.subr.bf16.mxu0 0
        %5067 = vmatpush1.bf16.msra.mxu0 %v4914
        %5068 = vmatprep.subr.bf16.mxu0 0
        %5069 = vmatpush1.bf16.msra.mxu0 %v4915
        %5070 = vmatprep.subr.bf16.mxu0 0
        %5071 = vmatpush1.bf16.msra.mxu0 %v4916
        %5072 = vmatprep.subr.bf16.mxu0 0
        %5073 = vmatpush1.bf16.msra.mxu0 %v4917
        %5074 = vmatprep.subr.bf16.mxu0 0
        %5075 = vmatpush1.bf16.msra.mxu0 %v4918
        %5076 = vmatprep.subr.bf16.mxu0 0
        %5077 = vmatpush1.bf16.msra.mxu0 %v4919
        %5078 = vmatprep.subr.bf16.mxu0 0
        %5079 = vmatpush1.bf16.msra.mxu0 %v4920
        %5080 = vmatprep.subr.bf16.mxu0 0
        %5081 = vmatpush1.bf16.msra.mxu0 %v4921
        %5082 = vmatprep.subr.bf16.mxu0 0
        %5083 = vmatpush1.bf16.msra.mxu0 %v4922
        %5084 = vmatprep.mubr.bf16.mxu0 %v4663
        %5085 = vmatmul.mubr.bf16.gmra.mrb[0].mxu0 %v4662
        %v5086 = vpop.f32.mrb[0].mxu0
        %v5087 = vadd.f32 %v4990, %v5086
        %v5088 = vpop.f32.mrb[0].mxu0
        %v5089 = vpop.f32.mrb[0].mxu0
        %v5090 = vadd.f32 %v4993, %v5089
        %v5091 = vpop.f32.mrb[0].mxu0
        %5092 = vmatprep.mubr.bf16.mxu0 %v4667
        %5093 = vmatmul.mubr.bf16.gmra.mrb[0].mxu0 %v4666
        %v5094 = vpop.f32.mrb[0].mxu0
        %v5095 = vadd.f32 %v4998, %v5094
        %v5096 = vpop.f32.mrb[0].mxu0
        %v5097 = vpop.f32.mrb[0].mxu0
        %v5098 = vadd.f32 %v5001, %v5097
        %v5099 = vpop.f32.mrb[0].mxu0
        %5100 = vmatprep.mubr.bf16.mxu0 %v4671
        %5101 = vmatmul.mubr.bf16.gmra.mrb[0].mxu0 %v4670
        %v5102 = vpop.f32.mrb[0].mxu0
        %v5103 = vadd.f32 %v5006, %v5102
        %v5104 = vpop.f32.mrb[0].mxu0
        %v5105 = vpop.f32.mrb[0].mxu0
        %v5106 = vadd.f32 %v5009, %v5105
        %v5107 = vpop.f32.mrb[0].mxu0
        %5108 = vmatprep.mubr.bf16.mxu0 %v4675
        %5109 = vmatmul.mubr.bf16.gmra.mrb[0].mxu0 %v4674
        %v5110 = vpop.f32.mrb[0].mxu0
        %v5111 = vadd.f32 %v5014, %v5110
        %v5112 = vpop.f32.mrb[0].mxu0
        %v5113 = vpop.f32.mrb[0].mxu0
        %v5114 = vadd.f32 %v5017, %v5113
        %v5115 = vpop.f32.mrb[0].mxu0
        %5116 = vmatprep.mubr.bf16.mxu0 %v4679
        %5117 = vmatmul.mubr.bf16.gmra.mrb[0].mxu0 %v4678
        %v5118 = vpop.f32.mrb[0].mxu0
        %v5119 = vadd.f32 %v5022, %v5118
        %v5120 = vpop.f32.mrb[0].mxu0
        %v5121 = vpop.f32.mrb[0].mxu0
        %v5122 = vadd.f32 %v5025, %v5121
        %v5123 = vpop.f32.mrb[0].mxu0
        %5124 = vmatprep.mubr.bf16.mxu0 %v4683
        %5125 = vmatmul.mubr.bf16.gmra.mrb[0].mxu0 %v4682
        %v5126 = vpop.f32.mrb[0].mxu0
        %v5127 = vadd.f32 %v5030, %v5126
        %v5128 = vpop.f32.mrb[0].mxu0
        %v5129 = vpop.f32.mrb[0].mxu0
        %v5130 = vadd.f32 %v5033, %v5129
        %v5131 = vpop.f32.mrb[0].mxu0
        %5132 = vmatprep.mubr.bf16.mxu0 %v4687
        %5133 = vmatmul.mubr.bf16.gmra.mrb[0].mxu0 %v4686
        %v5134 = vpop.f32.mrb[0].mxu0
        %v5135 = vadd.f32 %v5038, %v5134
        %v5136 = vpop.f32.mrb[0].mxu0
        %v5137 = vpop.f32.mrb[0].mxu0
        %v5138 = vadd.f32 %v5041, %v5137
        %v5139 = vpop.f32.mrb[0].mxu0
        %5140 = vmatprep.mubr.bf16.mxu0 %v4691
        %5141 = vmatmul.mubr.bf16.gmra.mrb[0].mxu0 %v4690
        %v5142 = vpop.f32.mrb[0].mxu0
        %v5143 = vadd.f32 %v5046, %v5142
        %v5144 = vpop.f32.mrb[0].mxu0
        %v5145 = vpop.f32.mrb[0].mxu0
        %v5146 = vadd.f32 %v5049, %v5145
        %v5147 = vpop.f32.mrb[0].mxu0
        %5148 = vdwg.mxu0
        %v5149 = vadd.f32 %v3876, %v5087
        %v5150 = vadd.f32 %v3877, %v5090
        %v5151 = vadd.f32 %v3878, %v5095
        %v5152 = vadd.f32 %v3879, %v5098
        %v5153 = vadd.f32 %v3880, %v5103
        %v5154 = vadd.f32 %v3881, %v5106
        %v5155 = vadd.f32 %v3882, %v5111
        %v5156 = vadd.f32 %v3883, %v5114
        %v5157 = vadd.f32 %v3884, %v5119
        %v5158 = vadd.f32 %v3885, %v5122
        %v5159 = vadd.f32 %v3886, %v5127
        %v5160 = vadd.f32 %v3887, %v5130
        %v5161 = vadd.f32 %v3888, %v5135
        %v5162 = vadd.f32 %v3889, %v5138
        %v5163 = vadd.f32 %v3890, %v5143
        %v5164 = vadd.f32 %v3891, %v5146
        %5165 = vst [vmem:[%s627] sm:$0xff] %v5149
        %5166 = vst [vmem:[%s627 + $0x8] sm:$0xff] %v5150
        %5167 = vst [vmem:[%s627 + $0x10] sm:$0xff] %v5151
        %5168 = vst [vmem:[%s627 + $0x18] sm:$0xff] %v5152
        %5169 = vst [vmem:[%s627 + $0x20] sm:$0xff] %v5153
        %5170 = vst [vmem:[%s627 + $0x28] sm:$0xff] %v5154
        %5171 = vst [vmem:[%s627 + $0x30] sm:$0xff] %v5155
        %5172 = vst [vmem:[%s627 + $0x38] sm:$0xff] %v5156
        %5173 = vst [vmem:[%s627 + $0x40] sm:$0xff] %v5157
        %5174 = vst [vmem:[%s627 + $0x48] sm:$0xff] %v5158
        %5175 = vst [vmem:[%s627 + $0x50] sm:$0xff] %v5159
        %5176 = vst [vmem:[%s627 + $0x58] sm:$0xff] %v5160
        %5177 = vst [vmem:[%s627 + $0x60] sm:$0xff] %v5161
        %5178 = vst [vmem:[%s627 + $0x68] sm:$0xff] %v5162
        %5179 = vst [vmem:[%s627 + $0x70] sm:$0xff] %v5163
        %5180 = vst [vmem:[%s627 + $0x78] sm:$0xff] %v5164
        %s5181 = sand.u32 %s385, 1
        %s5182 = scalar_lea.sflag [#allocation4], %s5181
        %s5183 = sand.u32 %s385, 1
        %s5184 = smul.addr %s5183, 128
        %s5185 = scalar_lea.vmem [#allocation14], %s5184
        // Predicated region
        $region113: #{tpu_custom_call.1} parent=83 // pred_check
          %p5186 = pneg %p395
        $region114: #{tpu_custom_call.1} parent=83 // pred_check_branch
          %5188 = sbr.rel (%p5186) target = $region116
        $region115: #{tpu_custom_call.1} parent=83 // pred_region
          %s5189 = smul.u32 8, %s36
          %s5191 = ssub.s32 2048, 2048
          %5192 = vsyncadd %s5182, %s5191
          %s5193 = smul.addr %s5189, 2
          %s5194 = smul.addr %s5193, 128
          %s5195 = scalar_lea.hbm %s16, %s5194
          %s5196 = sshll.u32 %s5185, 4
          %s5197 = int_to_ptr.vmem [resolvable:$true] %s5196
          %5202 = dma.vmem_to_hbm [thread:$0]  %s5197, 2048, %s5195, %s5182, 128, 128, 8
        $region116: #{tpu_custom_call.1} parent=83 // pred_fallthru
          _
      $region84: #{tpu_custom_call.1} parent=5 // pred_fallthru
        _
      %p5203 = scmp.le.s32.totalorder 2, %s31
      // Predicated region
      $region117: #{tpu_custom_call.1} parent=5 // pred_check
        %p5204 = pneg %p5203
      $region118: #{tpu_custom_call.1} parent=5 // pred_check_branch
        %5206 = sbr.rel (%p5204) target = $region120
      $region119: #{tpu_custom_call.1} parent=5 // pred_region
        %s5207 = ssub.s32 %s31, 2
        // Predicated region
        $region121: #{tpu_custom_call.1} parent=119 // pred_check
          %p5208 = pneg %p401
        $region122: #{tpu_custom_call.1} parent=119 // pred_check_branch
          %5210 = sbr.rel (%p5208) target = $region124
        $region123: #{tpu_custom_call.1} parent=119 // pred_region
          %s5211 = sand.u32 %s386, 1
          %s5212 = scalar_lea.sflag [#allocation4], %s5211
          %s5213 = sand.u32 %s386, 1
          %s5214 = smul.addr %s5213, 128
          %s5215 = scalar_lea.vmem [#allocation14], %s5214
          %5216 = dma.done %s5212, 2048
        $region124: #{tpu_custom_call.1} parent=119 // pred_fallthru
          _
      $region120: #{tpu_custom_call.1} parent=5 // pred_fallthru
        _
    $region6: #{tpu_custom_call.1} parent=1 // loop_footer
      %s35 = sadd.s32 1, %s31
    $region7: #{tpu_custom_call.1} parent=1 // loop_footer_branch
      %30 = sbr.rel target = $region3
    $region8: #{tpu_custom_call.1} parent=1 // loop_exit
      _
    %5217 = vsyncpa [#allocation3], 1
    %s5218 = scalar_lea.sflag [#allocation3], 1
    %5219 = vsyncpa %s5218, 1
    %5220 = vsyncpa [#allocation6], 1
    %5221 = vsyncpa [#allocation9], 1
    %5222 = vsyncpa [#allocation12], 1
    %5223 = vsyncpa [#allocation4], 1
    %s5224 = scalar_lea.sflag [#allocation4], 1
    %5225 = vsyncpa %s5224, 1

</llo_original>
